<compile_context>
chip_gen: v5e
topology: v5e:2x2
jax: 0.10.0
libtpu: 0.0.40
codegen_flags: <defaults>
</compile_context>

<pallas_src>
import jax
import jax.numpy as jnp
from jax import lax
from jax.experimental import pallas as pl
from jax.experimental.pallas import tpu as pltpu

EPS = 1e-5
LANES = 128          # vreg lane width: pad output-channel dims up to this


def _round_up(x, m):
    return ((x + m - 1) // m) * m


# ----------------------------- Pallas kernels ------------------------------ #

def _convt_bn_relu_kernel(a_ref, b_ref, bias_ref, gamma_ref, beta_ref, o_ref):
    """Fused (A @ B + bias) -> BatchNorm(train, biased var) -> ReLU.

    A: (M, K) bf16 im2col patches.  B: (K, Cpad) bf16 weights with zero columns
    beyond the real Cout (Cpad is a multiple of 128 -> lane-dense stores).
    Accumulation and all epilogue math stay in f32; a single bf16 store.
    """
    acc = jnp.dot(a_ref[...], b_ref[...], preferred_element_type=jnp.float32)
    acc = acc + bias_ref[...]                       # (1, Cpad) broadcasts over rows
    mean = jnp.mean(acc, axis=0, keepdims=True)     # batch stats over M = N*H*W
    var = jnp.mean(jnp.square(acc - mean), axis=0, keepdims=True)
    y = (acc - mean) * lax.rsqrt(var + EPS) * gamma_ref[...] + beta_ref[...]
    o_ref[...] = jnp.maximum(y, 0.0).astype(o_ref.dtype)


def convt_bn_relu(a, b_pad, bias_pad, gamma_pad, beta_pad):
    """One fused pallas_call per ConvT+BN+ReLU layer (single (M,K) block:
    the BN reduction couples all M rows; M <= N*169 for these layers)."""
    m, k = a.shape
    cpad = b_pad.shape[1]
    return pl.pallas_call(
        _convt_bn_relu_kernel,
        out_shape=jax.ShapeDtypeStruct((m, cpad), jnp.bfloat16),
        grid=(1,),
        in_specs=[
            pl.BlockSpec((m, k), lambda i: (0, 0)),
            pl.BlockSpec((k, cpad), lambda i: (0, 0)),
            pl.BlockSpec((1, cpad), lambda i: (0, 0)),
            pl.BlockSpec((1, cpad), lambda i: (0, 0)),
            pl.BlockSpec((1, cpad), lambda i: (0, 0)),
        ],
        out_specs=pl.BlockSpec((m, cpad), lambda i: (0, 0)),
        compiler_params=pltpu.CompilerParams(
            dimension_semantics=("arbitrary",)),
    )(a, b_pad, bias_pad, gamma_pad, beta_pad)


def _convt_tanh_t_kernel(w_ref, a_ref, bias_ref, o_ref):
    """Final layer, transposed: (Cout, K) @ (K, Mblk) + bias -> tanh."""
    acc = jnp.dot(w_ref[...], a_ref[...], preferred_element_type=jnp.float32)
    acc = acc + bias_ref[...]                       # (Cout, 1) broadcasts over lanes
    o_ref[...] = jnp.tanh(acc)


def convt_tanh_transposed(w_row, a_t, bias_col, *, block_m=512):
    """out^T (Cout, M) with M = N*Hout*Wout on lanes (Cout=1 would otherwise
    leave 127/128 of every output vreg masked).  M is tiled with a real grid
    marked 'parallel' so megacore / v7x dual-TC split the tiles and the A^T
    DMA double-buffers against the MXU."""
    cout, k = w_row.shape
    _, m = a_t.shape
    block_m = min(block_m, m)
    return pl.pallas_call(
        _convt_tanh_t_kernel,
        out_shape=jax.ShapeDtypeStruct((cout, m), jnp.float32),
        grid=(pl.cdiv(m, block_m),),
        in_specs=[
            pl.BlockSpec((cout, k), lambda j: (0, 0)),
            pl.BlockSpec((k, block_m), lambda j: (0, j)),
            pl.BlockSpec((cout, 1), lambda j: (0, 0)),
        ],
        out_specs=pl.BlockSpec((cout, block_m), lambda j: (0, j)),
        compiler_params=pltpu.CompilerParams(
            dimension_semantics=("parallel",)),
    )(w_row, a_t, bias_col)


# ------------------------------ JAX glue ----------------------------------- #

def _dilate_pad_nhwc(x, k, stride):
    """Fractional stride (dilate by `stride`) + full (k-1) padding, NHWC."""
    n, h, w, c = x.shape
    hd = (h - 1) * stride + 1
    wd = (w - 1) * stride + 1
    x_dil = jnp.zeros((n, hd, wd, c), x.dtype)
    x_dil = x_dil.at[:, ::stride, ::stride, :].set(x)
    x_pad = jnp.pad(x_dil, ((0, 0), (k - 1, k - 1), (k - 1, k - 1), (0, 0)))
    return x_pad, (h - 1) * stride + k, (w - 1) * stride + k


def _im2col_nhwc(x, k, stride):
    """A[(n,oh,ow), (p,q,ci)] for ConvTranspose2d(k, stride, padding=0)."""
    # TODO(synk): move this gather into the kernel (index_map / manual DMA) so
    # the k^2-inflated patch slab never round-trips HBM, and phase-decompose
    # stride-2 layers so the MXU never sees the structural dilation zeros.
    n, _, _, c = x.shape
    x_pad, hout, wout = _dilate_pad_nhwc(x, k, stride)
    cols = [x_pad[:, p:p + hout, q:q + wout, :] for p in range(k) for q in range(k)]
    patches = jnp.stack(cols, axis=3)                 # (N, Hout, Wout, k*k, C)
    return patches.reshape(n * hout * wout, k * k * c), (hout, wout)


def _im2col_t_nhwc(x, k, stride):
    """A^T[(p,q,ci), (n,oh,ow)] — output spatial positions land on lanes."""
    n, _, _, c = x.shape
    x_pad, hout, wout = _dilate_pad_nhwc(x, k, stride)
    x_cnhw = jnp.transpose(x_pad, (3, 0, 1, 2))       # tiny (C,N,Hp,Wp) tensor
    cols = [x_cnhw[:, :, p:p + hout, q:q + wout] for p in range(k) for q in range(k)]
    patches = jnp.stack(cols, axis=0)                 # (k*k, C, N, Hout, Wout)
    return patches.reshape(k * k * c, n * hout * wout), (hout, wout)


def init_params(key, noise_dim, hidden_dim, image_channel):
    specs = [
        (noise_dim, hidden_dim * 4, 3, 2),
        (hidden_dim * 4, hidden_dim * 2, 4, 1),
        (hidden_dim * 2, hidden_dim, 3, 2),
        (hidden_dim, image_channel, 4, 2),
    ]
    params = []
    for i, (cin, cout, k, s) in enumerate(specs):
        key, kw, kb = jax.random.split(key, 3)
        bound = 1.0 / float(cin * k * k) ** 0.5
        w = jax.random.uniform(kw, (cin, cout, k, k), jnp.float32, -bound, bound)
        b = jax.random.uniform(kb, (cout,), jnp.float32, -bound, bound)
        gamma = jnp.ones((cout,), jnp.float32) if i < len(specs) - 1 else None
        beta = jnp.zeros((cout,), jnp.float32) if i < len(specs) - 1 else None
        params.append(dict(w=w, b=b, gamma=gamma, beta=beta, stride=s))
    return params


def prepare_slabs(params):
    """Precompute bf16 weight slabs and 128-lane-padded f32 BN/bias vectors."""
    slabs = []
    last = len(params) - 1
    for i, p in enumerate(params):
        cin, cout, k, _ = p["w"].shape
        w_flip = p["w"][:, :, ::-1, ::-1]                       # (Cin, Cout, k, k)
        if i < last:
            cpad = max(LANES, _round_up(cout, LANES))
            # B[(p,q,ci), co], columns zero-padded to a full 128-lane vreg.
            bmat = jnp.transpose(w_flip, (2, 3, 0, 1)).reshape(k * k * cin, cout)
            bmat = jnp.pad(bmat, ((0, 0), (0, cpad - cout))).astype(jnp.bfloat16)

            def pad_vec(v, _cpad=cpad, _cout=cout):
                return jnp.pad(v, (0, _cpad - _cout)).reshape(1, _cpad).astype(jnp.float32)

            slabs.append(dict(kind="bn_relu", stride=p["stride"], k=k,
                              cout=cout, cpad=cpad, bmat=bmat,
                              bias=pad_vec(p["b"]), gamma=pad_vec(p["gamma"]),
                              beta=pad_vec(p["beta"])))
        else:
            # Final layer computed transposed: W[co, (p,q,ci)].
            w_row = jnp.transpose(w_flip, (1, 2, 3, 0)).reshape(cout, k * k * cin)
            slabs.append(dict(kind="tanh", stride=p["stride"], k=k, cout=cout,
                              w_row=w_row.astype(jnp.bfloat16),
                              bias=p["b"].reshape(cout, 1).astype(jnp.float32)))
    return slabs


def generator_forward(slabs, noise):
    """noise (N, Z) -> image (N, image_channel, 28, 28), NCHW like PyTorch."""
    n = noise.shape[0]
    # noise.view(N, Z, 1, 1) in NCHW == (N, 1, 1, Z) channels-last.
    x = noise.reshape(n, 1, 1, noise.shape[1]).astype(jnp.bfloat16)
    out = None
    for s in slabs:
        if s["kind"] == "bn_relu":
            a, (hout, wout) = _im2col_nhwc(x, s["k"], s["stride"])
            y = convt_bn_relu(a, s["bmat"], s["bias"], s["gamma"], s["beta"])
            # Stay channels-last (bf16); drop the zero pad lanes before the
            # next im2col so the MXU never contracts over padding channels.
            x = y.reshape(n, hout, wout, s["cpad"])[..., :s["cout"]]
        else:
            a_t, (hout, wout) = _im2col_t_nhwc(x, s["k"], s["stride"])
            y_t = convt_tanh_transposed(s["w_row"], a_t, s["bias"])
            out = y_t.reshape(s["cout"], n, hout, wout).transpose(1, 0, 2, 3)
    return out


# --------------------------- pure-JAX reference ----------------------------- #

def _conv_transpose_ref(x, w, b, stride):
    cin, cout, k, _ = w.shape
    w_t = jnp.transpose(w[:, :, ::-1, ::-1], (1, 0, 2, 3))     # (Cout, Cin, k, k)
    y = lax.conv_general_dilated(
        x, w_t, window_strides=(1, 1),
        padding=[(k - 1, k - 1), (k - 1, k - 1)],
        lhs_dilation=(stride, stride),
        dimension_numbers=("NCHW", "OIHW", "NCHW"))
    return y + b.reshape(1, -1, 1, 1)


def generator_ref(params, noise):
    n, nd = noise.shape
    x = noise.reshape(n, nd, 1, 1)
    for i, p in enumerate(params):
        x = _conv_transpose_ref(x, p["w"], p["b"], p["stride"])
        if i < len(params) - 1:
            mean = jnp.mean(x, axis=(0, 2, 3), keepdims=True)
            var = jnp.mean(jnp.square(x - mean), axis=(0, 2, 3), keepdims=True)
            x = (x - mean) * lax.rsqrt(var + EPS) \
                * p["gamma"].reshape(1, -1, 1, 1) + p["beta"].reshape(1, -1, 1, 1)
            x = jnp.maximum(x, 0.0)
        else:
            x = jnp.tanh(x)
    return x


# --------------------------------- main ------------------------------------ #

if __name__ == "__main__":
    noise_dim, hidden_dim, image_channel = 16, 8, 1    # small but shape-faithful
    batch = 2

    key = jax.random.PRNGKey(0)
    kp, kn = jax.random.split(key)
    params = init_params(kp, noise_dim, hidden_dim, image_channel)
    slabs = prepare_slabs(params)
    noise = jax.random.normal(kn, (batch, noise_dim), jnp.float32)

    gen = jax.jit(lambda z: generator_forward(slabs, z))
    out = jax.block_until_ready(gen(noise))
    ref = jax.block_until_ready(generator_ref(params, noise))

    # DCGAN generator: 1x1 -> 3x3 -> 6x6 -> 13x13 -> 28x28
    assert out.shape == (batch, image_channel, 28, 28), out.shape
    assert bool(jnp.all(jnp.isfinite(out)))
    # bf16 MXU inputs with f32 accumulation/statistics vs. an all-f32 reference.
    assert bool(jnp.allclose(out, ref, atol=5e-2, rtol=5e-2)), \
        float(jnp.max(jnp.abs(out - ref)))
    print("KERNEL_OK")
</pallas_src>

<mosaic_0001>
module attributes {stable_mosaic.version = 11 : i64} {
  func.func @_convt_bn_relu_kernel(%arg0: i32, %arg1: memref<18x144xbf16, #tpu.memory_space<vmem>>, %arg2: memref<144x128xbf16, #tpu.memory_space<vmem>>, %arg3: memref<1x128xf32, #tpu.memory_space<vmem>>, %arg4: memref<1x128xf32, #tpu.memory_space<vmem>>, %arg5: memref<1x128xf32, #tpu.memory_space<vmem>>, %arg6: memref<18x128xbf16, #tpu.memory_space<vmem>>) attributes {dimension_semantics = [#tpu.dimension_semantics<arbitrary>], iteration_bounds = array<i64: 1>, scalar_prefetch = 0 : i64, scratch_operands = 0 : i64, tpu.core_type = #tpu.core_type<tc>, window_params = [{pipeline_mode = #tpu.pipeline_mode<synchronous>, transform_indices = @transform_0, window_bounds = array<i64: 18, 144>}, {pipeline_mode = #tpu.pipeline_mode<synchronous>, transform_indices = @transform_1, window_bounds = array<i64: 144, 128>}, {pipeline_mode = #tpu.pipeline_mode<synchronous>, transform_indices = @transform_2, window_bounds = array<i64: 1, 128>}, {pipeline_mode = #tpu.pipeline_mode<synchronous>, transform_indices = @transform_3, window_bounds = array<i64: 1, 128>}, {pipeline_mode = #tpu.pipeline_mode<synchronous>, transform_indices = @transform_4, window_bounds = array<i64: 1, 128>}, {pipeline_mode = #tpu.pipeline_mode<synchronous>, transform_indices = @transform_5, window_bounds = array<i64: 18, 128>}]} {
    %c0 = arith.constant 0 : index
    %c0_0 = arith.constant 0 : index
    %0 = vector.load %arg1[%c0, %c0_0] : memref<18x144xbf16, #tpu.memory_space<vmem>>, vector<18x144xbf16>
    %c0_1 = arith.constant 0 : index
    %c0_2 = arith.constant 0 : index
    %1 = vector.load %arg2[%c0_1, %c0_2] : memref<144x128xbf16, #tpu.memory_space<vmem>>, vector<144x128xbf16>
    %cst = arith.constant dense<0.000000e+00> : vector<18x128xf32>
    %2 = tpu.matmul %0, %1, %cst {dimension_numbers = #tpu.dot_dimension_numbers<[1], [0], [0], [1], [0, 0, 1, 1], [], []>} : vector<18x144xbf16>, vector<144x128xbf16>, vector<18x128xf32> -> vector<18x128xf32>
    %c0_3 = arith.constant 0 : index
    %c0_4 = arith.constant 0 : index
    %3 = vector.load %arg3[%c0_3, %c0_4] : memref<1x128xf32, #tpu.memory_space<vmem>>, vector<1x128xf32>
    %4 = vector.broadcast %3 : vector<1x128xf32> to vector<18x128xf32>
    %5 = arith.addf %2, %4 : vector<18x128xf32>
    %cst_5 = arith.constant dense<0.000000e+00> : vector<128xf32>
    %6 = vector.multi_reduction <add>, %5, %cst_5 [0] : vector<18x128xf32> to vector<128xf32>
    %7 = vector.shape_cast %6 : vector<128xf32> to vector<1x128xf32>
    %cst_6 = arith.constant 1.800000e+01 : f32
    %8 = vector.broadcast %cst_6 : f32 to vector<1x128xf32>
    %9 = arith.divf %7, %8 : vector<1x128xf32>
    %10 = vector.broadcast %9 : vector<1x128xf32> to vector<18x128xf32>
    %11 = arith.subf %5, %10 : vector<18x128xf32>
    %12 = arith.mulf %11, %11 : vector<18x128xf32>
    %cst_7 = arith.constant dense<0.000000e+00> : vector<128xf32>
    %13 = vector.multi_reduction <add>, %12, %cst_7 [0] : vector<18x128xf32> to vector<128xf32>
    %14 = vector.shape_cast %13 : vector<128xf32> to vector<1x128xf32>
    %cst_8 = arith.constant 1.800000e+01 : f32
    %15 = vector.broadcast %cst_8 : f32 to vector<1x128xf32>
    %16 = arith.divf %14, %15 : vector<1x128xf32>
    %17 = vector.broadcast %9 : vector<1x128xf32> to vector<18x128xf32>
    %18 = arith.subf %5, %17 : vector<18x128xf32>
    %cst_9 = arith.constant 9.99999974E-6 : f32
    %19 = vector.broadcast %cst_9 : f32 to vector<1x128xf32>
    %20 = arith.addf %16, %19 : vector<1x128xf32>
    %21 = math.rsqrt %20 : vector<1x128xf32>
    %22 = vector.broadcast %21 : vector<1x128xf32> to vector<18x128xf32>
    %23 = arith.mulf %18, %22 : vector<18x128xf32>
    %c0_10 = arith.constant 0 : index
    %c0_11 = arith.constant 0 : index
    %24 = vector.load %arg4[%c0_10, %c0_11] : memref<1x128xf32, #tpu.memory_space<vmem>>, vector<1x128xf32>
    %25 = vector.broadcast %24 : vector<1x128xf32> to vector<18x128xf32>
    %26 = arith.mulf %23, %25 : vector<18x128xf32>
    %c0_12 = arith.constant 0 : index
    %c0_13 = arith.constant 0 : index
    %27 = vector.load %arg5[%c0_12, %c0_13] : memref<1x128xf32, #tpu.memory_space<vmem>>, vector<1x128xf32>
    %28 = vector.broadcast %27 : vector<1x128xf32> to vector<18x128xf32>
    %29 = arith.addf %26, %28 : vector<18x128xf32>
    %cst_14 = arith.constant 0.000000e+00 : f32
    %30 = vector.broadcast %cst_14 : f32 to vector<18x128xf32>
    %31 = arith.maximumf %29, %30 : vector<18x128xf32>
    %32 = arith.truncf %31 : vector<18x128xf32> to vector<18x128xbf16>
    %c0_15 = arith.constant 0 : index
    %c0_16 = arith.constant 0 : index
    %33 = vector.load %arg6[%c0_15, %c0_16] : memref<18x128xbf16, #tpu.memory_space<vmem>>, vector<18x128xbf16>
    tpu.vector_store %arg6[%c0_15, %c0_16], %32 {strides = array<i32>} : memref<18x128xbf16, #tpu.memory_space<vmem>>, vector<18x128xbf16>,
    return
  }
  func.func @transform_0(%arg0: i32) -> (i32, i32) {
    %c0_i32 = arith.constant 0 : i32
    %c0_i32_0 = arith.constant 0 : i32
    %c0_i32_1 = arith.constant 0 : i32
    return %c0_i32, %c0_i32_0 : i32, i32
  }
  func.func @transform_1(%arg0: i32) -> (i32, i32) {
    %c0_i32 = arith.constant 0 : i32
    %c0_i32_0 = arith.constant 0 : i32
    %c0_i32_1 = arith.constant 0 : i32
    return %c0_i32, %c0_i32_0 : i32, i32
  }
  func.func @transform_2(%arg0: i32) -> (i32, i32) {
    %c0_i32 = arith.constant 0 : i32
    %c0_i32_0 = arith.constant 0 : i32
    %c0_i32_1 = arith.constant 0 : i32
    return %c0_i32, %c0_i32_0 : i32, i32
  }
  func.func @transform_3(%arg0: i32) -> (i32, i32) {
    %c0_i32 = arith.constant 0 : i32
    %c0_i32_0 = arith.constant 0 : i32
    %c0_i32_1 = arith.constant 0 : i32
    return %c0_i32, %c0_i32_0 : i32, i32
  }
  func.func @transform_4(%arg0: i32) -> (i32, i32) {
    %c0_i32 = arith.constant 0 : i32
    %c0_i32_0 = arith.constant 0 : i32
    %c0_i32_1 = arith.constant 0 : i32
    return %c0_i32, %c0_i32_0 : i32, i32
  }
  func.func @transform_5(%arg0: i32) -> (i32, i32) {
    %c0_i32 = arith.constant 0 : i32
    %c0_i32_0 = arith.constant 0 : i32
    %c0_i32_1 = arith.constant 0 : i32
    return %c0_i32, %c0_i32_0 : i32, i32
  }
}

module attributes {stable_mosaic.version = 11 : i64} {
  func.func @_convt_bn_relu_kernel(%arg0: i32, %arg1: memref<72x512xbf16, #tpu.memory_space<vmem>>, %arg2: memref<512x128xbf16, #tpu.memory_space<vmem>>, %arg3: memref<1x128xf32, #tpu.memory_space<vmem>>, %arg4: memref<1x128xf32, #tpu.memory_space<vmem>>, %arg5: memref<1x128xf32, #tpu.memory_space<vmem>>, %arg6: memref<72x128xbf16, #tpu.memory_space<vmem>>) attributes {dimension_semantics = [#tpu.dimension_semantics<arbitrary>], iteration_bounds = array<i64: 1>, scalar_prefetch = 0 : i64, scratch_operands = 0 : i64, tpu.core_type = #tpu.core_type<tc>, window_params = [{pipeline_mode = #tpu.pipeline_mode<synchronous>, transform_indices = @transform_0, window_bounds = array<i64: 72, 512>}, {pipeline_mode = #tpu.pipeline_mode<synchronous>, transform_indices = @transform_1, window_bounds = array<i64: 512, 128>}, {pipeline_mode = #tpu.pipeline_mode<synchronous>, transform_indices = @transform_2, window_bounds = array<i64: 1, 128>}, {pipeline_mode = #tpu.pipeline_mode<synchronous>, transform_indices = @transform_3, window_bounds = array<i64: 1, 128>}, {pipeline_mode = #tpu.pipeline_mode<synchronous>, transform_indices = @transform_4, window_bounds = array<i64: 1, 128>}, {pipeline_mode = #tpu.pipeline_mode<synchronous>, transform_indices = @transform_5, window_bounds = array<i64: 72, 128>}]} {
    %c0 = arith.constant 0 : index
    %c0_0 = arith.constant 0 : index
    %0 = vector.load %arg1[%c0, %c0_0] : memref<72x512xbf16, #tpu.memory_space<vmem>>, vector<72x512xbf16>
    %c0_1 = arith.constant 0 : index
    %c0_2 = arith.constant 0 : index
    %1 = vector.load %arg2[%c0_1, %c0_2] : memref<512x128xbf16, #tpu.memory_space<vmem>>, vector<512x128xbf16>
    %cst = arith.constant dense<0.000000e+00> : vector<72x128xf32>
    %2 = tpu.matmul %0, %1, %cst {dimension_numbers = #tpu.dot_dimension_numbers<[1], [0], [0], [1], [0, 0, 1, 1], [], []>} : vector<72x512xbf16>, vector<512x128xbf16>, vector<72x128xf32> -> vector<72x128xf32>
    %c0_3 = arith.constant 0 : index
    %c0_4 = arith.constant 0 : index
    %3 = vector.load %arg3[%c0_3, %c0_4] : memref<1x128xf32, #tpu.memory_space<vmem>>, vector<1x128xf32>
    %4 = vector.broadcast %3 : vector<1x128xf32> to vector<72x128xf32>
    %5 = arith.addf %2, %4 : vector<72x128xf32>
    %cst_5 = arith.constant dense<0.000000e+00> : vector<128xf32>
    %6 = vector.multi_reduction <add>, %5, %cst_5 [0] : vector<72x128xf32> to vector<128xf32>
    %7 = vector.shape_cast %6 : vector<128xf32> to vector<1x128xf32>
    %cst_6 = arith.constant 7.200000e+01 : f32
    %8 = vector.broadcast %cst_6 : f32 to vector<1x128xf32>
    %9 = arith.divf %7, %8 : vector<1x128xf32>
    %10 = vector.broadcast %9 : vector<1x128xf32> to vector<72x128xf32>
    %11 = arith.subf %5, %10 : vector<72x128xf32>
    %12 = arith.mulf %11, %11 : vector<72x128xf32>
    %cst_7 = arith.constant dense<0.000000e+00> : vector<128xf32>
    %13 = vector.multi_reduction <add>, %12, %cst_7 [0] : vector<72x128xf32> to vector<128xf32>
    %14 = vector.shape_cast %13 : vector<128xf32> to vector<1x128xf32>
    %cst_8 = arith.constant 7.200000e+01 : f32
    %15 = vector.broadcast %cst_8 : f32 to vector<1x128xf32>
    %16 = arith.divf %14, %15 : vector<1x128xf32>
    %17 = vector.broadcast %9 : vector<1x128xf32> to vector<72x128xf32>
    %18 = arith.subf %5, %17 : vector<72x128xf32>
    %cst_9 = arith.constant 9.99999974E-6 : f32
    %19 = vector.broadcast %cst_9 : f32 to vector<1x128xf32>
    %20 = arith.addf %16, %19 : vector<1x128xf32>
    %21 = math.rsqrt %20 : vector<1x128xf32>
    %22 = vector.broadcast %21 : vector<1x128xf32> to vector<72x128xf32>
    %23 = arith.mulf %18, %22 : vector<72x128xf32>
    %c0_10 = arith.constant 0 : index
    %c0_11 = arith.constant 0 : index
    %24 = vector.load %arg4[%c0_10, %c0_11] : memref<1x128xf32, #tpu.memory_space<vmem>>, vector<1x128xf32>
    %25 = vector.broadcast %24 : vector<1x128xf32> to vector<72x128xf32>
    %26 = arith.mulf %23, %25 : vector<72x128xf32>
    %c0_12 = arith.constant 0 : index
    %c0_13 = arith.constant 0 : index
    %27 = vector.load %arg5[%c0_12, %c0_13] : memref<1x128xf32, #tpu.memory_space<vmem>>, vector<1x128xf32>
    %28 = vector.broadcast %27 : vector<1x128xf32> to vector<72x128xf32>
    %29 = arith.addf %26, %28 : vector<72x128xf32>
    %cst_14 = arith.constant 0.000000e+00 : f32
    %30 = vector.broadcast %cst_14 : f32 to vector<72x128xf32>
    %31 = arith.maximumf %29, %30 : vector<72x128xf32>
    %32 = arith.truncf %31 : vector<72x128xf32> to vector<72x128xbf16>
    %c0_15 = arith.constant 0 : index
    %c0_16 = arith.constant 0 : index
    %33 = vector.load %arg6[%c0_15, %c0_16] : memref<72x128xbf16, #tpu.memory_space<vmem>>, vector<72x128xbf16>
    tpu.vector_store %arg6[%c0_15, %c0_16], %32 {strides = array<i32>} : memref<72x128xbf16, #tpu.memory_space<vmem>>, vector<72x128xbf16>,
    return
  }
  func.func @transform_0(%arg0: i32) -> (i32, i32) {
    %c0_i32 = arith.constant 0 : i32
    %c0_i32_0 = arith.constant 0 : i32
    %c0_i32_1 = arith.constant 0 : i32
    return %c0_i32, %c0_i32_0 : i32, i32
  }
  func.func @transform_1(%arg0: i32) -> (i32, i32) {
    %c0_i32 = arith.constant 0 : i32
    %c0_i32_0 = arith.constant 0 : i32
    %c0_i32_1 = arith.constant 0 : i32
    return %c0_i32, %c0_i32_0 : i32, i32
  }
  func.func @transform_2(%arg0: i32) -> (i32, i32) {
    %c0_i32 = arith.constant 0 : i32
    %c0_i32_0 = arith.constant 0 : i32
    %c0_i32_1 = arith.constant 0 : i32
    return %c0_i32, %c0_i32_0 : i32, i32
  }
  func.func @transform_3(%arg0: i32) -> (i32, i32) {
    %c0_i32 = arith.constant 0 : i32
    %c0_i32_0 = arith.constant 0 : i32
    %c0_i32_1 = arith.constant 0 : i32
    return %c0_i32, %c0_i32_0 : i32, i32
  }
  func.func @transform_4(%arg0: i32) -> (i32, i32) {
    %c0_i32 = arith.constant 0 : i32
    %c0_i32_0 = arith.constant 0 : i32
    %c0_i32_1 = arith.constant 0 : i32
    return %c0_i32, %c0_i32_0 : i32, i32
  }
  func.func @transform_5(%arg0: i32) -> (i32, i32) {
    %c0_i32 = arith.constant 0 : i32
    %c0_i32_0 = arith.constant 0 : i32
    %c0_i32_1 = arith.constant 0 : i32
    return %c0_i32, %c0_i32_0 : i32, i32
  }
}

module attributes {stable_mosaic.version = 11 : i64} {
  func.func @_convt_bn_relu_kernel(%arg0: i32, %arg1: memref<338x144xbf16, #tpu.memory_space<vmem>>, %arg2: memref<144x128xbf16, #tpu.memory_space<vmem>>, %arg3: memref<1x128xf32, #tpu.memory_space<vmem>>, %arg4: memref<1x128xf32, #tpu.memory_space<vmem>>, %arg5: memref<1x128xf32, #tpu.memory_space<vmem>>, %arg6: memref<338x128xbf16, #tpu.memory_space<vmem>>) attributes {dimension_semantics = [#tpu.dimension_semantics<arbitrary>], iteration_bounds = array<i64: 1>, scalar_prefetch = 0 : i64, scratch_operands = 0 : i64, tpu.core_type = #tpu.core_type<tc>, window_params = [{pipeline_mode = #tpu.pipeline_mode<synchronous>, transform_indices = @transform_0, window_bounds = array<i64: 338, 144>}, {pipeline_mode = #tpu.pipeline_mode<synchronous>, transform_indices = @transform_1, window_bounds = array<i64: 144, 128>}, {pipeline_mode = #tpu.pipeline_mode<synchronous>, transform_indices = @transform_2, window_bounds = array<i64: 1, 128>}, {pipeline_mode = #tpu.pipeline_mode<synchronous>, transform_indices = @transform_3, window_bounds = array<i64: 1, 128>}, {pipeline_mode = #tpu.pipeline_mode<synchronous>, transform_indices = @transform_4, window_bounds = array<i64: 1, 128>}, {pipeline_mode = #tpu.pipeline_mode<synchronous>, transform_indices = @transform_5, window_bounds = array<i64: 338, 128>}]} {
    %c0 = arith.constant 0 : index
    %c0_0 = arith.constant 0 : index
    %0 = vector.load %arg1[%c0, %c0_0] : memref<338x144xbf16, #tpu.memory_space<vmem>>, vector<338x144xbf16>
    %c0_1 = arith.constant 0 : index
    %c0_2 = arith.constant 0 : index
    %1 = vector.load %arg2[%c0_1, %c0_2] : memref<144x128xbf16, #tpu.memory_space<vmem>>, vector<144x128xbf16>
    %cst = arith.constant dense<0.000000e+00> : vector<338x128xf32>
    %2 = tpu.matmul %0, %1, %cst {dimension_numbers = #tpu.dot_dimension_numbers<[1], [0], [0], [1], [0, 0, 1, 1], [], []>} : vector<338x144xbf16>, vector<144x128xbf16>, vector<338x128xf32> -> vector<338x128xf32>
    %c0_3 = arith.constant 0 : index
    %c0_4 = arith.constant 0 : index
    %3 = vector.load %arg3[%c0_3, %c0_4] : memref<1x128xf32, #tpu.memory_space<vmem>>, vector<1x128xf32>
    %4 = vector.broadcast %3 : vector<1x128xf32> to vector<338x128xf32>
    %5 = arith.addf %2, %4 : vector<338x128xf32>
    %cst_5 = arith.constant dense<0.000000e+00> : vector<128xf32>
    %6 = vector.multi_reduction <add>, %5, %cst_5 [0] : vector<338x128xf32> to vector<128xf32>
    %7 = vector.shape_cast %6 : vector<128xf32> to vector<1x128xf32>
    %cst_6 = arith.constant 3.380000e+02 : f32
    %8 = vector.broadcast %cst_6 : f32 to vector<1x128xf32>
    %9 = arith.divf %7, %8 : vector<1x128xf32>
    %10 = vector.broadcast %9 : vector<1x128xf32> to vector<338x128xf32>
    %11 = arith.subf %5, %10 : vector<338x128xf32>
    %12 = arith.mulf %11, %11 : vector<338x128xf32>
    %cst_7 = arith.constant dense<0.000000e+00> : vector<128xf32>
    %13 = vector.multi_reduction <add>, %12, %cst_7 [0] : vector<338x128xf32> to vector<128xf32>
    %14 = vector.shape_cast %13 : vector<128xf32> to vector<1x128xf32>
    %cst_8 = arith.constant 3.380000e+02 : f32
    %15 = vector.broadcast %cst_8 : f32 to vector<1x128xf32>
    %16 = arith.divf %14, %15 : vector<1x128xf32>
    %17 = vector.broadcast %9 : vector<1x128xf32> to vector<338x128xf32>
    %18 = arith.subf %5, %17 : vector<338x128xf32>
    %cst_9 = arith.constant 9.99999974E-6 : f32
    %19 = vector.broadcast %cst_9 : f32 to vector<1x128xf32>
    %20 = arith.addf %16, %19 : vector<1x128xf32>
    %21 = math.rsqrt %20 : vector<1x128xf32>
    %22 = vector.broadcast %21 : vector<1x128xf32> to vector<338x128xf32>
    %23 = arith.mulf %18, %22 : vector<338x128xf32>
    %c0_10 = arith.constant 0 : index
    %c0_11 = arith.constant 0 : index
    %24 = vector.load %arg4[%c0_10, %c0_11] : memref<1x128xf32, #tpu.memory_space<vmem>>, vector<1x128xf32>
    %25 = vector.broadcast %24 : vector<1x128xf32> to vector<338x128xf32>
    %26 = arith.mulf %23, %25 : vector<338x128xf32>
    %c0_12 = arith.constant 0 : index
    %c0_13 = arith.constant 0 : index
    %27 = vector.load %arg5[%c0_12, %c0_13] : memref<1x128xf32, #tpu.memory_space<vmem>>, vector<1x128xf32>
    %28 = vector.broadcast %27 : vector<1x128xf32> to vector<338x128xf32>
    %29 = arith.addf %26, %28 : vector<338x128xf32>
    %cst_14 = arith.constant 0.000000e+00 : f32
    %30 = vector.broadcast %cst_14 : f32 to vector<338x128xf32>
    %31 = arith.maximumf %29, %30 : vector<338x128xf32>
    %32 = arith.truncf %31 : vector<338x128xf32> to vector<338x128xbf16>
    %c0_15 = arith.constant 0 : index
    %c0_16 = arith.constant 0 : index
    %33 = vector.load %arg6[%c0_15, %c0_16] : memref<338x128xbf16, #tpu.memory_space<vmem>>, vector<338x128xbf16>
    tpu.vector_store %arg6[%c0_15, %c0_16], %32 {strides = array<i32>} : memref<338x128xbf16, #tpu.memory_space<vmem>>, vector<338x128xbf16>,
    return
  }
  func.func @transform_0(%arg0: i32) -> (i32, i32) {
    %c0_i32 = arith.constant 0 : i32
    %c0_i32_0 = arith.constant 0 : i32
    %c0_i32_1 = arith.constant 0 : i32
    return %c0_i32, %c0_i32_0 : i32, i32
  }
  func.func @transform_1(%arg0: i32) -> (i32, i32) {
    %c0_i32 = arith.constant 0 : i32
    %c0_i32_0 = arith.constant 0 : i32
    %c0_i32_1 = arith.constant 0 : i32
    return %c0_i32, %c0_i32_0 : i32, i32
  }
  func.func @transform_2(%arg0: i32) -> (i32, i32) {
    %c0_i32 = arith.constant 0 : i32
    %c0_i32_0 = arith.constant 0 : i32
    %c0_i32_1 = arith.constant 0 : i32
    return %c0_i32, %c0_i32_0 : i32, i32
  }
  func.func @transform_3(%arg0: i32) -> (i32, i32) {
    %c0_i32 = arith.constant 0 : i32
    %c0_i32_0 = arith.constant 0 : i32
    %c0_i32_1 = arith.constant 0 : i32
    return %c0_i32, %c0_i32_0 : i32, i32
  }
  func.func @transform_4(%arg0: i32) -> (i32, i32) {
    %c0_i32 = arith.constant 0 : i32
    %c0_i32_0 = arith.constant 0 : i32
    %c0_i32_1 = arith.constant 0 : i32
    return %c0_i32, %c0_i32_0 : i32, i32
  }
  func.func @transform_5(%arg0: i32) -> (i32, i32) {
    %c0_i32 = arith.constant 0 : i32
    %c0_i32_0 = arith.constant 0 : i32
    %c0_i32_1 = arith.constant 0 : i32
    return %c0_i32, %c0_i32_0 : i32, i32
  }
}

module attributes {stable_mosaic.version = 11 : i64} {
  func.func @_convt_tanh_t_kernel(%arg0: i32, %arg1: memref<1x128xbf16, #tpu.memory_space<vmem>>, %arg2: memref<128x512xbf16, #tpu.memory_space<vmem>>, %arg3: memref<1x1xf32, #tpu.memory_space<vmem>>, %arg4: memref<1x512xf32, #tpu.memory_space<vmem>>) attributes {dimension_semantics = [#tpu.dimension_semantics<parallel>], iteration_bounds = array<i64: 4>, scalar_prefetch = 0 : i64, scratch_operands = 0 : i64, tpu.core_type = #tpu.core_type<tc>, window_params = [{pipeline_mode = #tpu.pipeline_mode<synchronous>, transform_indices = @transform_0, window_bounds = array<i64: 1, 128>}, {transform_indices = @transform_1, window_bounds = array<i64: 128, 512>}, {pipeline_mode = #tpu.pipeline_mode<synchronous>, transform_indices = @transform_2, window_bounds = array<i64: 1, 1>}, {transform_indices = @transform_3, window_bounds = array<i64: 1, 512>}]} {
    %c0 = arith.constant 0 : index
    %c0_0 = arith.constant 0 : index
    %0 = vector.load %arg1[%c0, %c0_0] : memref<1x128xbf16, #tpu.memory_space<vmem>>, vector<1x128xbf16>
    %c0_1 = arith.constant 0 : index
    %c0_2 = arith.constant 0 : index
    %1 = vector.load %arg2[%c0_1, %c0_2] : memref<128x512xbf16, #tpu.memory_space<vmem>>, vector<128x512xbf16>
    %cst = arith.constant dense<0.000000e+00> : vector<1x512xf32>
    %2 = tpu.matmul %0, %1, %cst {dimension_numbers = #tpu.dot_dimension_numbers<[1], [0], [0], [1], [0, 0, 1, 1], [], []>} : vector<1x128xbf16>, vector<128x512xbf16>, vector<1x512xf32> -> vector<1x512xf32>
    %c0_3 = arith.constant 0 : index
    %c0_4 = arith.constant 0 : index
    %3 = vector.load %arg3[%c0_3, %c0_4] : memref<1x1xf32, #tpu.memory_space<vmem>>, vector<1x1xf32>
    %4 = vector.broadcast %3 : vector<1x1xf32> to vector<1x512xf32>
    %5 = arith.addf %2, %4 : vector<1x512xf32>
    %6 = math.tanh %5 : vector<1x512xf32>
    %c0_5 = arith.constant 0 : index
    %c0_6 = arith.constant 0 : index
    %7 = vector.load %arg4[%c0_5, %c0_6] : memref<1x512xf32, #tpu.memory_space<vmem>>, vector<1x512xf32>
    tpu.vector_store %arg4[%c0_5, %c0_6], %6 {strides = array<i32>} : memref<1x512xf32, #tpu.memory_space<vmem>>, vector<1x512xf32>,
    return
  }
  func.func @transform_0(%arg0: i32) -> (i32, i32) {
    %c0_i32 = arith.constant 0 : i32
    %c0_i32_0 = arith.constant 0 : i32
    %c0_i32_1 = arith.constant 0 : i32
    return %c0_i32, %c0_i32_0 : i32, i32
  }
  func.func @transform_1(%arg0: i32) -> (i32, i32) {
    %c0_i32 = arith.constant 0 : i32
    %c0_i32_0 = arith.constant 0 : i32
    return %c0_i32, %arg0 : i32, i32
  }
  func.func @transform_2(%arg0: i32) -> (i32, i32) {
    %c0_i32 = arith.constant 0 : i32
    %c0_i32_0 = arith.constant 0 : i32
    %c0_i32_1 = arith.constant 0 : i32
    return %c0_i32, %c0_i32_0 : i32, i32
  }
  func.func @transform_3(%arg0: i32) -> (i32, i32) {
    %c0_i32 = arith.constant 0 : i32
    %c0_i32_0 = arith.constant 0 : i32
    return %c0_i32, %arg0 : i32, i32
  }
}

</mosaic_0001>

<llo_original>
// kernel: _lambda_.4
$region0: #{_lambda_.4}
  #allocation0 [shape = 'u32[]', space=smem, size = 0x4, offset = 0x4, fixed_abs, tag = 'smem constant byte address 0x4 - core index']
  #allocation1 [shape = 'u32[72,128]{1,0:T(1,128)}', space=vmem, size = 0x9000, scoped, tag = 'internal scratch']
  %s0 = inlined_call_operand.vmem [shape: bf16[18,144], index: 0, kind: input, shape index: {}]
  %s1 = inlined_call_operand.hbm [shape: bf16[144,128], index: 1, kind: input, shape index: {}]
  %s2 = inlined_call_operand.hbm [shape: f32[1,128], index: 2, kind: input, shape index: {}]
  %s3 = inlined_call_operand.hbm [shape: f32[1,128], index: 3, kind: input, shape index: {}]
  %s4 = inlined_call_operand.vmem [shape: f32[1,128], index: 4, kind: input, shape index: {}]
  %s5 = inlined_call_operand.vmem [shape: bf16[18,128], index: 5, kind: output, shape index: {}]
  %s6 = sld [smem:[#allocation0]]
  $region42: #{_lambda_.4} parent=0
    _
  %s8 = ssub.s32 1, %s6
  %s9 = scalar_select 0, %s8, %s6
  $region1: #{_lambda_.4} parent=0
    #allocation2 [shape = 'u8[36864]{0}', space=vmem, size = 0x9000, scoped, tag = 'input window, operand 1, single buffered']
    #allocation3 [shape = 's32[1]{0}', space=sflag, size = 0x4, scoped, tag = 'scoped memory for _lambda_.4']
    #allocation4 [shape = 'u8[512]{0}', space=vmem, size = 0x400, scoped, tag = 'input window, operand 2, single buffered']
    #allocation5 [shape = 's32[1]{0}', space=sflag, size = 0x4, scoped, tag = 'scoped memory for _lambda_.4']
    #allocation6 [shape = 'u8[512]{0}', space=vmem, size = 0x400, scoped, tag = 'input window, operand 3, single buffered']
    %10 = vsyncpa [#allocation3], 0
    %11 = vsyncpa [#allocation5], 0
    // Predicated region
    $region2: #{_lambda_.4} parent=1 // pred_check
      _
    $region3: #{_lambda_.4} parent=1 // pred_check_branch
      %13 = sbr.rel (0) target = $region5
    $region4: #{_lambda_.4} parent=1 // pred_region
      _
    $region5: #{_lambda_.4} parent=1 // pred_fallthru
      _
    // Predicated region
    $region6: #{_lambda_.4} parent=1 // pred_check
      _
    $region7: #{_lambda_.4} parent=1 // pred_check_branch
      %15 = sbr.rel (0) target = $region9
    $region8: #{_lambda_.4} parent=1 // pred_region
      %17 = vsyncadd [#allocation3], 0
      %s18 = sshll.u32 %s1, 4
      %s19 = int_to_ptr.hbm [resolvable:$true] %s18
      %s20 = sshll.u32 [#allocation2], 4
      %s21 = int_to_ptr.vmem [resolvable:$true] %s20
      %26 = dma.hbm_to_vmem [thread:$0]  %s19, 1152, %s21, [#allocation3], 64, 64, 4
    $region9: #{_lambda_.4} parent=1 // pred_fallthru
      _
    // Predicated region
    $region10: #{_lambda_.4} parent=1 // pred_check
      _
    $region11: #{_lambda_.4} parent=1 // pred_check_branch
      %28 = sbr.rel (0) target = $region13
    $region12: #{_lambda_.4} parent=1 // pred_region
      %30 = vsyncadd [#allocation5], 0
      %s32 = sshll.u32 %s2, 4
      %s33 = int_to_ptr.hbm [resolvable:$true] %s32
      %s34 = sshll.u32 [#allocation4], 4
      %s35 = int_to_ptr.vmem [resolvable:$true] %s34
      %37 = dma.hbm_to_vmem [thread:$0]  %s33, 16, %s35, [#allocation5]
    $region13: #{_lambda_.4} parent=1 // pred_fallthru
      _
    // Predicated region
    $region14: #{_lambda_.4} parent=1 // pred_check
      _
    $region15: #{_lambda_.4} parent=1 // pred_check_branch
      %39 = sbr.rel (0) target = $region17
    $region16: #{_lambda_.4} parent=1 // pred_region
      %41 = vsyncadd [#allocation5], 0
      %s43 = sshll.u32 %s3, 4
      %s44 = int_to_ptr.hbm [resolvable:$true] %s43
      %s45 = sshll.u32 [#allocation6], 4
      %s46 = int_to_ptr.vmem [resolvable:$true] %s45
      %48 = dma.hbm_to_vmem [thread:$0]  %s44, 16, %s46, [#allocation5]
    $region17: #{_lambda_.4} parent=1 // pred_fallthru
      _
    // Predicated region
    $region18: #{_lambda_.4} parent=1 // pred_check
      _
    $region19: #{_lambda_.4} parent=1 // pred_check_branch
      %50 = sbr.rel (0) target = $region21
    $region20: #{_lambda_.4} parent=1 // pred_region
      _
    $region21: #{_lambda_.4} parent=1 // pred_fallthru
      _
    // Predicated region
    $region22: #{_lambda_.4} parent=1 // pred_check
      _
    $region23: #{_lambda_.4} parent=1 // pred_check_branch
      %52 = sbr.rel (0) target = $region25
    $region24: #{_lambda_.4} parent=1 // pred_region
      %54 = dma.done [#allocation3], 1152
    $region25: #{_lambda_.4} parent=1 // pred_fallthru
      _
    // Predicated region
    $region26: #{_lambda_.4} parent=1 // pred_check
      _
    $region27: #{_lambda_.4} parent=1 // pred_check_branch
      %56 = sbr.rel (0) target = $region29
    $region28: #{_lambda_.4} parent=1 // pred_region
      %58 = dma.done [#allocation5], 16
    $region29: #{_lambda_.4} parent=1 // pred_fallthru
      _
    // Predicated region
    $region30: #{_lambda_.4} parent=1 // pred_check
      _
    $region31: #{_lambda_.4} parent=1 // pred_check_branch
      %60 = sbr.rel (0) target = $region33
    $region32: #{_lambda_.4} parent=1 // pred_region
      %62 = dma.done [#allocation5], 16
    $region33: #{_lambda_.4} parent=1 // pred_fallthru
      _
    %v64 = vld [vmem:[%s0] sm:$0xff]
    %v65 = vld [vmem:[%s0 + $0x8] sm:$0xff]
    %v66 = vld [vmem:[%s0 + $0x10] sm:$0x11]
    %v67 = vld [vmem:[#allocation2] sm:$0xf]
    %v68 = vld [vmem:[#allocation2 + $0x4] sm:$0xf]
    %v69 = vld [vmem:[#allocation2 + $0x8] sm:$0xf]
    %v70 = vld [vmem:[#allocation2 + $0xc] sm:$0xf]
    %v71 = vld [vmem:[#allocation2 + $0x10] sm:$0xf]
    %v72 = vld [vmem:[#allocation2 + $0x14] sm:$0xf]
    %v73 = vld [vmem:[#allocation2 + $0x18] sm:$0xf]
    %v74 = vld [vmem:[#allocation2 + $0x1c] sm:$0xf]
    %v75 = vld [vmem:[#allocation2 + $0x20] sm:$0xf]
    %v76 = vld [vmem:[#allocation2 + $0x24] sm:$0xf]
    %v77 = vld [vmem:[#allocation2 + $0x28] sm:$0xf]
    %v78 = vld [vmem:[#allocation2 + $0x2c] sm:$0xf]
    %v79 = vld [vmem:[#allocation2 + $0x30] sm:$0xf]
    %v80 = vld [vmem:[#allocation2 + $0x34] sm:$0xf]
    %v81 = vld [vmem:[#allocation2 + $0x38] sm:$0xf]
    %v82 = vld [vmem:[#allocation2 + $0x3c] sm:$0xf]
    %v83 = vld [vmem:[#allocation2 + $0x40] sm:$0xf]
    %v84 = vld [vmem:[#allocation2 + $0x44] sm:$0xf]
    %v85 = vld [vmem:[#allocation4] sm:$0x1]
    %v87 = vperm.slane %v85, 0
    %v92 = vunpack.c.l.b16 %v64
    %v93 = vunpack.c.h.b16 %v64
    %v94 = vunpack.c.l.b16 %v65
    %v95 = vunpack.c.h.b16 %v65
    %v96 = vunpack.c.l.b16 %v66
    %v97 = vunpack.c.h.b16 %v66
    %v98 = vpack.c.b16 %v94, %v92
    %v99 = vpack.c.b16 %v95, %v93
    %v100 = vpack.c.b16 %v96, %v96
    %v101 = vpack.c.b16 %v97, %v97
    %v122 = vunpack.c.l.b16 %v67
    %v123 = vunpack.c.l.b16 %v68
    %v124 = vunpack.c.l.b16 %v69
    %v125 = vunpack.c.l.b16 %v70
    %v126 = vunpack.c.l.b16 %v71
    %v127 = vunpack.c.l.b16 %v72
    %v128 = vunpack.c.l.b16 %v73
    %v129 = vunpack.c.l.b16 %v74
    %v130 = vunpack.c.l.b16 %v75
    %v131 = vunpack.c.l.b16 %v76
    %v132 = vunpack.c.l.b16 %v77
    %v133 = vunpack.c.l.b16 %v78
    %v134 = vunpack.c.l.b16 %v79
    %v135 = vunpack.c.l.b16 %v80
    %v136 = vunpack.c.l.b16 %v81
    %v137 = vunpack.c.l.b16 %v82
    %v138 = vunpack.c.l.b16 %v83
    %v139 = vunpack.c.l.b16 %v84
    %v140 = vpack.c.b16 %v123, %v122
    %v141 = vpack.c.b16 %v125, %v124
    %v142 = vpack.c.b16 %v127, %v126
    %v143 = vpack.c.b16 %v129, %v128
    %v144 = vpack.c.b16 %v131, %v130
    %v145 = vpack.c.b16 %v133, %v132
    %v146 = vpack.c.b16 %v135, %v134
    %v147 = vpack.c.b16 %v137, %v136
    %v148 = vpack.c.b16 %v139, %v138
    %vm158 = vcmask 130048
    %v160 = vsel %vm158, %v99, 0
    %v163 = vsel %vm158, %v101, 0
    %165 = vmatpush.bf16.msra.mxu0 %v147
    %166 = vmatpush.bf16.msra.mxu0 %v146
    %167 = vmatpush.bf16.msra.mxu0 %v145
    %168 = vmatpush.bf16.msra.mxu0 %v144
    %169 = vmatpush.bf16.msra.mxu0 %v143
    %170 = vmatpush.bf16.msra.mxu0 %v142
    %171 = vmatpush.bf16.msra.mxu0 %v141
    %172 = vmatpush.bf16.msra.mxu0 %v140
    %173 = vmatmul.bf16.gmra.mxu0 %v98
    %v174 = vpop.f32.mrf.mxu0
    %v175 = vadd.f32 %v87, %v174
    %v176 = vpop.f32.mrf.mxu0
    %v177 = vadd.f32 %v87, %v176
    %178 = vmatmul.bf16.gmra.mxu0 %v100
    %v179 = vpop.f32.mrf.mxu0
    %v180 = vadd.f32 %v87, %v179
    %v181 = vpop.f32.mrf.mxu0
    %182 = vdwg.mxu0
    %183 = vmatpush.bf16.msra.mxu0 0
    %184 = vmatpush.bf16.msra.mxu0 0
    %185 = vmatpush.bf16.msra.mxu0 0
    %186 = vmatpush.bf16.msra.mxu0 0
    %187 = vmatpush.bf16.msra.mxu0 0
    %188 = vmatpush.bf16.msra.mxu0 0
    %189 = vmatpush.bf16.msra.mxu0 0
    %190 = vmatpush.bf16.msra.mxu0 %v148
    %191 = vmatmul.bf16.gmra.mxu0 %v160
    %v192 = vpop.f32.mrf.mxu0
    %v193 = vadd.f32 %v175, %v192
    %v194 = vpop.f32.mrf.mxu0
    %v195 = vadd.f32 %v177, %v194
    %196 = vmatmul.bf16.gmra.mxu0 %v163
    %v197 = vpop.f32.mrf.mxu0
    %v198 = vadd.f32 %v180, %v197
    %v199 = vpop.f32.mrf.mxu0
    %200 = vdwg.mxu0
    %v201 = vadd.f32 %v193, %v195
    %vm202 = vcmask 1041408
    %v203 = vsel %vm202, %v198, 0.0
    %v204 = vadd.f32 %v201, %v203
    %v205 = vrot.slane %v204, 4
    %v206 = vadd.f32 %v204, %v205
    %v207 = vrot.slane %v206, 2
    %v208 = vadd.f32 %v206, %v207
    %v209 = vrot.slane %v208, 1
    %v210 = vadd.f32 %v208, %v209
    %v211 = vrcp.pop 18.0
    %v212 = vmul.f32 18.0, %v211
    %v213 = vsub.f32 1.0, %v212
    %v214 = vmul.f32 %v211, %v213
    %v215 = vadd.f32 %v211, %v214
    %vm216 = vweird.f32 %v211
    %v217 = vsel %vm216, %v211, %v215
    %v218 = vmul.f32 %v210, %v217
    %v219 = vsub.f32 %v193, %v218
    %v220 = vsub.f32 %v195, %v218
    %v221 = vsub.f32 %v198, %v218
    %v222 = vmul.f32 %v219, %v219
    %v223 = vmul.f32 %v220, %v220
    %v224 = vmul.f32 %v221, %v221
    %v225 = vadd.f32 %v222, %v223
    %v226 = vsel %vm202, %v224, 0.0
    %v227 = vadd.f32 %v225, %v226
    %v228 = vrot.slane %v227, 4
    %v229 = vadd.f32 %v227, %v228
    %v230 = vrot.slane %v229, 2
    %v231 = vadd.f32 %v229, %v230
    %v232 = vrot.slane %v231, 1
    %v233 = vadd.f32 %v231, %v232
    %v234 = vmul.f32 %v233, %v217
    %v235 = vadd.f32 %v234, 1e-05
    %v236 = vrsqrt.pop %v235
    %v237 = vmul.f32 %v236, %v235
    %v238 = vmul.f32 %v237, %v236
    %v239 = vmul.f32 0.5, %v238
    %v240 = vsub.f32 1.5, %v239
    %v241 = vmul.f32 %v236, %v240
    %vm242 = vweird.f32 %v235
    %vm243 = vweird.f32 %v236
    %vm244 = vmor %vm242, %vm243
    %v245 = vsel %vm244, %v236, %v241
    %v246 = vmul.f32 %v219, %v245
    %v247 = vmul.f32 %v220, %v245
    %v248 = vmul.f32 %v221, %v245
    %v249 = vld [vmem:[#allocation6] sm:$0x1]
    %v251 = vperm.slane %v249, 0
    %v253 = vmul.f32 %v246, %v251
    %v254 = vmul.f32 %v247, %v251
    %v255 = vmul.f32 %v248, %v251
    %v256 = vld [vmem:[%s4] sm:$0x1]
    %v258 = vperm.slane %v256, 0
    %v260 = vadd.f32 %v253, %v258
    %v261 = vadd.f32 %v254, %v258
    %v262 = vadd.f32 %v255, %v258
    %v263 = vmax.f32 %v260, 0.0
    %v264 = vmax.f32 %v261, 0.0
    %v265 = vmax.f32 %v262, 0.0
    %v266 = vpack.c.bf16 %v263, %v263
    %v267 = vpack.c.bf16 %v264, %v264
    %v268 = vpack.c.bf16 %v265, %v265
    %269 = vst [vmem:[%s5] sm:$0xf] %v266
    %270 = vst [vmem:[%s5 + $0x4] sm:$0xf] %v267
    %271 = vst [vmem:[%s5 + $0x8] sm:$0x1] %v268
    // Predicated region
    $region34: #{_lambda_.4} parent=1 // pred_check
      _
    $region35: #{_lambda_.4} parent=1 // pred_check_branch
      %273 = sbr.rel (0) target = $region37
    $region36: #{_lambda_.4} parent=1 // pred_region
      _
    $region37: #{_lambda_.4} parent=1 // pred_fallthru
      _
    // Predicated region
    $region38: #{_lambda_.4} parent=1 // pred_check
      _
    $region39: #{_lambda_.4} parent=1 // pred_check_branch
      %275 = sbr.rel (0) target = $region41
    $region40: #{_lambda_.4} parent=1 // pred_region
      _
    $region41: #{_lambda_.4} parent=1 // pred_fallthru
      _
    %276 = vsyncpa [#allocation3], 1
    %277 = vsyncpa [#allocation5], 1

// kernel: _lambda_.5
$region0: #{_lambda_.5}
  #allocation0 [shape = 'u32[]', space=smem, size = 0x4, offset = 0x4, fixed_abs, tag = 'smem constant byte address 0x4 - core index']
  #allocation1 [shape = 'u32[72,128]{1,0:T(1,128)}', space=vmem, size = 0x9000, scoped, tag = 'internal scratch']
  %s0 = inlined_call_operand.vmem [shape: bf16[72,512], index: 0, kind: input, shape index: {}]
  %s1 = inlined_call_operand.hbm [shape: bf16[512,128], index: 1, kind: input, shape index: {}]
  %s2 = inlined_call_operand.hbm [shape: f32[1,128], index: 2, kind: input, shape index: {}]
  %s3 = inlined_call_operand.hbm [shape: f32[1,128], index: 3, kind: input, shape index: {}]
  %s4 = inlined_call_operand.vmem [shape: f32[1,128], index: 4, kind: input, shape index: {}]
  %s5 = inlined_call_operand.vmem [shape: bf16[72,128], index: 5, kind: output, shape index: {}]
  %s6 = sld [smem:[#allocation0]]
  $region42: #{_lambda_.5} parent=0
    _
  %s8 = ssub.s32 1, %s6
  %s9 = scalar_select 0, %s8, %s6
  $region1: #{_lambda_.5} parent=0
    #allocation2 [shape = 'u8[131072]{0}', space=vmem, size = 0x20000, scoped, tag = 'input window, operand 1, single buffered']
    #allocation3 [shape = 's32[1]{0}', space=sflag, size = 0x4, scoped, tag = 'scoped memory for _lambda_.5']
    #allocation4 [shape = 'u8[512]{0}', space=vmem, size = 0x400, scoped, tag = 'input window, operand 2, single buffered']
    #allocation5 [shape = 's32[1]{0}', space=sflag, size = 0x4, scoped, tag = 'scoped memory for _lambda_.5']
    #allocation6 [shape = 'u8[512]{0}', space=vmem, size = 0x400, scoped, tag = 'input window, operand 3, single buffered']
    %10 = vsyncpa [#allocation3], 0
    %11 = vsyncpa [#allocation5], 0
    // Predicated region
    $region2: #{_lambda_.5} parent=1 // pred_check
      _
    $region3: #{_lambda_.5} parent=1 // pred_check_branch
      %13 = sbr.rel (0) target = $region5
    $region4: #{_lambda_.5} parent=1 // pred_region
      _
    $region5: #{_lambda_.5} parent=1 // pred_fallthru
      _
    // Predicated region
    $region6: #{_lambda_.5} parent=1 // pred_check
      _
    $region7: #{_lambda_.5} parent=1 // pred_check_branch
      %15 = sbr.rel (0) target = $region9
    $region8: #{_lambda_.5} parent=1 // pred_region
      %17 = vsyncadd [#allocation3], 0
      %s18 = sshll.u32 %s1, 4
      %s19 = int_to_ptr.hbm [resolvable:$true] %s18
      %s20 = sshll.u32 [#allocation2], 4
      %s21 = int_to_ptr.vmem [resolvable:$true] %s20
      %26 = dma.hbm_to_vmem [thread:$0]  %s19, 4096, %s21, [#allocation3], 64, 64, 4
    $region9: #{_lambda_.5} parent=1 // pred_fallthru
      _
    // Predicated region
    $region10: #{_lambda_.5} parent=1 // pred_check
      _
    $region11: #{_lambda_.5} parent=1 // pred_check_branch
      %28 = sbr.rel (0) target = $region13
    $region12: #{_lambda_.5} parent=1 // pred_region
      %30 = vsyncadd [#allocation5], 0
      %s32 = sshll.u32 %s2, 4
      %s33 = int_to_ptr.hbm [resolvable:$true] %s32
      %s34 = sshll.u32 [#allocation4], 4
      %s35 = int_to_ptr.vmem [resolvable:$true] %s34
      %37 = dma.hbm_to_vmem [thread:$0]  %s33, 16, %s35, [#allocation5]
    $region13: #{_lambda_.5} parent=1 // pred_fallthru
      _
    // Predicated region
    $region14: #{_lambda_.5} parent=1 // pred_check
      _
    $region15: #{_lambda_.5} parent=1 // pred_check_branch
      %39 = sbr.rel (0) target = $region17
    $region16: #{_lambda_.5} parent=1 // pred_region
      %41 = vsyncadd [#allocation5], 0
      %s43 = sshll.u32 %s3, 4
      %s44 = int_to_ptr.hbm [resolvable:$true] %s43
      %s45 = sshll.u32 [#allocation6], 4
      %s46 = int_to_ptr.vmem [resolvable:$true] %s45
      %48 = dma.hbm_to_vmem [thread:$0]  %s44, 16, %s46, [#allocation5]
    $region17: #{_lambda_.5} parent=1 // pred_fallthru
      _
    // Predicated region
    $region18: #{_lambda_.5} parent=1 // pred_check
      _
    $region19: #{_lambda_.5} parent=1 // pred_check_branch
      %50 = sbr.rel (0) target = $region21
    $region20: #{_lambda_.5} parent=1 // pred_region
      _
    $region21: #{_lambda_.5} parent=1 // pred_fallthru
      _
    // Predicated region
    $region22: #{_lambda_.5} parent=1 // pred_check
      _
    $region23: #{_lambda_.5} parent=1 // pred_check_branch
      %52 = sbr.rel (0) target = $region25
    $region24: #{_lambda_.5} parent=1 // pred_region
      %54 = dma.done [#allocation3], 4096
    $region25: #{_lambda_.5} parent=1 // pred_fallthru
      _
    // Predicated region
    $region26: #{_lambda_.5} parent=1 // pred_check
      _
    $region27: #{_lambda_.5} parent=1 // pred_check_branch
      %56 = sbr.rel (0) target = $region29
    $region28: #{_lambda_.5} parent=1 // pred_region
      %58 = dma.done [#allocation5], 16
    $region29: #{_lambda_.5} parent=1 // pred_fallthru
      _
    // Predicated region
    $region30: #{_lambda_.5} parent=1 // pred_check
      _
    $region31: #{_lambda_.5} parent=1 // pred_check_branch
      %60 = sbr.rel (0) target = $region33
    $region32: #{_lambda_.5} parent=1 // pred_region
      %62 = dma.done [#allocation5], 16
    $region33: #{_lambda_.5} parent=1 // pred_fallthru
      _
    %v63 = vld [vmem:[%s0] sm:$0xff]
    %v64 = vld [vmem:[%s0 + $0x8] sm:$0xff]
    %v65 = vld [vmem:[%s0 + $0x10] sm:$0xff]
    %v66 = vld [vmem:[%s0 + $0x18] sm:$0xff]
    %v67 = vld [vmem:[%s0 + $0x20] sm:$0xff]
    %v68 = vld [vmem:[%s0 + $0x28] sm:$0xff]
    %v69 = vld [vmem:[%s0 + $0x30] sm:$0xff]
    %v70 = vld [vmem:[%s0 + $0x38] sm:$0xff]
    %v71 = vld [vmem:[%s0 + $0x40] sm:$0xff]
    %v72 = vld [vmem:[%s0 + $0x48] sm:$0xff]
    %v73 = vld [vmem:[%s0 + $0x50] sm:$0xff]
    %v74 = vld [vmem:[%s0 + $0x58] sm:$0xff]
    %v75 = vld [vmem:[%s0 + $0x60] sm:$0xff]
    %v76 = vld [vmem:[%s0 + $0x68] sm:$0xff]
    %v77 = vld [vmem:[%s0 + $0x70] sm:$0xff]
    %v78 = vld [vmem:[%s0 + $0x78] sm:$0xff]
    %v79 = vld [vmem:[%s0 + $0x80] sm:$0xff]
    %v80 = vld [vmem:[%s0 + $0x88] sm:$0xff]
    %v81 = vld [vmem:[#allocation2] sm:$0xf]
    %v82 = vld [vmem:[#allocation2 + $0x4] sm:$0xf]
    %v83 = vld [vmem:[#allocation2 + $0x8] sm:$0xf]
    %v84 = vld [vmem:[#allocation2 + $0xc] sm:$0xf]
    %v85 = vld [vmem:[#allocation2 + $0x10] sm:$0xf]
    %v86 = vld [vmem:[#allocation2 + $0x14] sm:$0xf]
    %v87 = vld [vmem:[#allocation2 + $0x18] sm:$0xf]
    %v88 = vld [vmem:[#allocation2 + $0x1c] sm:$0xf]
    %v89 = vld [vmem:[#allocation2 + $0x20] sm:$0xf]
    %v90 = vld [vmem:[#allocation2 + $0x24] sm:$0xf]
    %v91 = vld [vmem:[#allocation2 + $0x28] sm:$0xf]
    %v92 = vld [vmem:[#allocation2 + $0x2c] sm:$0xf]
    %v93 = vld [vmem:[#allocation2 + $0x30] sm:$0xf]
    %v94 = vld [vmem:[#allocation2 + $0x34] sm:$0xf]
    %v95 = vld [vmem:[#allocation2 + $0x38] sm:$0xf]
    %v96 = vld [vmem:[#allocation2 + $0x3c] sm:$0xf]
    %v97 = vld [vmem:[#allocation2 + $0x40] sm:$0xf]
    %v98 = vld [vmem:[#allocation2 + $0x44] sm:$0xf]
    %v99 = vld [vmem:[#allocation2 + $0x48] sm:$0xf]
    %v100 = vld [vmem:[#allocation2 + $0x4c] sm:$0xf]
    %v101 = vld [vmem:[#allocation2 + $0x50] sm:$0xf]
    %v102 = vld [vmem:[#allocation2 + $0x54] sm:$0xf]
    %v103 = vld [vmem:[#allocation2 + $0x58] sm:$0xf]
    %v104 = vld [vmem:[#allocation2 + $0x5c] sm:$0xf]
    %v105 = vld [vmem:[#allocation2 + $0x60] sm:$0xf]
    %v106 = vld [vmem:[#allocation2 + $0x64] sm:$0xf]
    %v107 = vld [vmem:[#allocation2 + $0x68] sm:$0xf]
    %v108 = vld [vmem:[#allocation2 + $0x6c] sm:$0xf]
    %v109 = vld [vmem:[#allocation2 + $0x70] sm:$0xf]
    %v110 = vld [vmem:[#allocation2 + $0x74] sm:$0xf]
    %v111 = vld [vmem:[#allocation2 + $0x78] sm:$0xf]
    %v112 = vld [vmem:[#allocation2 + $0x7c] sm:$0xf]
    %v113 = vld [vmem:[#allocation2 + $0x80] sm:$0xf]
    %v114 = vld [vmem:[#allocation2 + $0x84] sm:$0xf]
    %v115 = vld [vmem:[#allocation2 + $0x88] sm:$0xf]
    %v116 = vld [vmem:[#allocation2 + $0x8c] sm:$0xf]
    %v117 = vld [vmem:[#allocation2 + $0x90] sm:$0xf]
    %v118 = vld [vmem:[#allocation2 + $0x94] sm:$0xf]
    %v119 = vld [vmem:[#allocation2 + $0x98] sm:$0xf]
    %v120 = vld [vmem:[#allocation2 + $0x9c] sm:$0xf]
    %v121 = vld [vmem:[#allocation2 + $0xa0] sm:$0xf]
    %v122 = vld [vmem:[#allocation2 + $0xa4] sm:$0xf]
    %v123 = vld [vmem:[#allocation2 + $0xa8] sm:$0xf]
    %v124 = vld [vmem:[#allocation2 + $0xac] sm:$0xf]
    %v125 = vld [vmem:[#allocation2 + $0xb0] sm:$0xf]
    %v126 = vld [vmem:[#allocation2 + $0xb4] sm:$0xf]
    %v127 = vld [vmem:[#allocation2 + $0xb8] sm:$0xf]
    %v128 = vld [vmem:[#allocation2 + $0xbc] sm:$0xf]
    %v129 = vld [vmem:[#allocation2 + $0xc0] sm:$0xf]
    %v130 = vld [vmem:[#allocation2 + $0xc4] sm:$0xf]
    %v131 = vld [vmem:[#allocation2 + $0xc8] sm:$0xf]
    %v132 = vld [vmem:[#allocation2 + $0xcc] sm:$0xf]
    %v133 = vld [vmem:[#allocation2 + $0xd0] sm:$0xf]
    %v134 = vld [vmem:[#allocation2 + $0xd4] sm:$0xf]
    %v135 = vld [vmem:[#allocation2 + $0xd8] sm:$0xf]
    %v136 = vld [vmem:[#allocation2 + $0xdc] sm:$0xf]
    %v137 = vld [vmem:[#allocation2 + $0xe0] sm:$0xf]
    %v138 = vld [vmem:[#allocation2 + $0xe4] sm:$0xf]
    %v139 = vld [vmem:[#allocation2 + $0xe8] sm:$0xf]
    %v140 = vld [vmem:[#allocation2 + $0xec] sm:$0xf]
    %v141 = vld [vmem:[#allocation2 + $0xf0] sm:$0xf]
    %v142 = vld [vmem:[#allocation2 + $0xf4] sm:$0xf]
    %v143 = vld [vmem:[#allocation2 + $0xf8] sm:$0xf]
    %v144 = vld [vmem:[#allocation2 + $0xfc] sm:$0xf]
    %v145 = vld [vmem:[#allocation4] sm:$0x1]
    %v147 = vperm.slane %v145, 0
    %v167 = vunpack.c.l.b16 %v63
    %v168 = vunpack.c.h.b16 %v63
    %v169 = vunpack.c.l.b16 %v64
    %v170 = vunpack.c.h.b16 %v64
    %v171 = vunpack.c.l.b16 %v65
    %v172 = vunpack.c.h.b16 %v65
    %v173 = vunpack.c.l.b16 %v66
    %v174 = vunpack.c.h.b16 %v66
    %v175 = vunpack.c.l.b16 %v67
    %v176 = vunpack.c.h.b16 %v67
    %v177 = vunpack.c.l.b16 %v68
    %v178 = vunpack.c.h.b16 %v68
    %v179 = vunpack.c.l.b16 %v69
    %v180 = vunpack.c.h.b16 %v69
    %v181 = vunpack.c.l.b16 %v70
    %v182 = vunpack.c.h.b16 %v70
    %v183 = vunpack.c.l.b16 %v71
    %v184 = vunpack.c.h.b16 %v71
    %v185 = vunpack.c.l.b16 %v72
    %v186 = vunpack.c.h.b16 %v72
    %v187 = vunpack.c.l.b16 %v73
    %v188 = vunpack.c.h.b16 %v73
    %v189 = vunpack.c.l.b16 %v74
    %v190 = vunpack.c.h.b16 %v74
    %v191 = vunpack.c.l.b16 %v75
    %v192 = vunpack.c.h.b16 %v75
    %v193 = vunpack.c.l.b16 %v76
    %v194 = vunpack.c.h.b16 %v76
    %v195 = vunpack.c.l.b16 %v77
    %v196 = vunpack.c.h.b16 %v77
    %v197 = vunpack.c.l.b16 %v78
    %v198 = vunpack.c.h.b16 %v78
    %v199 = vunpack.c.l.b16 %v79
    %v200 = vunpack.c.h.b16 %v79
    %v201 = vunpack.c.l.b16 %v80
    %v202 = vunpack.c.h.b16 %v80
    %v203 = vpack.c.b16 %v171, %v167
    %v204 = vpack.c.b16 %v172, %v168
    %v205 = vpack.c.b16 %v173, %v169
    %v206 = vpack.c.b16 %v174, %v170
    %v207 = vpack.c.b16 %v179, %v175
    %v208 = vpack.c.b16 %v180, %v176
    %v209 = vpack.c.b16 %v181, %v177
    %v210 = vpack.c.b16 %v182, %v178
    %v211 = vpack.c.b16 %v187, %v183
    %v212 = vpack.c.b16 %v188, %v184
    %v213 = vpack.c.b16 %v189, %v185
    %v214 = vpack.c.b16 %v190, %v186
    %v215 = vpack.c.b16 %v195, %v191
    %v216 = vpack.c.b16 %v196, %v192
    %v217 = vpack.c.b16 %v197, %v193
    %v218 = vpack.c.b16 %v198, %v194
    %v219 = vpack.c.b16 %v199, %v199
    %v220 = vpack.c.b16 %v200, %v200
    %v221 = vpack.c.b16 %v201, %v201
    %v222 = vpack.c.b16 %v202, %v202
    %v307 = vunpack.c.l.b16 %v81
    %v308 = vunpack.c.l.b16 %v82
    %v309 = vunpack.c.l.b16 %v83
    %v310 = vunpack.c.l.b16 %v84
    %v311 = vunpack.c.l.b16 %v85
    %v312 = vunpack.c.l.b16 %v86
    %v313 = vunpack.c.l.b16 %v87
    %v314 = vunpack.c.l.b16 %v88
    %v315 = vunpack.c.l.b16 %v89
    %v316 = vunpack.c.l.b16 %v90
    %v317 = vunpack.c.l.b16 %v91
    %v318 = vunpack.c.l.b16 %v92
    %v319 = vunpack.c.l.b16 %v93
    %v320 = vunpack.c.l.b16 %v94
    %v321 = vunpack.c.l.b16 %v95
    %v322 = vunpack.c.l.b16 %v96
    %v323 = vunpack.c.l.b16 %v97
    %v324 = vunpack.c.l.b16 %v98
    %v325 = vunpack.c.l.b16 %v99
    %v326 = vunpack.c.l.b16 %v100
    %v327 = vunpack.c.l.b16 %v101
    %v328 = vunpack.c.l.b16 %v102
    %v329 = vunpack.c.l.b16 %v103
    %v330 = vunpack.c.l.b16 %v104
    %v331 = vunpack.c.l.b16 %v105
    %v332 = vunpack.c.l.b16 %v106
    %v333 = vunpack.c.l.b16 %v107
    %v334 = vunpack.c.l.b16 %v108
    %v335 = vunpack.c.l.b16 %v109
    %v336 = vunpack.c.l.b16 %v110
    %v337 = vunpack.c.l.b16 %v111
    %v338 = vunpack.c.l.b16 %v112
    %v339 = vunpack.c.l.b16 %v113
    %v340 = vunpack.c.l.b16 %v114
    %v341 = vunpack.c.l.b16 %v115
    %v342 = vunpack.c.l.b16 %v116
    %v343 = vunpack.c.l.b16 %v117
    %v344 = vunpack.c.l.b16 %v118
    %v345 = vunpack.c.l.b16 %v119
    %v346 = vunpack.c.l.b16 %v120
    %v347 = vunpack.c.l.b16 %v121
    %v348 = vunpack.c.l.b16 %v122
    %v349 = vunpack.c.l.b16 %v123
    %v350 = vunpack.c.l.b16 %v124
    %v351 = vunpack.c.l.b16 %v125
    %v352 = vunpack.c.l.b16 %v126
    %v353 = vunpack.c.l.b16 %v127
    %v354 = vunpack.c.l.b16 %v128
    %v355 = vunpack.c.l.b16 %v129
    %v356 = vunpack.c.l.b16 %v130
    %v357 = vunpack.c.l.b16 %v131
    %v358 = vunpack.c.l.b16 %v132
    %v359 = vunpack.c.l.b16 %v133
    %v360 = vunpack.c.l.b16 %v134
    %v361 = vunpack.c.l.b16 %v135
    %v362 = vunpack.c.l.b16 %v136
    %v363 = vunpack.c.l.b16 %v137
    %v364 = vunpack.c.l.b16 %v138
    %v365 = vunpack.c.l.b16 %v139
    %v366 = vunpack.c.l.b16 %v140
    %v367 = vunpack.c.l.b16 %v141
    %v368 = vunpack.c.l.b16 %v142
    %v369 = vunpack.c.l.b16 %v143
    %v370 = vunpack.c.l.b16 %v144
    %v371 = vpack.c.b16 %v308, %v307
    %v372 = vpack.c.b16 %v310, %v309
    %v373 = vpack.c.b16 %v312, %v311
    %v374 = vpack.c.b16 %v314, %v313
    %v375 = vpack.c.b16 %v316, %v315
    %v376 = vpack.c.b16 %v318, %v317
    %v377 = vpack.c.b16 %v320, %v319
    %v378 = vpack.c.b16 %v322, %v321
    %v379 = vpack.c.b16 %v324, %v323
    %v380 = vpack.c.b16 %v326, %v325
    %v381 = vpack.c.b16 %v328, %v327
    %v382 = vpack.c.b16 %v330, %v329
    %v383 = vpack.c.b16 %v332, %v331
    %v384 = vpack.c.b16 %v334, %v333
    %v385 = vpack.c.b16 %v336, %v335
    %v386 = vpack.c.b16 %v338, %v337
    %v387 = vpack.c.b16 %v340, %v339
    %v388 = vpack.c.b16 %v342, %v341
    %v389 = vpack.c.b16 %v344, %v343
    %v390 = vpack.c.b16 %v346, %v345
    %v391 = vpack.c.b16 %v348, %v347
    %v392 = vpack.c.b16 %v350, %v349
    %v393 = vpack.c.b16 %v352, %v351
    %v394 = vpack.c.b16 %v354, %v353
    %v395 = vpack.c.b16 %v356, %v355
    %v396 = vpack.c.b16 %v358, %v357
    %v397 = vpack.c.b16 %v360, %v359
    %v398 = vpack.c.b16 %v362, %v361
    %v399 = vpack.c.b16 %v364, %v363
    %v400 = vpack.c.b16 %v366, %v365
    %v401 = vpack.c.b16 %v368, %v367
    %v402 = vpack.c.b16 %v370, %v369
    %435 = vmatpush.bf16.msra.mxu0 %v378
    %436 = vmatpush.bf16.msra.mxu0 %v377
    %437 = vmatpush.bf16.msra.mxu0 %v376
    %438 = vmatpush.bf16.msra.mxu0 %v375
    %439 = vmatpush.bf16.msra.mxu0 %v374
    %440 = vmatpush.bf16.msra.mxu0 %v373
    %441 = vmatpush.bf16.msra.mxu0 %v372
    %442 = vmatpush.bf16.msra.mxu0 %v371
    %443 = vmatmul.bf16.gmra.mxu0 %v203
    %v444 = vpop.f32.mrf.mxu0
    %v445 = vadd.f32 %v147, %v444
    %v446 = vpop.f32.mrf.mxu0
    %v447 = vadd.f32 %v147, %v446
    %448 = vmatmul.bf16.gmra.mxu0 %v207
    %v449 = vpop.f32.mrf.mxu0
    %v450 = vadd.f32 %v147, %v449
    %v451 = vpop.f32.mrf.mxu0
    %v452 = vadd.f32 %v147, %v451
    %453 = vmatmul.bf16.gmra.mxu0 %v211
    %v454 = vpop.f32.mrf.mxu0
    %v455 = vadd.f32 %v147, %v454
    %v456 = vpop.f32.mrf.mxu0
    %v457 = vadd.f32 %v147, %v456
    %458 = vmatmul.bf16.gmra.mxu0 %v215
    %v459 = vpop.f32.mrf.mxu0
    %v460 = vadd.f32 %v147, %v459
    %v461 = vpop.f32.mrf.mxu0
    %v462 = vadd.f32 %v147, %v461
    %463 = vmatmul.bf16.gmra.mxu0 %v219
    %v464 = vpop.f32.mrf.mxu0
    %v465 = vadd.f32 %v147, %v464
    %v466 = vpop.f32.mrf.mxu0
    %467 = vdwg.mxu0
    %468 = vmatpush.bf16.msra.mxu0 %v386
    %469 = vmatpush.bf16.msra.mxu0 %v385
    %470 = vmatpush.bf16.msra.mxu0 %v384
    %471 = vmatpush.bf16.msra.mxu0 %v383
    %472 = vmatpush.bf16.msra.mxu0 %v382
    %473 = vmatpush.bf16.msra.mxu0 %v381
    %474 = vmatpush.bf16.msra.mxu0 %v380
    %475 = vmatpush.bf16.msra.mxu0 %v379
    %476 = vmatmul.bf16.gmra.mxu0 %v204
    %v477 = vpop.f32.mrf.mxu0
    %v478 = vadd.f32 %v445, %v477
    %v479 = vpop.f32.mrf.mxu0
    %v480 = vadd.f32 %v447, %v479
    %481 = vmatmul.bf16.gmra.mxu0 %v208
    %v482 = vpop.f32.mrf.mxu0
    %v483 = vadd.f32 %v450, %v482
    %v484 = vpop.f32.mrf.mxu0
    %v485 = vadd.f32 %v452, %v484
    %486 = vmatmul.bf16.gmra.mxu0 %v212
    %v487 = vpop.f32.mrf.mxu0
    %v488 = vadd.f32 %v455, %v487
    %v489 = vpop.f32.mrf.mxu0
    %v490 = vadd.f32 %v457, %v489
    %491 = vmatmul.bf16.gmra.mxu0 %v216
    %v492 = vpop.f32.mrf.mxu0
    %v493 = vadd.f32 %v460, %v492
    %v494 = vpop.f32.mrf.mxu0
    %v495 = vadd.f32 %v462, %v494
    %496 = vmatmul.bf16.gmra.mxu0 %v220
    %v497 = vpop.f32.mrf.mxu0
    %v498 = vadd.f32 %v465, %v497
    %v499 = vpop.f32.mrf.mxu0
    %500 = vdwg.mxu0
    %501 = vmatpush.bf16.msra.mxu0 %v394
    %502 = vmatpush.bf16.msra.mxu0 %v393
    %503 = vmatpush.bf16.msra.mxu0 %v392
    %504 = vmatpush.bf16.msra.mxu0 %v391
    %505 = vmatpush.bf16.msra.mxu0 %v390
    %506 = vmatpush.bf16.msra.mxu0 %v389
    %507 = vmatpush.bf16.msra.mxu0 %v388
    %508 = vmatpush.bf16.msra.mxu0 %v387
    %509 = vmatmul.bf16.gmra.mxu0 %v205
    %v510 = vpop.f32.mrf.mxu0
    %v511 = vadd.f32 %v478, %v510
    %v512 = vpop.f32.mrf.mxu0
    %v513 = vadd.f32 %v480, %v512
    %514 = vmatmul.bf16.gmra.mxu0 %v209
    %v515 = vpop.f32.mrf.mxu0
    %v516 = vadd.f32 %v483, %v515
    %v517 = vpop.f32.mrf.mxu0
    %v518 = vadd.f32 %v485, %v517
    %519 = vmatmul.bf16.gmra.mxu0 %v213
    %v520 = vpop.f32.mrf.mxu0
    %v521 = vadd.f32 %v488, %v520
    %v522 = vpop.f32.mrf.mxu0
    %v523 = vadd.f32 %v490, %v522
    %524 = vmatmul.bf16.gmra.mxu0 %v217
    %v525 = vpop.f32.mrf.mxu0
    %v526 = vadd.f32 %v493, %v525
    %v527 = vpop.f32.mrf.mxu0
    %v528 = vadd.f32 %v495, %v527
    %529 = vmatmul.bf16.gmra.mxu0 %v221
    %v530 = vpop.f32.mrf.mxu0
    %v531 = vadd.f32 %v498, %v530
    %v532 = vpop.f32.mrf.mxu0
    %533 = vdwg.mxu0
    %534 = vmatpush.bf16.msra.mxu0 %v402
    %535 = vmatpush.bf16.msra.mxu0 %v401
    %536 = vmatpush.bf16.msra.mxu0 %v400
    %537 = vmatpush.bf16.msra.mxu0 %v399
    %538 = vmatpush.bf16.msra.mxu0 %v398
    %539 = vmatpush.bf16.msra.mxu0 %v397
    %540 = vmatpush.bf16.msra.mxu0 %v396
    %541 = vmatpush.bf16.msra.mxu0 %v395
    %542 = vmatmul.bf16.gmra.mxu0 %v206
    %v543 = vpop.f32.mrf.mxu0
    %v544 = vadd.f32 %v511, %v543
    %v545 = vpop.f32.mrf.mxu0
    %v546 = vadd.f32 %v513, %v545
    %547 = vmatmul.bf16.gmra.mxu0 %v210
    %v548 = vpop.f32.mrf.mxu0
    %v549 = vadd.f32 %v516, %v548
    %v550 = vpop.f32.mrf.mxu0
    %v551 = vadd.f32 %v518, %v550
    %552 = vmatmul.bf16.gmra.mxu0 %v214
    %v553 = vpop.f32.mrf.mxu0
    %v554 = vadd.f32 %v521, %v553
    %v555 = vpop.f32.mrf.mxu0
    %v556 = vadd.f32 %v523, %v555
    %557 = vmatmul.bf16.gmra.mxu0 %v218
    %v558 = vpop.f32.mrf.mxu0
    %v559 = vadd.f32 %v526, %v558
    %v560 = vpop.f32.mrf.mxu0
    %v561 = vadd.f32 %v528, %v560
    %562 = vmatmul.bf16.gmra.mxu0 %v222
    %v563 = vpop.f32.mrf.mxu0
    %v564 = vadd.f32 %v531, %v563
    %v565 = vpop.f32.mrf.mxu0
    %566 = vdwg.mxu0
    %v567 = vadd.f32 %v544, %v546
    %v568 = vadd.f32 %v567, %v549
    %v569 = vadd.f32 %v568, %v551
    %v570 = vadd.f32 %v569, %v554
    %v571 = vadd.f32 %v570, %v556
    %v572 = vadd.f32 %v571, %v559
    %v573 = vadd.f32 %v572, %v561
    %v574 = vadd.f32 %v573, %v564
    %v575 = vrot.slane %v574, 4
    %v576 = vadd.f32 %v574, %v575
    %v577 = vrot.slane %v576, 2
    %v578 = vadd.f32 %v576, %v577
    %v579 = vrot.slane %v578, 1
    %v580 = vadd.f32 %v578, %v579
    %v581 = vrcp.pop 72.0
    %v582 = vmul.f32 72.0, %v581
    %v583 = vsub.f32 1.0, %v582
    %v584 = vmul.f32 %v581, %v583
    %v585 = vadd.f32 %v581, %v584
    %vm586 = vweird.f32 %v581
    %v587 = vsel %vm586, %v581, %v585
    %v588 = vmul.f32 %v580, %v587
    %v589 = vsub.f32 %v544, %v588
    %v590 = vsub.f32 %v546, %v588
    %v591 = vsub.f32 %v549, %v588
    %v592 = vsub.f32 %v551, %v588
    %v593 = vsub.f32 %v554, %v588
    %v594 = vsub.f32 %v556, %v588
    %v595 = vsub.f32 %v559, %v588
    %v596 = vsub.f32 %v561, %v588
    %v597 = vsub.f32 %v564, %v588
    %v598 = vmul.f32 %v589, %v589
    %v599 = vmul.f32 %v590, %v590
    %v600 = vmul.f32 %v591, %v591
    %v601 = vmul.f32 %v592, %v592
    %v602 = vmul.f32 %v593, %v593
    %v603 = vmul.f32 %v594, %v594
    %v604 = vmul.f32 %v595, %v595
    %v605 = vmul.f32 %v596, %v596
    %v606 = vmul.f32 %v597, %v597
    %v607 = vadd.f32 %v598, %v599
    %v608 = vadd.f32 %v607, %v600
    %v609 = vadd.f32 %v608, %v601
    %v610 = vadd.f32 %v609, %v602
    %v611 = vadd.f32 %v610, %v603
    %v612 = vadd.f32 %v611, %v604
    %v613 = vadd.f32 %v612, %v605
    %v614 = vadd.f32 %v613, %v606
    %v615 = vrot.slane %v614, 4
    %v616 = vadd.f32 %v614, %v615
    %v617 = vrot.slane %v616, 2
    %v618 = vadd.f32 %v616, %v617
    %v619 = vrot.slane %v618, 1
    %v620 = vadd.f32 %v618, %v619
    %v621 = vmul.f32 %v620, %v587
    %v622 = vadd.f32 %v621, 1e-05
    %v623 = vrsqrt.pop %v622
    %v624 = vmul.f32 %v623, %v622
    %v625 = vmul.f32 %v624, %v623
    %v626 = vmul.f32 0.5, %v625
    %v627 = vsub.f32 1.5, %v626
    %v628 = vmul.f32 %v623, %v627
    %vm629 = vweird.f32 %v622
    %vm630 = vweird.f32 %v623
    %vm631 = vmor %vm629, %vm630
    %v632 = vsel %vm631, %v623, %v628
    %v633 = vmul.f32 %v589, %v632
    %v634 = vmul.f32 %v590, %v632
    %v635 = vmul.f32 %v591, %v632
    %v636 = vmul.f32 %v592, %v632
    %v637 = vmul.f32 %v593, %v632
    %v638 = vmul.f32 %v594, %v632
    %v639 = vmul.f32 %v595, %v632
    %v640 = vmul.f32 %v596, %v632
    %v641 = vmul.f32 %v597, %v632
    %v642 = vld [vmem:[#allocation6] sm:$0x1]
    %v644 = vperm.slane %v642, 0
    %v646 = vmul.f32 %v633, %v644
    %v647 = vmul.f32 %v634, %v644
    %v648 = vmul.f32 %v635, %v644
    %v649 = vmul.f32 %v636, %v644
    %v650 = vmul.f32 %v637, %v644
    %v651 = vmul.f32 %v638, %v644
    %v652 = vmul.f32 %v639, %v644
    %v653 = vmul.f32 %v640, %v644
    %v654 = vmul.f32 %v641, %v644
    %v655 = vld [vmem:[%s4] sm:$0x1]
    %v657 = vperm.slane %v655, 0
    %v659 = vadd.f32 %v646, %v657
    %v660 = vadd.f32 %v647, %v657
    %v661 = vadd.f32 %v648, %v657
    %v662 = vadd.f32 %v649, %v657
    %v663 = vadd.f32 %v650, %v657
    %v664 = vadd.f32 %v651, %v657
    %v665 = vadd.f32 %v652, %v657
    %v666 = vadd.f32 %v653, %v657
    %v667 = vadd.f32 %v654, %v657
    %v668 = vmax.f32 %v659, 0.0
    %v669 = vmax.f32 %v660, 0.0
    %v670 = vmax.f32 %v661, 0.0
    %v671 = vmax.f32 %v662, 0.0
    %v672 = vmax.f32 %v663, 0.0
    %v673 = vmax.f32 %v664, 0.0
    %v674 = vmax.f32 %v665, 0.0
    %v675 = vmax.f32 %v666, 0.0
    %v676 = vmax.f32 %v667, 0.0
    %v677 = vpack.c.bf16 %v668, %v668
    %v678 = vpack.c.bf16 %v669, %v669
    %v679 = vpack.c.bf16 %v670, %v670
    %v680 = vpack.c.bf16 %v671, %v671
    %v681 = vpack.c.bf16 %v672, %v672
    %v682 = vpack.c.bf16 %v673, %v673
    %v683 = vpack.c.bf16 %v674, %v674
    %v684 = vpack.c.bf16 %v675, %v675
    %v685 = vpack.c.bf16 %v676, %v676
    %686 = vst [vmem:[%s5] sm:$0xf] %v677
    %687 = vst [vmem:[%s5 + $0x4] sm:$0xf] %v678
    %688 = vst [vmem:[%s5 + $0x8] sm:$0xf] %v679
    %689 = vst [vmem:[%s5 + $0xc] sm:$0xf] %v680
    %690 = vst [vmem:[%s5 + $0x10] sm:$0xf] %v681
    %691 = vst [vmem:[%s5 + $0x14] sm:$0xf] %v682
    %692 = vst [vmem:[%s5 + $0x18] sm:$0xf] %v683
    %693 = vst [vmem:[%s5 + $0x1c] sm:$0xf] %v684
    %694 = vst [vmem:[%s5 + $0x20] sm:$0xf] %v685
    // Predicated region
    $region34: #{_lambda_.5} parent=1 // pred_check
      _
    $region35: #{_lambda_.5} parent=1 // pred_check_branch
      %696 = sbr.rel (0) target = $region37
    $region36: #{_lambda_.5} parent=1 // pred_region
      _
    $region37: #{_lambda_.5} parent=1 // pred_fallthru
      _
    // Predicated region
    $region38: #{_lambda_.5} parent=1 // pred_check
      _
    $region39: #{_lambda_.5} parent=1 // pred_check_branch
      %698 = sbr.rel (0) target = $region41
    $region40: #{_lambda_.5} parent=1 // pred_region
      _
    $region41: #{_lambda_.5} parent=1 // pred_fallthru
      _
    %699 = vsyncpa [#allocation3], 1
    %700 = vsyncpa [#allocation5], 1

// kernel: _lambda_.6
$region0: #{_lambda_.6}
  #allocation0 [shape = 'u32[]', space=smem, size = 0x4, offset = 0x4, fixed_abs, tag = 'smem constant byte address 0x4 - core index']
  #allocation1 [shape = 'u32[72,128]{1,0:T(1,128)}', space=vmem, size = 0x9000, scoped, tag = 'internal scratch']
  %s0 = inlined_call_operand.vmem [shape: bf16[338,144], index: 0, kind: input, shape index: {}]
  %s1 = inlined_call_operand.vmem [shape: bf16[144,128], index: 1, kind: input, shape index: {}]
  %s2 = inlined_call_operand.vmem [shape: f32[1,128], index: 2, kind: input, shape index: {}]
  %s3 = inlined_call_operand.vmem [shape: f32[1,128], index: 3, kind: input, shape index: {}]
  %s4 = inlined_call_operand.vmem [shape: f32[1,128], index: 4, kind: input, shape index: {}]
  %s5 = inlined_call_operand.vmem [shape: bf16[338,128], index: 5, kind: output, shape index: {}]
  %s6 = sld [smem:[#allocation0]]
  $region30: #{_lambda_.6} parent=0
    _
  %s8 = ssub.s32 1, %s6
  %s9 = scalar_select 0, %s8, %s6
  // Predicated region
  $region2: #{_lambda_.6} parent=0 // pred_check
    _
  $region3: #{_lambda_.6} parent=0 // pred_check_branch
    %11 = sbr.rel (0) target = $region5
  $region4: #{_lambda_.6} parent=0 // pred_region
    _
  $region5: #{_lambda_.6} parent=0 // pred_fallthru
    _
  // Predicated region
  $region6: #{_lambda_.6} parent=0 // pred_check
    _
  $region7: #{_lambda_.6} parent=0 // pred_check_branch
    %13 = sbr.rel (0) target = $region9
  $region8: #{_lambda_.6} parent=0 // pred_region
    _
  $region9: #{_lambda_.6} parent=0 // pred_fallthru
    _
  // Predicated region
  $region10: #{_lambda_.6} parent=0 // pred_check
    _
  $region11: #{_lambda_.6} parent=0 // pred_check_branch
    %15 = sbr.rel (0) target = $region13
  $region12: #{_lambda_.6} parent=0 // pred_region
    _
  $region13: #{_lambda_.6} parent=0 // pred_fallthru
    _
  // Predicated region
  $region14: #{_lambda_.6} parent=0 // pred_check
    _
  $region15: #{_lambda_.6} parent=0 // pred_check_branch
    %17 = sbr.rel (0) target = $region17
  $region16: #{_lambda_.6} parent=0 // pred_region
    _
  $region17: #{_lambda_.6} parent=0 // pred_fallthru
    _
  // Predicated region
  $region18: #{_lambda_.6} parent=0 // pred_check
    _
  $region19: #{_lambda_.6} parent=0 // pred_check_branch
    %19 = sbr.rel (0) target = $region21
  $region20: #{_lambda_.6} parent=0 // pred_region
    _
  $region21: #{_lambda_.6} parent=0 // pred_fallthru
    _
  %v21 = vld [vmem:[%s0] sm:$0xff]
  %v22 = vld [vmem:[%s0 + $0x8] sm:$0xff]
  %v23 = vld [vmem:[%s0 + $0x10] sm:$0xff]
  %v24 = vld [vmem:[%s0 + $0x18] sm:$0xff]
  %v25 = vld [vmem:[%s0 + $0x20] sm:$0xff]
  %v26 = vld [vmem:[%s0 + $0x28] sm:$0xff]
  %v27 = vld [vmem:[%s0 + $0x30] sm:$0xff]
  %v28 = vld [vmem:[%s0 + $0x38] sm:$0xff]
  %v29 = vld [vmem:[%s0 + $0x40] sm:$0xff]
  %v30 = vld [vmem:[%s0 + $0x48] sm:$0xff]
  %v31 = vld [vmem:[%s0 + $0x50] sm:$0xff]
  %v32 = vld [vmem:[%s0 + $0x58] sm:$0xff]
  %v33 = vld [vmem:[%s0 + $0x60] sm:$0xff]
  %v34 = vld [vmem:[%s0 + $0x68] sm:$0xff]
  %v35 = vld [vmem:[%s0 + $0x70] sm:$0xff]
  %v36 = vld [vmem:[%s0 + $0x78] sm:$0xff]
  %v37 = vld [vmem:[%s0 + $0x80] sm:$0xff]
  %v38 = vld [vmem:[%s0 + $0x88] sm:$0xff]
  %v39 = vld [vmem:[%s0 + $0x90] sm:$0xff]
  %v40 = vld [vmem:[%s0 + $0x98] sm:$0xff]
  %v41 = vld [vmem:[%s0 + $0xa0] sm:$0xff]
  %v42 = vld [vmem:[%s0 + $0xa8] sm:$0xff]
  %v43 = vld [vmem:[%s0 + $0xb0] sm:$0xff]
  %v44 = vld [vmem:[%s0 + $0xb8] sm:$0xff]
  %v45 = vld [vmem:[%s0 + $0xc0] sm:$0xff]
  %v46 = vld [vmem:[%s0 + $0xc8] sm:$0xff]
  %v47 = vld [vmem:[%s0 + $0xd0] sm:$0xff]
  %v48 = vld [vmem:[%s0 + $0xd8] sm:$0xff]
  %v49 = vld [vmem:[%s0 + $0xe0] sm:$0xff]
  %v50 = vld [vmem:[%s0 + $0xe8] sm:$0xff]
  %v51 = vld [vmem:[%s0 + $0xf0] sm:$0xff]
  %v52 = vld [vmem:[%s0 + $0xf8] sm:$0xff]
  %v53 = vld [vmem:[%s0 + $0x100] sm:$0xff]
  %v54 = vld [vmem:[%s0 + $0x108] sm:$0xff]
  %v55 = vld [vmem:[%s0 + $0x110] sm:$0xff]
  %v56 = vld [vmem:[%s0 + $0x118] sm:$0xff]
  %v57 = vld [vmem:[%s0 + $0x120] sm:$0xff]
  %v58 = vld [vmem:[%s0 + $0x128] sm:$0xff]
  %v59 = vld [vmem:[%s0 + $0x130] sm:$0xff]
  %v60 = vld [vmem:[%s0 + $0x138] sm:$0xff]
  %v61 = vld [vmem:[%s0 + $0x140] sm:$0xff]
  %v62 = vld [vmem:[%s0 + $0x148] sm:$0xff]
  %v63 = vld [vmem:[%s0 + $0x150] sm:$0x11]
  %v64 = vld [vmem:[%s1] sm:$0xf]
  %v65 = vld [vmem:[%s1 + $0x4] sm:$0xf]
  %v66 = vld [vmem:[%s1 + $0x8] sm:$0xf]
  %v67 = vld [vmem:[%s1 + $0xc] sm:$0xf]
  %v68 = vld [vmem:[%s1 + $0x10] sm:$0xf]
  %v69 = vld [vmem:[%s1 + $0x14] sm:$0xf]
  %v70 = vld [vmem:[%s1 + $0x18] sm:$0xf]
  %v71 = vld [vmem:[%s1 + $0x1c] sm:$0xf]
  %v72 = vld [vmem:[%s1 + $0x20] sm:$0xf]
  %v73 = vld [vmem:[%s1 + $0x24] sm:$0xf]
  %v74 = vld [vmem:[%s1 + $0x28] sm:$0xf]
  %v75 = vld [vmem:[%s1 + $0x2c] sm:$0xf]
  %v76 = vld [vmem:[%s1 + $0x30] sm:$0xf]
  %v77 = vld [vmem:[%s1 + $0x34] sm:$0xf]
  %v78 = vld [vmem:[%s1 + $0x38] sm:$0xf]
  %v79 = vld [vmem:[%s1 + $0x3c] sm:$0xf]
  %v80 = vld [vmem:[%s1 + $0x40] sm:$0xf]
  %v81 = vld [vmem:[%s1 + $0x44] sm:$0xf]
  %v82 = vld [vmem:[%s2] sm:$0x1]
  %v84 = vperm.slane %v82, 0
  %v129 = vunpack.c.l.b16 %v21
  %v130 = vunpack.c.h.b16 %v21
  %v131 = vunpack.c.l.b16 %v22
  %v132 = vunpack.c.h.b16 %v22
  %v133 = vunpack.c.l.b16 %v23
  %v134 = vunpack.c.h.b16 %v23
  %v135 = vunpack.c.l.b16 %v24
  %v136 = vunpack.c.h.b16 %v24
  %v137 = vunpack.c.l.b16 %v25
  %v138 = vunpack.c.h.b16 %v25
  %v139 = vunpack.c.l.b16 %v26
  %v140 = vunpack.c.h.b16 %v26
  %v141 = vunpack.c.l.b16 %v27
  %v142 = vunpack.c.h.b16 %v27
  %v143 = vunpack.c.l.b16 %v28
  %v144 = vunpack.c.h.b16 %v28
  %v145 = vunpack.c.l.b16 %v29
  %v146 = vunpack.c.h.b16 %v29
  %v147 = vunpack.c.l.b16 %v30
  %v148 = vunpack.c.h.b16 %v30
  %v149 = vunpack.c.l.b16 %v31
  %v150 = vunpack.c.h.b16 %v31
  %v151 = vunpack.c.l.b16 %v32
  %v152 = vunpack.c.h.b16 %v32
  %v153 = vunpack.c.l.b16 %v33
  %v154 = vunpack.c.h.b16 %v33
  %v155 = vunpack.c.l.b16 %v34
  %v156 = vunpack.c.h.b16 %v34
  %v157 = vunpack.c.l.b16 %v35
  %v158 = vunpack.c.h.b16 %v35
  %v159 = vunpack.c.l.b16 %v36
  %v160 = vunpack.c.h.b16 %v36
  %v161 = vunpack.c.l.b16 %v37
  %v162 = vunpack.c.h.b16 %v37
  %v163 = vunpack.c.l.b16 %v38
  %v164 = vunpack.c.h.b16 %v38
  %v165 = vunpack.c.l.b16 %v39
  %v166 = vunpack.c.h.b16 %v39
  %v167 = vunpack.c.l.b16 %v40
  %v168 = vunpack.c.h.b16 %v40
  %v169 = vunpack.c.l.b16 %v41
  %v170 = vunpack.c.h.b16 %v41
  %v171 = vunpack.c.l.b16 %v42
  %v172 = vunpack.c.h.b16 %v42
  %v173 = vunpack.c.l.b16 %v43
  %v174 = vunpack.c.h.b16 %v43
  %v175 = vunpack.c.l.b16 %v44
  %v176 = vunpack.c.h.b16 %v44
  %v177 = vunpack.c.l.b16 %v45
  %v178 = vunpack.c.h.b16 %v45
  %v179 = vunpack.c.l.b16 %v46
  %v180 = vunpack.c.h.b16 %v46
  %v181 = vunpack.c.l.b16 %v47
  %v182 = vunpack.c.h.b16 %v47
  %v183 = vunpack.c.l.b16 %v48
  %v184 = vunpack.c.h.b16 %v48
  %v185 = vunpack.c.l.b16 %v49
  %v186 = vunpack.c.h.b16 %v49
  %v187 = vunpack.c.l.b16 %v50
  %v188 = vunpack.c.h.b16 %v50
  %v189 = vunpack.c.l.b16 %v51
  %v190 = vunpack.c.h.b16 %v51
  %v191 = vunpack.c.l.b16 %v52
  %v192 = vunpack.c.h.b16 %v52
  %v193 = vunpack.c.l.b16 %v53
  %v194 = vunpack.c.h.b16 %v53
  %v195 = vunpack.c.l.b16 %v54
  %v196 = vunpack.c.h.b16 %v54
  %v197 = vunpack.c.l.b16 %v55
  %v198 = vunpack.c.h.b16 %v55
  %v199 = vunpack.c.l.b16 %v56
  %v200 = vunpack.c.h.b16 %v56
  %v201 = vunpack.c.l.b16 %v57
  %v202 = vunpack.c.h.b16 %v57
  %v203 = vunpack.c.l.b16 %v58
  %v204 = vunpack.c.h.b16 %v58
  %v205 = vunpack.c.l.b16 %v59
  %v206 = vunpack.c.h.b16 %v59
  %v207 = vunpack.c.l.b16 %v60
  %v208 = vunpack.c.h.b16 %v60
  %v209 = vunpack.c.l.b16 %v61
  %v210 = vunpack.c.h.b16 %v61
  %v211 = vunpack.c.l.b16 %v62
  %v212 = vunpack.c.h.b16 %v62
  %v213 = vunpack.c.l.b16 %v63
  %v214 = vunpack.c.h.b16 %v63
  %v215 = vpack.c.b16 %v131, %v129
  %v216 = vpack.c.b16 %v132, %v130
  %v217 = vpack.c.b16 %v135, %v133
  %v218 = vpack.c.b16 %v136, %v134
  %v219 = vpack.c.b16 %v139, %v137
  %v220 = vpack.c.b16 %v140, %v138
  %v221 = vpack.c.b16 %v143, %v141
  %v222 = vpack.c.b16 %v144, %v142
  %v223 = vpack.c.b16 %v147, %v145
  %v224 = vpack.c.b16 %v148, %v146
  %v225 = vpack.c.b16 %v151, %v149
  %v226 = vpack.c.b16 %v152, %v150
  %v227 = vpack.c.b16 %v155, %v153
  %v228 = vpack.c.b16 %v156, %v154
  %v229 = vpack.c.b16 %v159, %v157
  %v230 = vpack.c.b16 %v160, %v158
  %v231 = vpack.c.b16 %v163, %v161
  %v232 = vpack.c.b16 %v164, %v162
  %v233 = vpack.c.b16 %v167, %v165
  %v234 = vpack.c.b16 %v168, %v166
  %v235 = vpack.c.b16 %v171, %v169
  %v236 = vpack.c.b16 %v172, %v170
  %v237 = vpack.c.b16 %v175, %v173
  %v238 = vpack.c.b16 %v176, %v174
  %v239 = vpack.c.b16 %v179, %v177
  %v240 = vpack.c.b16 %v180, %v178
  %v241 = vpack.c.b16 %v183, %v181
  %v242 = vpack.c.b16 %v184, %v182
  %v243 = vpack.c.b16 %v187, %v185
  %v244 = vpack.c.b16 %v188, %v186
  %v245 = vpack.c.b16 %v191, %v189
  %v246 = vpack.c.b16 %v192, %v190
  %v247 = vpack.c.b16 %v195, %v193
  %v248 = vpack.c.b16 %v196, %v194
  %v249 = vpack.c.b16 %v199, %v197
  %v250 = vpack.c.b16 %v200, %v198
  %v251 = vpack.c.b16 %v203, %v201
  %v252 = vpack.c.b16 %v204, %v202
  %v253 = vpack.c.b16 %v207, %v205
  %v254 = vpack.c.b16 %v208, %v206
  %v255 = vpack.c.b16 %v211, %v209
  %v256 = vpack.c.b16 %v212, %v210
  %v257 = vpack.c.b16 %v213, %v213
  %v258 = vpack.c.b16 %v214, %v214
  %v299 = vunpack.c.l.b16 %v64
  %v300 = vunpack.c.l.b16 %v65
  %v301 = vunpack.c.l.b16 %v66
  %v302 = vunpack.c.l.b16 %v67
  %v303 = vunpack.c.l.b16 %v68
  %v304 = vunpack.c.l.b16 %v69
  %v305 = vunpack.c.l.b16 %v70
  %v306 = vunpack.c.l.b16 %v71
  %v307 = vunpack.c.l.b16 %v72
  %v308 = vunpack.c.l.b16 %v73
  %v309 = vunpack.c.l.b16 %v74
  %v310 = vunpack.c.l.b16 %v75
  %v311 = vunpack.c.l.b16 %v76
  %v312 = vunpack.c.l.b16 %v77
  %v313 = vunpack.c.l.b16 %v78
  %v314 = vunpack.c.l.b16 %v79
  %v315 = vunpack.c.l.b16 %v80
  %v316 = vunpack.c.l.b16 %v81
  %v317 = vpack.c.b16 %v300, %v299
  %v318 = vpack.c.b16 %v302, %v301
  %v319 = vpack.c.b16 %v304, %v303
  %v320 = vpack.c.b16 %v306, %v305
  %v321 = vpack.c.b16 %v308, %v307
  %v322 = vpack.c.b16 %v310, %v309
  %v323 = vpack.c.b16 %v312, %v311
  %v324 = vpack.c.b16 %v314, %v313
  %v325 = vpack.c.b16 %v316, %v315
  %vm335 = vcmask 130048
  %v337 = vsel %vm335, %v216, 0
  %v340 = vsel %vm335, %v218, 0
  %v343 = vsel %vm335, %v220, 0
  %v346 = vsel %vm335, %v222, 0
  %v349 = vsel %vm335, %v224, 0
  %v352 = vsel %vm335, %v226, 0
  %v355 = vsel %vm335, %v228, 0
  %v358 = vsel %vm335, %v230, 0
  %v361 = vsel %vm335, %v232, 0
  %v364 = vsel %vm335, %v234, 0
  %v367 = vsel %vm335, %v236, 0
  %v370 = vsel %vm335, %v238, 0
  %v373 = vsel %vm335, %v240, 0
  %v376 = vsel %vm335, %v242, 0
  %v379 = vsel %vm335, %v244, 0
  %v382 = vsel %vm335, %v246, 0
  %v385 = vsel %vm335, %v248, 0
  %v388 = vsel %vm335, %v250, 0
  %v391 = vsel %vm335, %v252, 0
  %v394 = vsel %vm335, %v254, 0
  %v397 = vsel %vm335, %v256, 0
  %v400 = vsel %vm335, %v258, 0
  %402 = vmatpush.bf16.msra.mxu0 %v324
  %403 = vmatpush.bf16.msra.mxu0 %v323
  %404 = vmatpush.bf16.msra.mxu0 %v322
  %405 = vmatpush.bf16.msra.mxu0 %v321
  %406 = vmatpush.bf16.msra.mxu0 %v320
  %407 = vmatpush.bf16.msra.mxu0 %v319
  %408 = vmatpush.bf16.msra.mxu0 %v318
  %409 = vmatpush.bf16.msra.mxu0 %v317
  %410 = vmatmul.bf16.gmra.mxu0 %v215
  %v411 = vpop.f32.mrf.mxu0
  %v412 = vadd.f32 %v84, %v411
  %v413 = vpop.f32.mrf.mxu0
  %v414 = vadd.f32 %v84, %v413
  %415 = vmatmul.bf16.gmra.mxu0 %v217
  %v416 = vpop.f32.mrf.mxu0
  %v417 = vadd.f32 %v84, %v416
  %v418 = vpop.f32.mrf.mxu0
  %v419 = vadd.f32 %v84, %v418
  %420 = vmatmul.bf16.gmra.mxu0 %v219
  %v421 = vpop.f32.mrf.mxu0
  %v422 = vadd.f32 %v84, %v421
  %v423 = vpop.f32.mrf.mxu0
  %v424 = vadd.f32 %v84, %v423
  %425 = vmatmul.bf16.gmra.mxu0 %v221
  %v426 = vpop.f32.mrf.mxu0
  %v427 = vadd.f32 %v84, %v426
  %v428 = vpop.f32.mrf.mxu0
  %v429 = vadd.f32 %v84, %v428
  %430 = vmatmul.bf16.gmra.mxu0 %v223
  %v431 = vpop.f32.mrf.mxu0
  %v432 = vadd.f32 %v84, %v431
  %v433 = vpop.f32.mrf.mxu0
  %v434 = vadd.f32 %v84, %v433
  %435 = vmatmul.bf16.gmra.mxu0 %v225
  %v436 = vpop.f32.mrf.mxu0
  %v437 = vadd.f32 %v84, %v436
  %v438 = vpop.f32.mrf.mxu0
  %v439 = vadd.f32 %v84, %v438
  %440 = vmatmul.bf16.gmra.mxu0 %v227
  %v441 = vpop.f32.mrf.mxu0
  %v442 = vadd.f32 %v84, %v441
  %v443 = vpop.f32.mrf.mxu0
  %v444 = vadd.f32 %v84, %v443
  %445 = vmatmul.bf16.gmra.mxu0 %v229
  %v446 = vpop.f32.mrf.mxu0
  %v447 = vadd.f32 %v84, %v446
  %v448 = vpop.f32.mrf.mxu0
  %v449 = vadd.f32 %v84, %v448
  %450 = vmatmul.bf16.gmra.mxu0 %v231
  %v451 = vpop.f32.mrf.mxu0
  %v452 = vadd.f32 %v84, %v451
  %v453 = vpop.f32.mrf.mxu0
  %v454 = vadd.f32 %v84, %v453
  %455 = vmatmul.bf16.gmra.mxu0 %v233
  %v456 = vpop.f32.mrf.mxu0
  %v457 = vadd.f32 %v84, %v456
  %v458 = vpop.f32.mrf.mxu0
  %v459 = vadd.f32 %v84, %v458
  %460 = vmatmul.bf16.gmra.mxu0 %v235
  %v461 = vpop.f32.mrf.mxu0
  %v462 = vadd.f32 %v84, %v461
  %v463 = vpop.f32.mrf.mxu0
  %v464 = vadd.f32 %v84, %v463
  %465 = vmatmul.bf16.gmra.mxu0 %v237
  %v466 = vpop.f32.mrf.mxu0
  %v467 = vadd.f32 %v84, %v466
  %v468 = vpop.f32.mrf.mxu0
  %v469 = vadd.f32 %v84, %v468
  %470 = vmatmul.bf16.gmra.mxu0 %v239
  %v471 = vpop.f32.mrf.mxu0
  %v472 = vadd.f32 %v84, %v471
  %v473 = vpop.f32.mrf.mxu0
  %v474 = vadd.f32 %v84, %v473
  %475 = vmatmul.bf16.gmra.mxu0 %v241
  %v476 = vpop.f32.mrf.mxu0
  %v477 = vadd.f32 %v84, %v476
  %v478 = vpop.f32.mrf.mxu0
  %v479 = vadd.f32 %v84, %v478
  %480 = vmatmul.bf16.gmra.mxu0 %v243
  %v481 = vpop.f32.mrf.mxu0
  %v482 = vadd.f32 %v84, %v481
  %v483 = vpop.f32.mrf.mxu0
  %v484 = vadd.f32 %v84, %v483
  %485 = vmatmul.bf16.gmra.mxu0 %v245
  %v486 = vpop.f32.mrf.mxu0
  %v487 = vadd.f32 %v84, %v486
  %v488 = vpop.f32.mrf.mxu0
  %v489 = vadd.f32 %v84, %v488
  %490 = vmatmul.bf16.gmra.mxu0 %v247
  %v491 = vpop.f32.mrf.mxu0
  %v492 = vadd.f32 %v84, %v491
  %v493 = vpop.f32.mrf.mxu0
  %v494 = vadd.f32 %v84, %v493
  %495 = vmatmul.bf16.gmra.mxu0 %v249
  %v496 = vpop.f32.mrf.mxu0
  %v497 = vadd.f32 %v84, %v496
  %v498 = vpop.f32.mrf.mxu0
  %v499 = vadd.f32 %v84, %v498
  %500 = vmatmul.bf16.gmra.mxu0 %v251
  %v501 = vpop.f32.mrf.mxu0
  %v502 = vadd.f32 %v84, %v501
  %v503 = vpop.f32.mrf.mxu0
  %v504 = vadd.f32 %v84, %v503
  %505 = vmatmul.bf16.gmra.mxu0 %v253
  %v506 = vpop.f32.mrf.mxu0
  %v507 = vadd.f32 %v84, %v506
  %v508 = vpop.f32.mrf.mxu0
  %v509 = vadd.f32 %v84, %v508
  %510 = vmatmul.bf16.gmra.mxu0 %v255
  %v511 = vpop.f32.mrf.mxu0
  %v512 = vadd.f32 %v84, %v511
  %v513 = vpop.f32.mrf.mxu0
  %v514 = vadd.f32 %v84, %v513
  %515 = vmatmul.bf16.gmra.mxu0 %v257
  %v516 = vpop.f32.mrf.mxu0
  %v517 = vadd.f32 %v84, %v516
  %v518 = vpop.f32.mrf.mxu0
  %519 = vdwg.mxu0
  %520 = vmatpush.bf16.msra.mxu0 0
  %521 = vmatpush.bf16.msra.mxu0 0
  %522 = vmatpush.bf16.msra.mxu0 0
  %523 = vmatpush.bf16.msra.mxu0 0
  %524 = vmatpush.bf16.msra.mxu0 0
  %525 = vmatpush.bf16.msra.mxu0 0
  %526 = vmatpush.bf16.msra.mxu0 0
  %527 = vmatpush.bf16.msra.mxu0 %v325
  %528 = vmatmul.bf16.gmra.mxu0 %v337
  %v529 = vpop.f32.mrf.mxu0
  %v530 = vadd.f32 %v412, %v529
  %v531 = vpop.f32.mrf.mxu0
  %v532 = vadd.f32 %v414, %v531
  %533 = vmatmul.bf16.gmra.mxu0 %v340
  %v534 = vpop.f32.mrf.mxu0
  %v535 = vadd.f32 %v417, %v534
  %v536 = vpop.f32.mrf.mxu0
  %v537 = vadd.f32 %v419, %v536
  %538 = vmatmul.bf16.gmra.mxu0 %v343
  %v539 = vpop.f32.mrf.mxu0
  %v540 = vadd.f32 %v422, %v539
  %v541 = vpop.f32.mrf.mxu0
  %v542 = vadd.f32 %v424, %v541
  %543 = vmatmul.bf16.gmra.mxu0 %v346
  %v544 = vpop.f32.mrf.mxu0
  %v545 = vadd.f32 %v427, %v544
  %v546 = vpop.f32.mrf.mxu0
  %v547 = vadd.f32 %v429, %v546
  %548 = vmatmul.bf16.gmra.mxu0 %v349
  %v549 = vpop.f32.mrf.mxu0
  %v550 = vadd.f32 %v432, %v549
  %v551 = vpop.f32.mrf.mxu0
  %v552 = vadd.f32 %v434, %v551
  %553 = vmatmul.bf16.gmra.mxu0 %v352
  %v554 = vpop.f32.mrf.mxu0
  %v555 = vadd.f32 %v437, %v554
  %v556 = vpop.f32.mrf.mxu0
  %v557 = vadd.f32 %v439, %v556
  %558 = vmatmul.bf16.gmra.mxu0 %v355
  %v559 = vpop.f32.mrf.mxu0
  %v560 = vadd.f32 %v442, %v559
  %v561 = vpop.f32.mrf.mxu0
  %v562 = vadd.f32 %v444, %v561
  %563 = vmatmul.bf16.gmra.mxu0 %v358
  %v564 = vpop.f32.mrf.mxu0
  %v565 = vadd.f32 %v447, %v564
  %v566 = vpop.f32.mrf.mxu0
  %v567 = vadd.f32 %v449, %v566
  %568 = vmatmul.bf16.gmra.mxu0 %v361
  %v569 = vpop.f32.mrf.mxu0
  %v570 = vadd.f32 %v452, %v569
  %v571 = vpop.f32.mrf.mxu0
  %v572 = vadd.f32 %v454, %v571
  %573 = vmatmul.bf16.gmra.mxu0 %v364
  %v574 = vpop.f32.mrf.mxu0
  %v575 = vadd.f32 %v457, %v574
  %v576 = vpop.f32.mrf.mxu0
  %v577 = vadd.f32 %v459, %v576
  %578 = vmatmul.bf16.gmra.mxu0 %v367
  %v579 = vpop.f32.mrf.mxu0
  %v580 = vadd.f32 %v462, %v579
  %v581 = vpop.f32.mrf.mxu0
  %v582 = vadd.f32 %v464, %v581
  %583 = vmatmul.bf16.gmra.mxu0 %v370
  %v584 = vpop.f32.mrf.mxu0
  %v585 = vadd.f32 %v467, %v584
  %v586 = vpop.f32.mrf.mxu0
  %v587 = vadd.f32 %v469, %v586
  %588 = vmatmul.bf16.gmra.mxu0 %v373
  %v589 = vpop.f32.mrf.mxu0
  %v590 = vadd.f32 %v472, %v589
  %v591 = vpop.f32.mrf.mxu0
  %v592 = vadd.f32 %v474, %v591
  %593 = vmatmul.bf16.gmra.mxu0 %v376
  %v594 = vpop.f32.mrf.mxu0
  %v595 = vadd.f32 %v477, %v594
  %v596 = vpop.f32.mrf.mxu0
  %v597 = vadd.f32 %v479, %v596
  %598 = vmatmul.bf16.gmra.mxu0 %v379
  %v599 = vpop.f32.mrf.mxu0
  %v600 = vadd.f32 %v482, %v599
  %v601 = vpop.f32.mrf.mxu0
  %v602 = vadd.f32 %v484, %v601
  %603 = vmatmul.bf16.gmra.mxu0 %v382
  %v604 = vpop.f32.mrf.mxu0
  %v605 = vadd.f32 %v487, %v604
  %v606 = vpop.f32.mrf.mxu0
  %v607 = vadd.f32 %v489, %v606
  %608 = vmatmul.bf16.gmra.mxu0 %v385
  %v609 = vpop.f32.mrf.mxu0
  %v610 = vadd.f32 %v492, %v609
  %v611 = vpop.f32.mrf.mxu0
  %v612 = vadd.f32 %v494, %v611
  %613 = vmatmul.bf16.gmra.mxu0 %v388
  %v614 = vpop.f32.mrf.mxu0
  %v615 = vadd.f32 %v497, %v614
  %v616 = vpop.f32.mrf.mxu0
  %v617 = vadd.f32 %v499, %v616
  %618 = vmatmul.bf16.gmra.mxu0 %v391
  %v619 = vpop.f32.mrf.mxu0
  %v620 = vadd.f32 %v502, %v619
  %v621 = vpop.f32.mrf.mxu0
  %v622 = vadd.f32 %v504, %v621
  %623 = vmatmul.bf16.gmra.mxu0 %v394
  %v624 = vpop.f32.mrf.mxu0
  %v625 = vadd.f32 %v507, %v624
  %v626 = vpop.f32.mrf.mxu0
  %v627 = vadd.f32 %v509, %v626
  %628 = vmatmul.bf16.gmra.mxu0 %v397
  %v629 = vpop.f32.mrf.mxu0
  %v630 = vadd.f32 %v512, %v629
  %v631 = vpop.f32.mrf.mxu0
  %v632 = vadd.f32 %v514, %v631
  %633 = vmatmul.bf16.gmra.mxu0 %v400
  %v634 = vpop.f32.mrf.mxu0
  %v635 = vadd.f32 %v517, %v634
  %v636 = vpop.f32.mrf.mxu0
  %637 = vdwg.mxu0
  %v638 = vadd.f32 %v530, %v532
  %v639 = vadd.f32 %v638, %v535
  %v640 = vadd.f32 %v639, %v537
  %v641 = vadd.f32 %v640, %v540
  %v642 = vadd.f32 %v641, %v542
  %v643 = vadd.f32 %v642, %v545
  %v644 = vadd.f32 %v643, %v547
  %v645 = vadd.f32 %v644, %v550
  %v646 = vadd.f32 %v645, %v552
  %v647 = vadd.f32 %v646, %v555
  %v648 = vadd.f32 %v647, %v557
  %v649 = vadd.f32 %v648, %v560
  %v650 = vadd.f32 %v649, %v562
  %v651 = vadd.f32 %v650, %v565
  %v652 = vadd.f32 %v651, %v567
  %v653 = vadd.f32 %v652, %v570
  %v654 = vadd.f32 %v653, %v572
  %v655 = vadd.f32 %v654, %v575
  %v656 = vadd.f32 %v655, %v577
  %v657 = vadd.f32 %v656, %v580
  %v658 = vadd.f32 %v657, %v582
  %v659 = vadd.f32 %v658, %v585
  %v660 = vadd.f32 %v659, %v587
  %v661 = vadd.f32 %v660, %v590
  %v662 = vadd.f32 %v661, %v592
  %v663 = vadd.f32 %v662, %v595
  %v664 = vadd.f32 %v663, %v597
  %v665 = vadd.f32 %v664, %v600
  %v666 = vadd.f32 %v665, %v602
  %v667 = vadd.f32 %v666, %v605
  %v668 = vadd.f32 %v667, %v607
  %v669 = vadd.f32 %v668, %v610
  %v670 = vadd.f32 %v669, %v612
  %v671 = vadd.f32 %v670, %v615
  %v672 = vadd.f32 %v671, %v617
  %v673 = vadd.f32 %v672, %v620
  %v674 = vadd.f32 %v673, %v622
  %v675 = vadd.f32 %v674, %v625
  %v676 = vadd.f32 %v675, %v627
  %v677 = vadd.f32 %v676, %v630
  %v678 = vadd.f32 %v677, %v632
  %vm679 = vcmask 1041408
  %v680 = vsel %vm679, %v635, 0.0
  %v681 = vadd.f32 %v678, %v680
  %v682 = vrot.slane %v681, 4
  %v683 = vadd.f32 %v681, %v682
  %v684 = vrot.slane %v683, 2
  %v685 = vadd.f32 %v683, %v684
  %v686 = vrot.slane %v685, 1
  %v687 = vadd.f32 %v685, %v686
  %v688 = vrcp.pop 338.0
  %v689 = vmul.f32 338.0, %v688
  %v690 = vsub.f32 1.0, %v689
  %v691 = vmul.f32 %v688, %v690
  %v692 = vadd.f32 %v688, %v691
  %vm693 = vweird.f32 %v688
  %v694 = vsel %vm693, %v688, %v692
  %v695 = vmul.f32 %v687, %v694
  %v696 = vsub.f32 %v530, %v695
  %v697 = vsub.f32 %v532, %v695
  %v698 = vsub.f32 %v535, %v695
  %v699 = vsub.f32 %v537, %v695
  %v700 = vsub.f32 %v540, %v695
  %v701 = vsub.f32 %v542, %v695
  %v702 = vsub.f32 %v545, %v695
  %v703 = vsub.f32 %v547, %v695
  %v704 = vsub.f32 %v550, %v695
  %v705 = vsub.f32 %v552, %v695
  %v706 = vsub.f32 %v555, %v695
  %v707 = vsub.f32 %v557, %v695
  %v708 = vsub.f32 %v560, %v695
  %v709 = vsub.f32 %v562, %v695
  %v710 = vsub.f32 %v565, %v695
  %v711 = vsub.f32 %v567, %v695
  %v712 = vsub.f32 %v570, %v695
  %v713 = vsub.f32 %v572, %v695
  %v714 = vsub.f32 %v575, %v695
  %v715 = vsub.f32 %v577, %v695
  %v716 = vsub.f32 %v580, %v695
  %v717 = vsub.f32 %v582, %v695
  %v718 = vsub.f32 %v585, %v695
  %v719 = vsub.f32 %v587, %v695
  %v720 = vsub.f32 %v590, %v695
  %v721 = vsub.f32 %v592, %v695
  %v722 = vsub.f32 %v595, %v695
  %v723 = vsub.f32 %v597, %v695
  %v724 = vsub.f32 %v600, %v695
  %v725 = vsub.f32 %v602, %v695
  %v726 = vsub.f32 %v605, %v695
  %v727 = vsub.f32 %v607, %v695
  %v728 = vsub.f32 %v610, %v695
  %v729 = vsub.f32 %v612, %v695
  %v730 = vsub.f32 %v615, %v695
  %v731 = vsub.f32 %v617, %v695
  %v732 = vsub.f32 %v620, %v695
  %v733 = vsub.f32 %v622, %v695
  %v734 = vsub.f32 %v625, %v695
  %v735 = vsub.f32 %v627, %v695
  %v736 = vsub.f32 %v630, %v695
  %v737 = vsub.f32 %v632, %v695
  %v738 = vsub.f32 %v635, %v695
  %v739 = vmul.f32 %v696, %v696
  %v740 = vmul.f32 %v697, %v697
  %v741 = vmul.f32 %v698, %v698
  %v742 = vmul.f32 %v699, %v699
  %v743 = vmul.f32 %v700, %v700
  %v744 = vmul.f32 %v701, %v701
  %v745 = vmul.f32 %v702, %v702
  %v746 = vmul.f32 %v703, %v703
  %v747 = vmul.f32 %v704, %v704
  %v748 = vmul.f32 %v705, %v705
  %v749 = vmul.f32 %v706, %v706
  %v750 = vmul.f32 %v707, %v707
  %v751 = vmul.f32 %v708, %v708
  %v752 = vmul.f32 %v709, %v709
  %v753 = vmul.f32 %v710, %v710
  %v754 = vmul.f32 %v711, %v711
  %v755 = vmul.f32 %v712, %v712
  %v756 = vmul.f32 %v713, %v713
  %v757 = vmul.f32 %v714, %v714
  %v758 = vmul.f32 %v715, %v715
  %v759 = vmul.f32 %v716, %v716
  %v760 = vmul.f32 %v717, %v717
  %v761 = vmul.f32 %v718, %v718
  %v762 = vmul.f32 %v719, %v719
  %v763 = vmul.f32 %v720, %v720
  %v764 = vmul.f32 %v721, %v721
  %v765 = vmul.f32 %v722, %v722
  %v766 = vmul.f32 %v723, %v723
  %v767 = vmul.f32 %v724, %v724
  %v768 = vmul.f32 %v725, %v725
  %v769 = vmul.f32 %v726, %v726
  %v770 = vmul.f32 %v727, %v727
  %v771 = vmul.f32 %v728, %v728
  %v772 = vmul.f32 %v729, %v729
  %v773 = vmul.f32 %v730, %v730
  %v774 = vmul.f32 %v731, %v731
  %v775 = vmul.f32 %v732, %v732
  %v776 = vmul.f32 %v733, %v733
  %v777 = vmul.f32 %v734, %v734
  %v778 = vmul.f32 %v735, %v735
  %v779 = vmul.f32 %v736, %v736
  %v780 = vmul.f32 %v737, %v737
  %v781 = vmul.f32 %v738, %v738
  %v782 = vadd.f32 %v739, %v740
  %v783 = vadd.f32 %v782, %v741
  %v784 = vadd.f32 %v783, %v742
  %v785 = vadd.f32 %v784, %v743
  %v786 = vadd.f32 %v785, %v744
  %v787 = vadd.f32 %v786, %v745
  %v788 = vadd.f32 %v787, %v746
  %v789 = vadd.f32 %v788, %v747
  %v790 = vadd.f32 %v789, %v748
  %v791 = vadd.f32 %v790, %v749
  %v792 = vadd.f32 %v791, %v750
  %v793 = vadd.f32 %v792, %v751
  %v794 = vadd.f32 %v793, %v752
  %v795 = vadd.f32 %v794, %v753
  %v796 = vadd.f32 %v795, %v754
  %v797 = vadd.f32 %v796, %v755
  %v798 = vadd.f32 %v797, %v756
  %v799 = vadd.f32 %v798, %v757
  %v800 = vadd.f32 %v799, %v758
  %v801 = vadd.f32 %v800, %v759
  %v802 = vadd.f32 %v801, %v760
  %v803 = vadd.f32 %v802, %v761
  %v804 = vadd.f32 %v803, %v762
  %v805 = vadd.f32 %v804, %v763
  %v806 = vadd.f32 %v805, %v764
  %v807 = vadd.f32 %v806, %v765
  %v808 = vadd.f32 %v807, %v766
  %v809 = vadd.f32 %v808, %v767
  %v810 = vadd.f32 %v809, %v768
  %v811 = vadd.f32 %v810, %v769
  %v812 = vadd.f32 %v811, %v770
  %v813 = vadd.f32 %v812, %v771
  %v814 = vadd.f32 %v813, %v772
  %v815 = vadd.f32 %v814, %v773
  %v816 = vadd.f32 %v815, %v774
  %v817 = vadd.f32 %v816, %v775
  %v818 = vadd.f32 %v817, %v776
  %v819 = vadd.f32 %v818, %v777
  %v820 = vadd.f32 %v819, %v778
  %v821 = vadd.f32 %v820, %v779
  %v822 = vadd.f32 %v821, %v780
  %v823 = vsel %vm679, %v781, 0.0
  %v824 = vadd.f32 %v822, %v823
  %v825 = vrot.slane %v824, 4
  %v826 = vadd.f32 %v824, %v825
  %v827 = vrot.slane %v826, 2
  %v828 = vadd.f32 %v826, %v827
  %v829 = vrot.slane %v828, 1
  %v830 = vadd.f32 %v828, %v829
  %v831 = vmul.f32 %v830, %v694
  %v832 = vadd.f32 %v831, 1e-05
  %v833 = vrsqrt.pop %v832
  %v834 = vmul.f32 %v833, %v832
  %v835 = vmul.f32 %v834, %v833
  %v836 = vmul.f32 0.5, %v835
  %v837 = vsub.f32 1.5, %v836
  %v838 = vmul.f32 %v833, %v837
  %vm839 = vweird.f32 %v832
  %vm840 = vweird.f32 %v833
  %vm841 = vmor %vm839, %vm840
  %v842 = vsel %vm841, %v833, %v838
  %v843 = vmul.f32 %v696, %v842
  %v844 = vmul.f32 %v697, %v842
  %v845 = vmul.f32 %v698, %v842
  %v846 = vmul.f32 %v699, %v842
  %v847 = vmul.f32 %v700, %v842
  %v848 = vmul.f32 %v701, %v842
  %v849 = vmul.f32 %v702, %v842
  %v850 = vmul.f32 %v703, %v842
  %v851 = vmul.f32 %v704, %v842
  %v852 = vmul.f32 %v705, %v842
  %v853 = vmul.f32 %v706, %v842
  %v854 = vmul.f32 %v707, %v842
  %v855 = vmul.f32 %v708, %v842
  %v856 = vmul.f32 %v709, %v842
  %v857 = vmul.f32 %v710, %v842
  %v858 = vmul.f32 %v711, %v842
  %v859 = vmul.f32 %v712, %v842
  %v860 = vmul.f32 %v713, %v842
  %v861 = vmul.f32 %v714, %v842
  %v862 = vmul.f32 %v715, %v842
  %v863 = vmul.f32 %v716, %v842
  %v864 = vmul.f32 %v717, %v842
  %v865 = vmul.f32 %v718, %v842
  %v866 = vmul.f32 %v719, %v842
  %v867 = vmul.f32 %v720, %v842
  %v868 = vmul.f32 %v721, %v842
  %v869 = vmul.f32 %v722, %v842
  %v870 = vmul.f32 %v723, %v842
  %v871 = vmul.f32 %v724, %v842
  %v872 = vmul.f32 %v725, %v842
  %v873 = vmul.f32 %v726, %v842
  %v874 = vmul.f32 %v727, %v842
  %v875 = vmul.f32 %v728, %v842
  %v876 = vmul.f32 %v729, %v842
  %v877 = vmul.f32 %v730, %v842
  %v878 = vmul.f32 %v731, %v842
  %v879 = vmul.f32 %v732, %v842
  %v880 = vmul.f32 %v733, %v842
  %v881 = vmul.f32 %v734, %v842
  %v882 = vmul.f32 %v735, %v842
  %v883 = vmul.f32 %v736, %v842
  %v884 = vmul.f32 %v737, %v842
  %v885 = vmul.f32 %v738, %v842
  %v886 = vld [vmem:[%s3] sm:$0x1]
  %v888 = vperm.slane %v886, 0
  %v890 = vmul.f32 %v843, %v888
  %v891 = vmul.f32 %v844, %v888
  %v892 = vmul.f32 %v845, %v888
  %v893 = vmul.f32 %v846, %v888
  %v894 = vmul.f32 %v847, %v888
  %v895 = vmul.f32 %v848, %v888
  %v896 = vmul.f32 %v849, %v888
  %v897 = vmul.f32 %v850, %v888
  %v898 = vmul.f32 %v851, %v888
  %v899 = vmul.f32 %v852, %v888
  %v900 = vmul.f32 %v853, %v888
  %v901 = vmul.f32 %v854, %v888
  %v902 = vmul.f32 %v855, %v888
  %v903 = vmul.f32 %v856, %v888
  %v904 = vmul.f32 %v857, %v888
  %v905 = vmul.f32 %v858, %v888
  %v906 = vmul.f32 %v859, %v888
  %v907 = vmul.f32 %v860, %v888
  %v908 = vmul.f32 %v861, %v888
  %v909 = vmul.f32 %v862, %v888
  %v910 = vmul.f32 %v863, %v888
  %v911 = vmul.f32 %v864, %v888
  %v912 = vmul.f32 %v865, %v888
  %v913 = vmul.f32 %v866, %v888
  %v914 = vmul.f32 %v867, %v888
  %v915 = vmul.f32 %v868, %v888
  %v916 = vmul.f32 %v869, %v888
  %v917 = vmul.f32 %v870, %v888
  %v918 = vmul.f32 %v871, %v888
  %v919 = vmul.f32 %v872, %v888
  %v920 = vmul.f32 %v873, %v888
  %v921 = vmul.f32 %v874, %v888
  %v922 = vmul.f32 %v875, %v888
  %v923 = vmul.f32 %v876, %v888
  %v924 = vmul.f32 %v877, %v888
  %v925 = vmul.f32 %v878, %v888
  %v926 = vmul.f32 %v879, %v888
  %v927 = vmul.f32 %v880, %v888
  %v928 = vmul.f32 %v881, %v888
  %v929 = vmul.f32 %v882, %v888
  %v930 = vmul.f32 %v883, %v888
  %v931 = vmul.f32 %v884, %v888
  %v932 = vmul.f32 %v885, %v888
  %v933 = vld [vmem:[%s4] sm:$0x1]
  %v935 = vperm.slane %v933, 0
  %v937 = vadd.f32 %v890, %v935
  %v938 = vadd.f32 %v891, %v935
  %v939 = vadd.f32 %v892, %v935
  %v940 = vadd.f32 %v893, %v935
  %v941 = vadd.f32 %v894, %v935
  %v942 = vadd.f32 %v895, %v935
  %v943 = vadd.f32 %v896, %v935
  %v944 = vadd.f32 %v897, %v935
  %v945 = vadd.f32 %v898, %v935
  %v946 = vadd.f32 %v899, %v935
  %v947 = vadd.f32 %v900, %v935
  %v948 = vadd.f32 %v901, %v935
  %v949 = vadd.f32 %v902, %v935
  %v950 = vadd.f32 %v903, %v935
  %v951 = vadd.f32 %v904, %v935
  %v952 = vadd.f32 %v905, %v935
  %v953 = vadd.f32 %v906, %v935
  %v954 = vadd.f32 %v907, %v935
  %v955 = vadd.f32 %v908, %v935
  %v956 = vadd.f32 %v909, %v935
  %v957 = vadd.f32 %v910, %v935
  %v958 = vadd.f32 %v911, %v935
  %v959 = vadd.f32 %v912, %v935
  %v960 = vadd.f32 %v913, %v935
  %v961 = vadd.f32 %v914, %v935
  %v962 = vadd.f32 %v915, %v935
  %v963 = vadd.f32 %v916, %v935
  %v964 = vadd.f32 %v917, %v935
  %v965 = vadd.f32 %v918, %v935
  %v966 = vadd.f32 %v919, %v935
  %v967 = vadd.f32 %v920, %v935
  %v968 = vadd.f32 %v921, %v935
  %v969 = vadd.f32 %v922, %v935
  %v970 = vadd.f32 %v923, %v935
  %v971 = vadd.f32 %v924, %v935
  %v972 = vadd.f32 %v925, %v935
  %v973 = vadd.f32 %v926, %v935
  %v974 = vadd.f32 %v927, %v935
  %v975 = vadd.f32 %v928, %v935
  %v976 = vadd.f32 %v929, %v935
  %v977 = vadd.f32 %v930, %v935
  %v978 = vadd.f32 %v931, %v935
  %v979 = vadd.f32 %v932, %v935
  %v980 = vmax.f32 %v937, 0.0
  %v981 = vmax.f32 %v938, 0.0
  %v982 = vmax.f32 %v939, 0.0
  %v983 = vmax.f32 %v940, 0.0
  %v984 = vmax.f32 %v941, 0.0
  %v985 = vmax.f32 %v942, 0.0
  %v986 = vmax.f32 %v943, 0.0
  %v987 = vmax.f32 %v944, 0.0
  %v988 = vmax.f32 %v945, 0.0
  %v989 = vmax.f32 %v946, 0.0
  %v990 = vmax.f32 %v947, 0.0
  %v991 = vmax.f32 %v948, 0.0
  %v992 = vmax.f32 %v949, 0.0
  %v993 = vmax.f32 %v950, 0.0
  %v994 = vmax.f32 %v951, 0.0
  %v995 = vmax.f32 %v952, 0.0
  %v996 = vmax.f32 %v953, 0.0
  %v997 = vmax.f32 %v954, 0.0
  %v998 = vmax.f32 %v955, 0.0
  %v999 = vmax.f32 %v956, 0.0
  %v1000 = vmax.f32 %v957, 0.0
  %v1001 = vmax.f32 %v958, 0.0
  %v1002 = vmax.f32 %v959, 0.0
  %v1003 = vmax.f32 %v960, 0.0
  %v1004 = vmax.f32 %v961, 0.0
  %v1005 = vmax.f32 %v962, 0.0
  %v1006 = vmax.f32 %v963, 0.0
  %v1007 = vmax.f32 %v964, 0.0
  %v1008 = vmax.f32 %v965, 0.0
  %v1009 = vmax.f32 %v966, 0.0
  %v1010 = vmax.f32 %v967, 0.0
  %v1011 = vmax.f32 %v968, 0.0
  %v1012 = vmax.f32 %v969, 0.0
  %v1013 = vmax.f32 %v970, 0.0
  %v1014 = vmax.f32 %v971, 0.0
  %v1015 = vmax.f32 %v972, 0.0
  %v1016 = vmax.f32 %v973, 0.0
  %v1017 = vmax.f32 %v974, 0.0
  %v1018 = vmax.f32 %v975, 0.0
  %v1019 = vmax.f32 %v976, 0.0
  %v1020 = vmax.f32 %v977, 0.0
  %v1021 = vmax.f32 %v978, 0.0
  %v1022 = vmax.f32 %v979, 0.0
  %v1023 = vpack.c.bf16 %v980, %v980
  %v1024 = vpack.c.bf16 %v981, %v981
  %v1025 = vpack.c.bf16 %v982, %v982
  %v1026 = vpack.c.bf16 %v983, %v983
  %v1027 = vpack.c.bf16 %v984, %v984
  %v1028 = vpack.c.bf16 %v985, %v985
  %v1029 = vpack.c.bf16 %v986, %v986
  %v1030 = vpack.c.bf16 %v987, %v987
  %v1031 = vpack.c.bf16 %v988, %v988
  %v1032 = vpack.c.bf16 %v989, %v989
  %v1033 = vpack.c.bf16 %v990, %v990
  %v1034 = vpack.c.bf16 %v991, %v991
  %v1035 = vpack.c.bf16 %v992, %v992
  %v1036 = vpack.c.bf16 %v993, %v993
  %v1037 = vpack.c.bf16 %v994, %v994
  %v1038 = vpack.c.bf16 %v995, %v995
  %v1039 = vpack.c.bf16 %v996, %v996
  %v1040 = vpack.c.bf16 %v997, %v997
  %v1041 = vpack.c.bf16 %v998, %v998
  %v1042 = vpack.c.bf16 %v999, %v999
  %v1043 = vpack.c.bf16 %v1000, %v1000
  %v1044 = vpack.c.bf16 %v1001, %v1001
  %v1045 = vpack.c.bf16 %v1002, %v1002
  %v1046 = vpack.c.bf16 %v1003, %v1003
  %v1047 = vpack.c.bf16 %v1004, %v1004
  %v1048 = vpack.c.bf16 %v1005, %v1005
  %v1049 = vpack.c.bf16 %v1006, %v1006
  %v1050 = vpack.c.bf16 %v1007, %v1007
  %v1051 = vpack.c.bf16 %v1008, %v1008
  %v1052 = vpack.c.bf16 %v1009, %v1009
  %v1053 = vpack.c.bf16 %v1010, %v1010
  %v1054 = vpack.c.bf16 %v1011, %v1011
  %v1055 = vpack.c.bf16 %v1012, %v1012
  %v1056 = vpack.c.bf16 %v1013, %v1013
  %v1057 = vpack.c.bf16 %v1014, %v1014
  %v1058 = vpack.c.bf16 %v1015, %v1015
  %v1059 = vpack.c.bf16 %v1016, %v1016
  %v1060 = vpack.c.bf16 %v1017, %v1017
  %v1061 = vpack.c.bf16 %v1018, %v1018
  %v1062 = vpack.c.bf16 %v1019, %v1019
  %v1063 = vpack.c.bf16 %v1020, %v1020
  %v1064 = vpack.c.bf16 %v1021, %v1021
  %v1065 = vpack.c.bf16 %v1022, %v1022
  %1066 = vst [vmem:[%s5] sm:$0xf] %v1023
  %1067 = vst [vmem:[%s5 + $0x4] sm:$0xf] %v1024
  %1068 = vst [vmem:[%s5 + $0x8] sm:$0xf] %v1025
  %1069 = vst [vmem:[%s5 + $0xc] sm:$0xf] %v1026
  %1070 = vst [vmem:[%s5 + $0x10] sm:$0xf] %v1027
  %1071 = vst [vmem:[%s5 + $0x14] sm:$0xf] %v1028
  %1072 = vst [vmem:[%s5 + $0x18] sm:$0xf] %v1029
  %1073 = vst [vmem:[%s5 + $0x1c] sm:$0xf] %v1030
  %1074 = vst [vmem:[%s5 + $0x20] sm:$0xf] %v1031
  %1075 = vst [vmem:[%s5 + $0x24] sm:$0xf] %v1032
  %1076 = vst [vmem:[%s5 + $0x28] sm:$0xf] %v1033
  %1077 = vst [vmem:[%s5 + $0x2c] sm:$0xf] %v1034
  %1078 = vst [vmem:[%s5 + $0x30] sm:$0xf] %v1035
  %1079 = vst [vmem:[%s5 + $0x34] sm:$0xf] %v1036
  %1080 = vst [vmem:[%s5 + $0x38] sm:$0xf] %v1037
  %1081 = vst [vmem:[%s5 + $0x3c] sm:$0xf] %v1038
  %1082 = vst [vmem:[%s5 + $0x40] sm:$0xf] %v1039
  %1083 = vst [vmem:[%s5 + $0x44] sm:$0xf] %v1040
  %1084 = vst [vmem:[%s5 + $0x48] sm:$0xf] %v1041
  %1085 = vst [vmem:[%s5 + $0x4c] sm:$0xf] %v1042
  %1086 = vst [vmem:[%s5 + $0x50] sm:$0xf] %v1043
  %1087 = vst [vmem:[%s5 + $0x54] sm:$0xf] %v1044
  %1088 = vst [vmem:[%s5 + $0x58] sm:$0xf] %v1045
  %1089 = vst [vmem:[%s5 + $0x5c] sm:$0xf] %v1046
  %1090 = vst [vmem:[%s5 + $0x60] sm:$0xf] %v1047
  %1091 = vst [vmem:[%s5 + $0x64] sm:$0xf] %v1048
  %1092 = vst [vmem:[%s5 + $0x68] sm:$0xf] %v1049
  %1093 = vst [vmem:[%s5 + $0x6c] sm:$0xf] %v1050
  %1094 = vst [vmem:[%s5 + $0x70] sm:$0xf] %v1051
  %1095 = vst [vmem:[%s5 + $0x74] sm:$0xf] %v1052
  %1096 = vst [vmem:[%s5 + $0x78] sm:$0xf] %v1053
  %1097 = vst [vmem:[%s5 + $0x7c] sm:$0xf] %v1054
  %1098 = vst [vmem:[%s5 + $0x80] sm:$0xf] %v1055
  %1099 = vst [vmem:[%s5 + $0x84] sm:$0xf] %v1056
  %1100 = vst [vmem:[%s5 + $0x88] sm:$0xf] %v1057
  %1101 = vst [vmem:[%s5 + $0x8c] sm:$0xf] %v1058
  %1102 = vst [vmem:[%s5 + $0x90] sm:$0xf] %v1059
  %1103 = vst [vmem:[%s5 + $0x94] sm:$0xf] %v1060
  %1104 = vst [vmem:[%s5 + $0x98] sm:$0xf] %v1061
  %1105 = vst [vmem:[%s5 + $0x9c] sm:$0xf] %v1062
  %1106 = vst [vmem:[%s5 + $0xa0] sm:$0xf] %v1063
  %1107 = vst [vmem:[%s5 + $0xa4] sm:$0xf] %v1064
  %1108 = vst [vmem:[%s5 + $0xa8] sm:$0x1] %v1065
  // Predicated region
  $region22: #{_lambda_.6} parent=0 // pred_check
    _
  $region23: #{_lambda_.6} parent=0 // pred_check_branch
    %1110 = sbr.rel (0) target = $region25
  $region24: #{_lambda_.6} parent=0 // pred_region
    _
  $region25: #{_lambda_.6} parent=0 // pred_fallthru
    _
  // Predicated region
  $region26: #{_lambda_.6} parent=0 // pred_check
    _
  $region27: #{_lambda_.6} parent=0 // pred_check_branch
    %1112 = sbr.rel (0) target = $region29
  $region28: #{_lambda_.6} parent=0 // pred_region
    _
  $region29: #{_lambda_.6} parent=0 // pred_fallthru
    _

// kernel: _lambda_.7
$region0: #{_lambda_.7}
  #allocation0 [shape = 'u32[]', space=smem, size = 0x4, offset = 0x4, fixed_abs, tag = 'smem constant byte address 0x4 - core index']
  #allocation1 [shape = 'u32[72,128]{1,0:T(1,128)}', space=vmem, size = 0x9000, scoped, tag = 'internal scratch']
  #allocation2 [shape = 'f32[1,1]{1,0:T(1,128)S(1)}', space=vmem, size = 0x200, scoped, tag = 'scoped memory for _lambda_.7']
  %s0 = inlined_call_operand.vmem [shape: bf16[1,128], index: 0, kind: input, shape index: {}]
  %s1 = inlined_call_operand.vmem [shape: bf16[128,1568], index: 1, kind: input, shape index: {}]
  %s2 = inlined_call_operand.<no memory space> [shape: f32[1,1], index: 2, kind: input, shape index: {}]
  %s3 = inlined_call_operand.vmem [shape: f32[1,1568], index: 3, kind: output, shape index: {}]
  %s4 = sld [smem:[#allocation0]]
  $region173: #{_lambda_.7} parent=0
    _
  %s6 = ssub.s32 1, %s4
  %s7 = scalar_select 0, %s6, %s4
  %v8 = vstv %s2
  %9 = vst [vmem:[#allocation2] sm:$0x1] %v8
  $region1: #{_lambda_.7} parent=0
    #allocation3 [shape = 'u8[262144]{0}', space=vmem, size = 0x40000, scoped, tag = 'input window, operand 1']
    #allocation4 [shape = 'u8[4096]{0}', space=vmem, size = 0x1000, scoped, tag = 'output window, operand 0']
    loop: start=0, step=1, limit=6
    $region2: #{_lambda_.7} parent=1 // loop_pre_header
      _
    $region3: #{_lambda_.7} parent=1 // loop_header
      %s11 = sphi 0, %s15
      %p12 = scmp.ge.s32.totalorder %s11, 6
      %s19 = sphi 0, %s19
      %s21 = sphi 0, %s19
      %s22 = sphi 0, %s21
      %s36 = sphi 0, %s22
      %s42 = sphi 0, %s44
      %s45 = sphi 0, %s42
      %s46 = sphi 0, %s45
      %s62 = sphi 0, %s46
      %s66 = sphi 0, %s66
      %s68 = sphi 0, %s66
      %s69 = sphi 0, %s68
      %s83 = sphi 0, %s69
      %s89 = sphi 0, %s91
      %s92 = sphi 0, %s89
      %s93 = sphi 0, %s92
      %s109 = sphi 0, %s93
    $region4: #{_lambda_.7} parent=1 // loop_header_branch
      %14 = sbr.rel (%p12) target = $region8
    $region5: #{_lambda_.7} parent=1 // loop_body
      %s16 = ssub.s32 %s11, 1
      %s17 = ssub.s32 %s11, 2
      %s18 = sadd.s32 %s11, 1
      %s20 = sadd.s32 %s19, 1
      %p23 = scmp.eq.s32.totalorder %s11, 3
      %p24 = scmp.ne.s32.totalorder %s19, %s21
      %p25 = scmp.eq.s32.totalorder %s11, 0
      %p26 = por %p24, %p25
      %p27 = scmp.ne.s32.totalorder %s19, %s21
      %p28 = scmp.eq.s32.totalorder %s16, 3
      %p29 = por %p27, %p28
      %p30 = scmp.ne.s32.totalorder %s21, %s22
      %p31 = scmp.eq.s32.totalorder %s16, 0
      %p32 = por %p30, %p31
      %p33 = scmp.ne.s32.totalorder %s21, %s22
      %p34 = scmp.eq.s32.totalorder %s17, 3
      %p35 = por %p33, %p34
      %p37 = scmp.ne.s32.totalorder %s22, %s36
      %p38 = scmp.eq.s32.totalorder %s17, 0
      %p39 = por %p37, %p38
      %s40 = ssub.s32 %s11, %s18
      %p41 = scmp.eq.s32.totalorder %s40, 0
      %s43 = sadd.s32 %s42, 1
      %s44 = scalar_select %p41, %s42, %s43
      %p47 = pneg %p41
      %p48 = scmp.eq.s32.totalorder %s11, 3
      %p49 = por %p47, %p48
      %p50 = scmp.ne.s32.totalorder %s42, %s45
      %p51 = scmp.eq.s32.totalorder %s11, 0
      %p52 = por %p50, %p51
      %p53 = scmp.ne.s32.totalorder %s42, %s45
      %p54 = scmp.eq.s32.totalorder %s16, 3
      %p55 = por %p53, %p54
      %p56 = scmp.ne.s32.totalorder %s45, %s46
      %p57 = scmp.eq.s32.totalorder %s16, 0
      %p58 = por %p56, %p57
      %p59 = scmp.ne.s32.totalorder %s45, %s46
      %p60 = scmp.eq.s32.totalorder %s17, 3
      %p61 = por %p59, %p60
      %p63 = scmp.ne.s32.totalorder %s46, %s62
      %p64 = scmp.eq.s32.totalorder %s17, 0
      %p65 = por %p63, %p64
      %s67 = sadd.s32 %s66, 1
      %p70 = scmp.eq.s32.totalorder %s11, 3
      %p71 = scmp.ne.s32.totalorder %s66, %s68
      %p72 = scmp.eq.s32.totalorder %s11, 0
      %p73 = por %p71, %p72
      %p74 = scmp.ne.s32.totalorder %s66, %s68
      %p75 = scmp.eq.s32.totalorder %s16, 3
      %p76 = por %p74, %p75
      %p77 = scmp.ne.s32.totalorder %s68, %s69
      %p78 = scmp.eq.s32.totalorder %s16, 0
      %p79 = por %p77, %p78
      %p80 = scmp.ne.s32.totalorder %s68, %s69
      %p81 = scmp.eq.s32.totalorder %s17, 3
      %p82 = por %p80, %p81
      %p84 = scmp.ne.s32.totalorder %s69, %s83
      %p85 = scmp.eq.s32.totalorder %s17, 0
      %p86 = por %p84, %p85
      %s87 = ssub.s32 %s11, %s18
      %p88 = scmp.eq.s32.totalorder %s87, 0
      %s90 = sadd.s32 %s89, 1
      %s91 = scalar_select %p88, %s89, %s90
      %p94 = pneg %p88
      %p95 = scmp.eq.s32.totalorder %s11, 3
      %p96 = por %p94, %p95
      %p97 = scmp.ne.s32.totalorder %s89, %s92
      %p98 = scmp.eq.s32.totalorder %s11, 0
      %p99 = por %p97, %p98
      %p100 = scmp.ne.s32.totalorder %s89, %s92
      %p101 = scmp.eq.s32.totalorder %s16, 3
      %p102 = por %p100, %p101
      %p103 = scmp.ne.s32.totalorder %s92, %s93
      %p104 = scmp.eq.s32.totalorder %s16, 0
      %p105 = por %p103, %p104
      %p106 = scmp.ne.s32.totalorder %s92, %s93
      %p107 = scmp.eq.s32.totalorder %s17, 3
      %p108 = por %p106, %p107
      %p110 = scmp.ne.s32.totalorder %s93, %s109
      %p111 = scmp.eq.s32.totalorder %s17, 0
      %p112 = por %p110, %p111
      %p113 = scmp.le.s32.totalorder 1, %s11
      %p114 = scmp.lt.s32.totalorder %s11, 5
      %p115 = pnand %p113, %p114
      %p116 = pneg %p115
      // Predicated region
      $region9: #{_lambda_.7} parent=5 // pred_check
        _
      $region10: #{_lambda_.7} parent=5 // pred_check_branch
        %118 = sbr.rel (%p115) target = $region12
      $region11: #{_lambda_.7} parent=5 // pred_region
        %s119 = ssub.s32 %s11, 1
        // Predicated region
        $region13: #{_lambda_.7} parent=11 // pred_check
          %p120 = pneg %p32
        $region14: #{_lambda_.7} parent=11 // pred_check_branch
          %122 = sbr.rel (%p120) target = $region16
        $region15: #{_lambda_.7} parent=11 // pred_region
          _
        $region16: #{_lambda_.7} parent=11 // pred_fallthru
          _
        // Predicated region
        $region17: #{_lambda_.7} parent=11 // pred_check
          %p123 = pneg %p79
        $region18: #{_lambda_.7} parent=11 // pred_check_branch
          %125 = sbr.rel (%p123) target = $region20
        $region19: #{_lambda_.7} parent=11 // pred_region
          _
        $region20: #{_lambda_.7} parent=11 // pred_fallthru
          _
      $region12: #{_lambda_.7} parent=5 // pred_fallthru
        _
      %p126 = scmp.lt.s32.totalorder %s11, 4
      // Predicated region
      $region21: #{_lambda_.7} parent=5 // pred_check
        %p127 = pneg %p126
      $region22: #{_lambda_.7} parent=5 // pred_check_branch
        %129 = sbr.rel (%p127) target = $region24
      $region23: #{_lambda_.7} parent=5 // pred_region
        // Predicated region
        $region25: #{_lambda_.7} parent=23 // pred_check
          %p130 = pneg %p52
        $region26: #{_lambda_.7} parent=23 // pred_check_branch
          %132 = sbr.rel (%p130) target = $region28
        $region27: #{_lambda_.7} parent=23 // pred_region
          %s133 = sand.u32 %s42, 1
          %s134 = sand.u32 %s42, 1
          %s135 = smul.addr %s134, 256
          %s136 = scalar_lea.vmem [#allocation3], %s135
          %s137 = smul.u32 4, %s11
          %s138 = ssub.s32 13, %s137
          %p139 = scmp.lt.s32.totalorder %s138, 4
          %s140 = scalar_select %p139, %s138, 4
          %s141 = smul.u32 64, %s140
          %p142 = scmp.ne.s32.totalorder 0, %s141
          %s143 = smul.addr %s137, 4
          %s144 = scalar_lea.vmem %s1, %s143
          %s145 = smul.u32 %s140, 4
          // Predicated region
          $region29: #{_lambda_.7} parent=27 // pred_check
            %p146 = pneg %p142
          $region30: #{_lambda_.7} parent=27 // pred_check_branch
            %148 = sbr.rel (%p146) target = $region32
          $region31: #{_lambda_.7} parent=27 // pred_region
            %p149 = scmp.lt.u32.totalorder %s145, 8
            %p150 = pneg %p149
            // Predicated region
            $region33: #{_lambda_.7} parent=31 // pred_check
              _
            $region34: #{_lambda_.7} parent=31 // pred_check_branch
              %152 = sbr.rel (%p149) target = $region36
            $region35: #{_lambda_.7} parent=31 // pred_region
              %s198 = sand.u32 %s145, 7
              %p199 = scmp.eq.s32.totalorder %s198, 0
              // Predicated region
              $region48: #{_lambda_.7} parent=35 // pred_check
                %p200 = pneg %p199
              $region49: #{_lambda_.7} parent=35 // pred_check_branch
                %202 = sbr.rel (%p200) target = $region51
              $region50: #{_lambda_.7} parent=35 // pred_region
                %s203 = sshrl.u32 %s145, 3
                %s204 = sshrl.u32 %s203, 1
                // While loop
                $region52: #{_lambda_.7} parent=50 // loop_pre_header
                  _
                $region53: #{_lambda_.7} parent=50 // loop_header
                  %s206 = sphi 0, %s208
                  %p207 = scmp.ge.s32.totalorder %s206, %s204
                  %s211 = sphi 0, %s280
                  %s212 = sphi %s144, %s283
                  %s213 = sphi %s136, %s284
                $region54: #{_lambda_.7} parent=50 // loop_header_branch
                  %210 = sbr.rel (%p207) target = $region58
                $region55: #{_lambda_.7} parent=50 // loop_body
                  %v214 = vld [vmem:[%s212] sm:$0xff]
                  %215 = vst [vmem:[%s213] sm:$0xff] %v214
                  %v216 = vld [vmem:[%s212 + $0x8] sm:$0xff]
                  %217 = vst [vmem:[%s213 + $0x8] sm:$0xff] %v216
                  %v218 = vld [vmem:[%s212 + $0x34] sm:$0xff]
                  %219 = vst [vmem:[%s213 + $0x10] sm:$0xff] %v218
                  %v220 = vld [vmem:[%s212 + $0x3c] sm:$0xff]
                  %221 = vst [vmem:[%s213 + $0x18] sm:$0xff] %v220
                  %v222 = vld [vmem:[%s212 + $0x68] sm:$0xff]
                  %223 = vst [vmem:[%s213 + $0x20] sm:$0xff] %v222
                  %v224 = vld [vmem:[%s212 + $0x70] sm:$0xff]
                  %225 = vst [vmem:[%s213 + $0x28] sm:$0xff] %v224
                  %v226 = vld [vmem:[%s212 + $0x9c] sm:$0xff]
                  %227 = vst [vmem:[%s213 + $0x30] sm:$0xff] %v226
                  %v228 = vld [vmem:[%s212 + $0xa4] sm:$0xff]
                  %229 = vst [vmem:[%s213 + $0x38] sm:$0xff] %v228
                  %v230 = vld [vmem:[%s212 + $0xd0] sm:$0xff]
                  %231 = vst [vmem:[%s213 + $0x40] sm:$0xff] %v230
                  %v232 = vld [vmem:[%s212 + $0xd8] sm:$0xff]
                  %233 = vst [vmem:[%s213 + $0x48] sm:$0xff] %v232
                  %v234 = vld [vmem:[%s212 + $0x104] sm:$0xff]
                  %235 = vst [vmem:[%s213 + $0x50] sm:$0xff] %v234
                  %v236 = vld [vmem:[%s212 + $0x10c] sm:$0xff]
                  %237 = vst [vmem:[%s213 + $0x58] sm:$0xff] %v236
                  %v238 = vld [vmem:[%s212 + $0x138] sm:$0xff]
                  %239 = vst [vmem:[%s213 + $0x60] sm:$0xff] %v238
                  %v240 = vld [vmem:[%s212 + $0x140] sm:$0xff]
                  %241 = vst [vmem:[%s213 + $0x68] sm:$0xff] %v240
                  %v242 = vld [vmem:[%s212 + $0x16c] sm:$0xff]
                  %243 = vst [vmem:[%s213 + $0x70] sm:$0xff] %v242
                  %v244 = vld [vmem:[%s212 + $0x174] sm:$0xff]
                  %245 = vst [vmem:[%s213 + $0x78] sm:$0xff] %v244
                  %v246 = vld [vmem:[%s212 + $0x1a0] sm:$0xff]
                  %247 = vst [vmem:[%s213 + $0x80] sm:$0xff] %v246
                  %v248 = vld [vmem:[%s212 + $0x1a8] sm:$0xff]
                  %249 = vst [vmem:[%s213 + $0x88] sm:$0xff] %v248
                  %v250 = vld [vmem:[%s212 + $0x1d4] sm:$0xff]
                  %251 = vst [vmem:[%s213 + $0x90] sm:$0xff] %v250
                  %v252 = vld [vmem:[%s212 + $0x1dc] sm:$0xff]
                  %253 = vst [vmem:[%s213 + $0x98] sm:$0xff] %v252
                  %v254 = vld [vmem:[%s212 + $0x208] sm:$0xff]
                  %255 = vst [vmem:[%s213 + $0xa0] sm:$0xff] %v254
                  %v256 = vld [vmem:[%s212 + $0x210] sm:$0xff]
                  %257 = vst [vmem:[%s213 + $0xa8] sm:$0xff] %v256
                  %v258 = vld [vmem:[%s212 + $0x23c] sm:$0xff]
                  %259 = vst [vmem:[%s213 + $0xb0] sm:$0xff] %v258
                  %v260 = vld [vmem:[%s212 + $0x244] sm:$0xff]
                  %261 = vst [vmem:[%s213 + $0xb8] sm:$0xff] %v260
                  %v262 = vld [vmem:[%s212 + $0x270] sm:$0xff]
                  %263 = vst [vmem:[%s213 + $0xc0] sm:$0xff] %v262
                  %v264 = vld [vmem:[%s212 + $0x278] sm:$0xff]
                  %265 = vst [vmem:[%s213 + $0xc8] sm:$0xff] %v264
                  %v266 = vld [vmem:[%s212 + $0x2a4] sm:$0xff]
                  %267 = vst [vmem:[%s213 + $0xd0] sm:$0xff] %v266
                  %v268 = vld [vmem:[%s212 + $0x2ac] sm:$0xff]
                  %269 = vst [vmem:[%s213 + $0xd8] sm:$0xff] %v268
                  %v270 = vld [vmem:[%s212 + $0x2d8] sm:$0xff]
                  %271 = vst [vmem:[%s213 + $0xe0] sm:$0xff] %v270
                  %v272 = vld [vmem:[%s212 + $0x2e0] sm:$0xff]
                  %273 = vst [vmem:[%s213 + $0xe8] sm:$0xff] %v272
                  %v274 = vld [vmem:[%s212 + $0x30c] sm:$0xff]
                  %275 = vst [vmem:[%s213 + $0xf0] sm:$0xff] %v274
                  %v276 = vld [vmem:[%s212 + $0x314] sm:$0xff]
                  %277 = vst [vmem:[%s213 + $0xf8] sm:$0xff] %v276
                  %s278 = sadd.s32 1, %s211
                  %p279 = scmp.ge.s32.totalorder %s278, %s204
                  %s280 = scalar_select %p279, 0, %s278
                  %s281 = smul.u32 %s280, 16
                  %s282 = smul.u32 %s280, 16
                  %s283 = scalar_lea.vmem %s144, %s281
                  %s284 = scalar_lea.vmem %s136, %s282 [#allocation3]
                $region56: #{_lambda_.7} parent=50 // loop_footer
                  %s208 = sadd.s32 %s206, 1
                $region57: #{_lambda_.7} parent=50 // loop_footer_branch
                  %205 = sbr.rel target = $region53
                $region58: #{_lambda_.7} parent=50 // loop_exit
                  _
                %s285 = sshrl.u32 %s203, 1
                %s286 = sand.u32 %s203, 1
                %s287 = smul.u32 %s285, 2
                %s288 = smul.u32 8, %s287
                %s289 = scalar_lea.vmem %s144, %s288
                %s290 = smul.u32 8, %s287
                %s291 = scalar_lea.vmem %s136, %s290 [#allocation3]
                // While loop
                $region59: #{_lambda_.7} parent=50 // loop_pre_header
                  _
                $region60: #{_lambda_.7} parent=50 // loop_header
                  %s293 = sphi 0, %s295
                  %p294 = scmp.ge.s32.totalorder %s293, %s286
                  %s298 = sphi 0, %s335
                  %s299 = sphi %s289, %s338
                  %s300 = sphi %s291, %s339
                $region61: #{_lambda_.7} parent=50 // loop_header_branch
                  %297 = sbr.rel (%p294) target = $region65
                $region62: #{_lambda_.7} parent=50 // loop_body
                  %v301 = vld [vmem:[%s299] sm:$0xff]
                  %302 = vst [vmem:[%s300] sm:$0xff] %v301
                  %v303 = vld [vmem:[%s299 + $0x34] sm:$0xff]
                  %304 = vst [vmem:[%s300 + $0x10] sm:$0xff] %v303
                  %v305 = vld [vmem:[%s299 + $0x68] sm:$0xff]
                  %306 = vst [vmem:[%s300 + $0x20] sm:$0xff] %v305
                  %v307 = vld [vmem:[%s299 + $0x9c] sm:$0xff]
                  %308 = vst [vmem:[%s300 + $0x30] sm:$0xff] %v307
                  %v309 = vld [vmem:[%s299 + $0xd0] sm:$0xff]
                  %310 = vst [vmem:[%s300 + $0x40] sm:$0xff] %v309
                  %v311 = vld [vmem:[%s299 + $0x104] sm:$0xff]
                  %312 = vst [vmem:[%s300 + $0x50] sm:$0xff] %v311
                  %v313 = vld [vmem:[%s299 + $0x138] sm:$0xff]
                  %314 = vst [vmem:[%s300 + $0x60] sm:$0xff] %v313
                  %v315 = vld [vmem:[%s299 + $0x16c] sm:$0xff]
                  %316 = vst [vmem:[%s300 + $0x70] sm:$0xff] %v315
                  %v317 = vld [vmem:[%s299 + $0x1a0] sm:$0xff]
                  %318 = vst [vmem:[%s300 + $0x80] sm:$0xff] %v317
                  %v319 = vld [vmem:[%s299 + $0x1d4] sm:$0xff]
                  %320 = vst [vmem:[%s300 + $0x90] sm:$0xff] %v319
                  %v321 = vld [vmem:[%s299 + $0x208] sm:$0xff]
                  %322 = vst [vmem:[%s300 + $0xa0] sm:$0xff] %v321
                  %v323 = vld [vmem:[%s299 + $0x23c] sm:$0xff]
                  %324 = vst [vmem:[%s300 + $0xb0] sm:$0xff] %v323
                  %v325 = vld [vmem:[%s299 + $0x270] sm:$0xff]
                  %326 = vst [vmem:[%s300 + $0xc0] sm:$0xff] %v325
                  %v327 = vld [vmem:[%s299 + $0x2a4] sm:$0xff]
                  %328 = vst [vmem:[%s300 + $0xd0] sm:$0xff] %v327
                  %v329 = vld [vmem:[%s299 + $0x2d8] sm:$0xff]
                  %330 = vst [vmem:[%s300 + $0xe0] sm:$0xff] %v329
                  %v331 = vld [vmem:[%s299 + $0x30c] sm:$0xff]
                  %332 = vst [vmem:[%s300 + $0xf0] sm:$0xff] %v331
                  %s333 = sadd.s32 1, %s298
                  %p334 = scmp.ge.s32.totalorder %s333, %s286
                  %s335 = scalar_select %p334, 0, %s333
                  %s336 = smul.u32 %s335, 8
                  %s337 = smul.u32 %s335, 8
                  %s338 = scalar_lea.vmem %s289, %s336
                  %s339 = scalar_lea.vmem %s291, %s337 [#allocation3]
                $region63: #{_lambda_.7} parent=50 // loop_footer
                  %s295 = sadd.s32 %s293, 1
                $region64: #{_lambda_.7} parent=50 // loop_footer_branch
                  %292 = sbr.rel target = $region60
                $region65: #{_lambda_.7} parent=50 // loop_exit
                  _
              $region51: #{_lambda_.7} parent=35 // pred_fallthru
                _
              %p340 = pneg %p199
              // Predicated region
              $region66: #{_lambda_.7} parent=35 // pred_check
                _
              $region67: #{_lambda_.7} parent=35 // pred_check_branch
                %342 = sbr.rel (%p199) target = $region69
              $region68: #{_lambda_.7} parent=35 // pred_region
                %s343 = sand.u32 %s145, 7
                %s344 = ssub.s32 %s145, %s343
                %s345 = scalar_lea.vmem %s144, %s344
                %s346 = ssub.s32 %s145, %s343
                %s347 = scalar_lea.vmem %s136, %s346 [#allocation3]
                %s348 = sshrl.u32 %s145, 3
                %s349 = sshrl.u32 %s348, 1
                // While loop
                $region70: #{_lambda_.7} parent=68 // loop_pre_header
                  _
                $region71: #{_lambda_.7} parent=68 // loop_header
                  %s351 = sphi 0, %s353
                  %p352 = scmp.ge.s32.totalorder %s351, %s349
                  %s356 = sphi 0, %s425
                  %s357 = sphi %s144, %s428
                  %s358 = sphi %s136, %s429
                $region72: #{_lambda_.7} parent=68 // loop_header_branch
                  %355 = sbr.rel (%p352) target = $region76
                $region73: #{_lambda_.7} parent=68 // loop_body
                  %v359 = vld [vmem:[%s357] sm:$0xff]
                  %360 = vst [vmem:[%s358] sm:$0xff] %v359
                  %v361 = vld [vmem:[%s357 + $0x8] sm:$0xff]
                  %362 = vst [vmem:[%s358 + $0x8] sm:$0xff] %v361
                  %v363 = vld [vmem:[%s357 + $0x34] sm:$0xff]
                  %364 = vst [vmem:[%s358 + $0x10] sm:$0xff] %v363
                  %v365 = vld [vmem:[%s357 + $0x3c] sm:$0xff]
                  %366 = vst [vmem:[%s358 + $0x18] sm:$0xff] %v365
                  %v367 = vld [vmem:[%s357 + $0x68] sm:$0xff]
                  %368 = vst [vmem:[%s358 + $0x20] sm:$0xff] %v367
                  %v369 = vld [vmem:[%s357 + $0x70] sm:$0xff]
                  %370 = vst [vmem:[%s358 + $0x28] sm:$0xff] %v369
                  %v371 = vld [vmem:[%s357 + $0x9c] sm:$0xff]
                  %372 = vst [vmem:[%s358 + $0x30] sm:$0xff] %v371
                  %v373 = vld [vmem:[%s357 + $0xa4] sm:$0xff]
                  %374 = vst [vmem:[%s358 + $0x38] sm:$0xff] %v373
                  %v375 = vld [vmem:[%s357 + $0xd0] sm:$0xff]
                  %376 = vst [vmem:[%s358 + $0x40] sm:$0xff] %v375
                  %v377 = vld [vmem:[%s357 + $0xd8] sm:$0xff]
                  %378 = vst [vmem:[%s358 + $0x48] sm:$0xff] %v377
                  %v379 = vld [vmem:[%s357 + $0x104] sm:$0xff]
                  %380 = vst [vmem:[%s358 + $0x50] sm:$0xff] %v379
                  %v381 = vld [vmem:[%s357 + $0x10c] sm:$0xff]
                  %382 = vst [vmem:[%s358 + $0x58] sm:$0xff] %v381
                  %v383 = vld [vmem:[%s357 + $0x138] sm:$0xff]
                  %384 = vst [vmem:[%s358 + $0x60] sm:$0xff] %v383
                  %v385 = vld [vmem:[%s357 + $0x140] sm:$0xff]
                  %386 = vst [vmem:[%s358 + $0x68] sm:$0xff] %v385
                  %v387 = vld [vmem:[%s357 + $0x16c] sm:$0xff]
                  %388 = vst [vmem:[%s358 + $0x70] sm:$0xff] %v387
                  %v389 = vld [vmem:[%s357 + $0x174] sm:$0xff]
                  %390 = vst [vmem:[%s358 + $0x78] sm:$0xff] %v389
                  %v391 = vld [vmem:[%s357 + $0x1a0] sm:$0xff]
                  %392 = vst [vmem:[%s358 + $0x80] sm:$0xff] %v391
                  %v393 = vld [vmem:[%s357 + $0x1a8] sm:$0xff]
                  %394 = vst [vmem:[%s358 + $0x88] sm:$0xff] %v393
                  %v395 = vld [vmem:[%s357 + $0x1d4] sm:$0xff]
                  %396 = vst [vmem:[%s358 + $0x90] sm:$0xff] %v395
                  %v397 = vld [vmem:[%s357 + $0x1dc] sm:$0xff]
                  %398 = vst [vmem:[%s358 + $0x98] sm:$0xff] %v397
                  %v399 = vld [vmem:[%s357 + $0x208] sm:$0xff]
                  %400 = vst [vmem:[%s358 + $0xa0] sm:$0xff] %v399
                  %v401 = vld [vmem:[%s357 + $0x210] sm:$0xff]
                  %402 = vst [vmem:[%s358 + $0xa8] sm:$0xff] %v401
                  %v403 = vld [vmem:[%s357 + $0x23c] sm:$0xff]
                  %404 = vst [vmem:[%s358 + $0xb0] sm:$0xff] %v403
                  %v405 = vld [vmem:[%s357 + $0x244] sm:$0xff]
                  %406 = vst [vmem:[%s358 + $0xb8] sm:$0xff] %v405
                  %v407 = vld [vmem:[%s357 + $0x270] sm:$0xff]
                  %408 = vst [vmem:[%s358 + $0xc0] sm:$0xff] %v407
                  %v409 = vld [vmem:[%s357 + $0x278] sm:$0xff]
                  %410 = vst [vmem:[%s358 + $0xc8] sm:$0xff] %v409
                  %v411 = vld [vmem:[%s357 + $0x2a4] sm:$0xff]
                  %412 = vst [vmem:[%s358 + $0xd0] sm:$0xff] %v411
                  %v413 = vld [vmem:[%s357 + $0x2ac] sm:$0xff]
                  %414 = vst [vmem:[%s358 + $0xd8] sm:$0xff] %v413
                  %v415 = vld [vmem:[%s357 + $0x2d8] sm:$0xff]
                  %416 = vst [vmem:[%s358 + $0xe0] sm:$0xff] %v415
                  %v417 = vld [vmem:[%s357 + $0x2e0] sm:$0xff]
                  %418 = vst [vmem:[%s358 + $0xe8] sm:$0xff] %v417
                  %v419 = vld [vmem:[%s357 + $0x30c] sm:$0xff]
                  %420 = vst [vmem:[%s358 + $0xf0] sm:$0xff] %v419
                  %v421 = vld [vmem:[%s357 + $0x314] sm:$0xff]
                  %422 = vst [vmem:[%s358 + $0xf8] sm:$0xff] %v421
                  %s423 = sadd.s32 1, %s356
                  %p424 = scmp.ge.s32.totalorder %s423, %s349
                  %s425 = scalar_select %p424, 0, %s423
                  %s426 = smul.u32 %s425, 16
                  %s427 = smul.u32 %s425, 16
                  %s428 = scalar_lea.vmem %s144, %s426
                  %s429 = scalar_lea.vmem %s136, %s427 [#allocation3]
                $region74: #{_lambda_.7} parent=68 // loop_footer
                  %s353 = sadd.s32 %s351, 1
                $region75: #{_lambda_.7} parent=68 // loop_footer_branch
                  %350 = sbr.rel target = $region71
                $region76: #{_lambda_.7} parent=68 // loop_exit
                  _
                %s430 = sshrl.u32 %s348, 1
                %s431 = sand.u32 %s348, 1
                %s432 = smul.u32 %s430, 2
                %s433 = smul.u32 8, %s432
                %s434 = scalar_lea.vmem %s144, %s433
                %s435 = smul.u32 8, %s432
                %s436 = scalar_lea.vmem %s136, %s435 [#allocation3]
                // While loop
                $region77: #{_lambda_.7} parent=68 // loop_pre_header
                  _
                $region78: #{_lambda_.7} parent=68 // loop_header
                  %s438 = sphi 0, %s440
                  %p439 = scmp.ge.s32.totalorder %s438, %s431
                  %s443 = sphi 0, %s480
                  %s444 = sphi %s434, %s483
                  %s445 = sphi %s436, %s484
                $region79: #{_lambda_.7} parent=68 // loop_header_branch
                  %442 = sbr.rel (%p439) target = $region83
                $region80: #{_lambda_.7} parent=68 // loop_body
                  %v446 = vld [vmem:[%s444] sm:$0xff]
                  %447 = vst [vmem:[%s445] sm:$0xff] %v446
                  %v448 = vld [vmem:[%s444 + $0x34] sm:$0xff]
                  %449 = vst [vmem:[%s445 + $0x10] sm:$0xff] %v448
                  %v450 = vld [vmem:[%s444 + $0x68] sm:$0xff]
                  %451 = vst [vmem:[%s445 + $0x20] sm:$0xff] %v450
                  %v452 = vld [vmem:[%s444 + $0x9c] sm:$0xff]
                  %453 = vst [vmem:[%s445 + $0x30] sm:$0xff] %v452
                  %v454 = vld [vmem:[%s444 + $0xd0] sm:$0xff]
                  %455 = vst [vmem:[%s445 + $0x40] sm:$0xff] %v454
                  %v456 = vld [vmem:[%s444 + $0x104] sm:$0xff]
                  %457 = vst [vmem:[%s445 + $0x50] sm:$0xff] %v456
                  %v458 = vld [vmem:[%s444 + $0x138] sm:$0xff]
                  %459 = vst [vmem:[%s445 + $0x60] sm:$0xff] %v458
                  %v460 = vld [vmem:[%s444 + $0x16c] sm:$0xff]
                  %461 = vst [vmem:[%s445 + $0x70] sm:$0xff] %v460
                  %v462 = vld [vmem:[%s444 + $0x1a0] sm:$0xff]
                  %463 = vst [vmem:[%s445 + $0x80] sm:$0xff] %v462
                  %v464 = vld [vmem:[%s444 + $0x1d4] sm:$0xff]
                  %465 = vst [vmem:[%s445 + $0x90] sm:$0xff] %v464
                  %v466 = vld [vmem:[%s444 + $0x208] sm:$0xff]
                  %467 = vst [vmem:[%s445 + $0xa0] sm:$0xff] %v466
                  %v468 = vld [vmem:[%s444 + $0x23c] sm:$0xff]
                  %469 = vst [vmem:[%s445 + $0xb0] sm:$0xff] %v468
                  %v470 = vld [vmem:[%s444 + $0x270] sm:$0xff]
                  %471 = vst [vmem:[%s445 + $0xc0] sm:$0xff] %v470
                  %v472 = vld [vmem:[%s444 + $0x2a4] sm:$0xff]
                  %473 = vst [vmem:[%s445 + $0xd0] sm:$0xff] %v472
                  %v474 = vld [vmem:[%s444 + $0x2d8] sm:$0xff]
                  %475 = vst [vmem:[%s445 + $0xe0] sm:$0xff] %v474
                  %v476 = vld [vmem:[%s444 + $0x30c] sm:$0xff]
                  %477 = vst [vmem:[%s445 + $0xf0] sm:$0xff] %v476
                  %s478 = sadd.s32 1, %s443
                  %p479 = scmp.ge.s32.totalorder %s478, %s431
                  %s480 = scalar_select %p479, 0, %s478
                  %s481 = smul.u32 %s480, 8
                  %s482 = smul.u32 %s480, 8
                  %s483 = scalar_lea.vmem %s434, %s481
                  %s484 = scalar_lea.vmem %s436, %s482 [#allocation3]
                $region81: #{_lambda_.7} parent=68 // loop_footer
                  %s440 = sadd.s32 %s438, 1
                $region82: #{_lambda_.7} parent=68 // loop_footer_branch
                  %437 = sbr.rel target = $region78
                $region83: #{_lambda_.7} parent=68 // loop_exit
                  _
                %s485 = sshll.u32 1, %s343
                %s486 = ssub.s32 %s485, 1
                loop: start=0, step=1, limit=1
                $region84: #{_lambda_.7} parent=68 // loop_pre_header
                  _
                $region85: #{_lambda_.7} parent=68 // loop_header
                  %s488 = sphi 0, %s492
                  %p489 = scmp.ge.s32.totalorder %s488, 1
                  %s493 = sphi %s345, %s345
                  %s494 = sphi %s347, %s347
                $region86: #{_lambda_.7} parent=68 // loop_header_branch
                  %491 = sbr.rel (%p489) target = $region90
                $region87: #{_lambda_.7} parent=68 // loop_body
                  %v495 = vld [vmem:[%s493] sm:%s486]
                  %496 = vst [vmem:[%s494] sm:%s486] %v495
                  %v497 = vld [vmem:[%s493 + $0x34] sm:%s486]
                  %498 = vst [vmem:[%s494 + $0x10] sm:%s486] %v497
                  %v499 = vld [vmem:[%s493 + $0x68] sm:%s486]
                  %500 = vst [vmem:[%s494 + $0x20] sm:%s486] %v499
                  %v501 = vld [vmem:[%s493 + $0x9c] sm:%s486]
                  %502 = vst [vmem:[%s494 + $0x30] sm:%s486] %v501
                  %v503 = vld [vmem:[%s493 + $0xd0] sm:%s486]
                  %504 = vst [vmem:[%s494 + $0x40] sm:%s486] %v503
                  %v505 = vld [vmem:[%s493 + $0x104] sm:%s486]
                  %506 = vst [vmem:[%s494 + $0x50] sm:%s486] %v505
                  %v507 = vld [vmem:[%s493 + $0x138] sm:%s486]
                  %508 = vst [vmem:[%s494 + $0x60] sm:%s486] %v507
                  %v509 = vld [vmem:[%s493 + $0x16c] sm:%s486]
                  %510 = vst [vmem:[%s494 + $0x70] sm:%s486] %v509
                  %v511 = vld [vmem:[%s493 + $0x1a0] sm:%s486]
                  %512 = vst [vmem:[%s494 + $0x80] sm:%s486] %v511
                  %v513 = vld [vmem:[%s493 + $0x1d4] sm:%s486]
                  %514 = vst [vmem:[%s494 + $0x90] sm:%s486] %v513
                  %v515 = vld [vmem:[%s493 + $0x208] sm:%s486]
                  %516 = vst [vmem:[%s494 + $0xa0] sm:%s486] %v515
                  %v517 = vld [vmem:[%s493 + $0x23c] sm:%s486]
                  %518 = vst [vmem:[%s494 + $0xb0] sm:%s486] %v517
                  %v519 = vld [vmem:[%s493 + $0x270] sm:%s486]
                  %520 = vst [vmem:[%s494 + $0xc0] sm:%s486] %v519
                  %v521 = vld [vmem:[%s493 + $0x2a4] sm:%s486]
                  %522 = vst [vmem:[%s494 + $0xd0] sm:%s486] %v521
                  %v523 = vld [vmem:[%s493 + $0x2d8] sm:%s486]
                  %524 = vst [vmem:[%s494 + $0xe0] sm:%s486] %v523
                  %v525 = vld [vmem:[%s493 + $0x30c] sm:%s486]
                  %526 = vst [vmem:[%s494 + $0xf0] sm:%s486] %v525
                $region88: #{_lambda_.7} parent=68 // loop_footer
                  %s492 = sadd.s32 1, %s488
                $region89: #{_lambda_.7} parent=68 // loop_footer_branch
                  %487 = sbr.rel target = $region85
                $region90: #{_lambda_.7} parent=68 // loop_exit
                  _
              $region69: #{_lambda_.7} parent=35 // pred_fallthru
                _
            $region36: #{_lambda_.7} parent=31 // pred_fallthru
              _
            // Predicated region
            $region37: #{_lambda_.7} parent=31 // pred_check
              %p153 = pneg %p149
            $region38: #{_lambda_.7} parent=31 // pred_check_branch
              %155 = sbr.rel (%p153) target = $region40
            $region39: #{_lambda_.7} parent=31 // pred_region
              %s156 = sshll.u32 1, %s145
              %s157 = ssub.s32 %s156, 1
              loop: start=0, step=1, limit=1
              $region41: #{_lambda_.7} parent=39 // loop_pre_header
                _
              $region42: #{_lambda_.7} parent=39 // loop_header
                %s159 = sphi 0, %s163
                %p160 = scmp.ge.s32.totalorder %s159, 1
                %s164 = sphi %s144, %s144
                %s165 = sphi %s136, %s136
              $region43: #{_lambda_.7} parent=39 // loop_header_branch
                %162 = sbr.rel (%p160) target = $region47
              $region44: #{_lambda_.7} parent=39 // loop_body
                %v166 = vld [vmem:[%s164] sm:%s157]
                %167 = vst [vmem:[%s165] sm:%s157] %v166
                %v168 = vld [vmem:[%s164 + $0x34] sm:%s157]
                %169 = vst [vmem:[%s165 + $0x10] sm:%s157] %v168
                %v170 = vld [vmem:[%s164 + $0x68] sm:%s157]
                %171 = vst [vmem:[%s165 + $0x20] sm:%s157] %v170
                %v172 = vld [vmem:[%s164 + $0x9c] sm:%s157]
                %173 = vst [vmem:[%s165 + $0x30] sm:%s157] %v172
                %v174 = vld [vmem:[%s164 + $0xd0] sm:%s157]
                %175 = vst [vmem:[%s165 + $0x40] sm:%s157] %v174
                %v176 = vld [vmem:[%s164 + $0x104] sm:%s157]
                %177 = vst [vmem:[%s165 + $0x50] sm:%s157] %v176
                %v178 = vld [vmem:[%s164 + $0x138] sm:%s157]
                %179 = vst [vmem:[%s165 + $0x60] sm:%s157] %v178
                %v180 = vld [vmem:[%s164 + $0x16c] sm:%s157]
                %181 = vst [vmem:[%s165 + $0x70] sm:%s157] %v180
                %v182 = vld [vmem:[%s164 + $0x1a0] sm:%s157]
                %183 = vst [vmem:[%s165 + $0x80] sm:%s157] %v182
                %v184 = vld [vmem:[%s164 + $0x1d4] sm:%s157]
                %185 = vst [vmem:[%s165 + $0x90] sm:%s157] %v184
                %v186 = vld [vmem:[%s164 + $0x208] sm:%s157]
                %187 = vst [vmem:[%s165 + $0xa0] sm:%s157] %v186
                %v188 = vld [vmem:[%s164 + $0x23c] sm:%s157]
                %189 = vst [vmem:[%s165 + $0xb0] sm:%s157] %v188
                %v190 = vld [vmem:[%s164 + $0x270] sm:%s157]
                %191 = vst [vmem:[%s165 + $0xc0] sm:%s157] %v190
                %v192 = vld [vmem:[%s164 + $0x2a4] sm:%s157]
                %193 = vst [vmem:[%s165 + $0xd0] sm:%s157] %v192
                %v194 = vld [vmem:[%s164 + $0x2d8] sm:%s157]
                %195 = vst [vmem:[%s165 + $0xe0] sm:%s157] %v194
                %v196 = vld [vmem:[%s164 + $0x30c] sm:%s157]
                %197 = vst [vmem:[%s165 + $0xf0] sm:%s157] %v196
              $region45: #{_lambda_.7} parent=39 // loop_footer
                %s163 = sadd.s32 1, %s159
              $region46: #{_lambda_.7} parent=39 // loop_footer_branch
                %158 = sbr.rel target = $region42
              $region47: #{_lambda_.7} parent=39 // loop_exit
                _
            $region40: #{_lambda_.7} parent=31 // pred_fallthru
              _
          $region32: #{_lambda_.7} parent=27 // pred_fallthru
            _
          %527 = vnop
        $region28: #{_lambda_.7} parent=23 // pred_fallthru
          _
      $region24: #{_lambda_.7} parent=5 // pred_fallthru
        _
      %p528 = scmp.le.s32.totalorder 1, %s11
      %p529 = scmp.lt.s32.totalorder %s11, 5
      %p530 = pnand %p528, %p529
      %p531 = pneg %p530
      // Predicated region
      $region91: #{_lambda_.7} parent=5 // pred_check
        _
      $region92: #{_lambda_.7} parent=5 // pred_check_branch
        %533 = sbr.rel (%p530) target = $region94
      $region93: #{_lambda_.7} parent=5 // pred_region
        %s534 = ssub.s32 %s11, 1
        %s535 = sand.u32 %s45, 1
        %s536 = sand.u32 %s45, 1
        %s537 = smul.addr %s536, 256
        %s538 = scalar_lea.vmem [#allocation3], %s537
        // Predicated region
        $region95: #{_lambda_.7} parent=93 // pred_check
          %p539 = pneg %p58
        $region96: #{_lambda_.7} parent=93 // pred_check_branch
          %541 = sbr.rel (%p539) target = $region98
        $region97: #{_lambda_.7} parent=93 // pred_region
          _
        $region98: #{_lambda_.7} parent=93 // pred_fallthru
          _
        %p542 = pneg %p32
        %p543 = pneg %p29
        %s544 = sand.u32 %s45, 1
        %s545 = sand.u32 %s45, 1
        %s546 = smul.addr %s545, 256
        %s547 = scalar_lea.vmem [#allocation3], %s546
        %p548 = pneg %p58
        %p549 = pneg %p55
        %p550 = pneg %p79
        %p551 = pneg %p76
        %p552 = pneg %p105
        %p553 = pneg %p102
        %s554 = sand.u32 %s92, 1
        %s555 = sand.u32 %s92, 1
        %s556 = smul.addr %s555, 4
        %s557 = scalar_lea.vmem [#allocation4], %s556
        %s558 = smul.u32 4, %s16
        %s559 = ssub.s32 13, %s558
        %p560 = scmp.lt.s32.totalorder %s559, 4
        %s561 = scalar_select %p560, %s559, 4
        %s562 = smul.u32 64, %s561
        %s563 = smul.u32 4, %s16
        %s564 = ssub.s32 13, %s563
        %p565 = scmp.lt.s32.totalorder %s564, 4
        %s566 = scalar_select %p565, %s564, 4
        %v567 = vld [vmem:[%s0] sm:$0x1]
        %v568 = vld [vmem:[%s538] sm:$0xff]
        %v569 = vld [vmem:[%s538 + $0x8] sm:$0xff]
        %v570 = vld [vmem:[%s538 + $0x10] sm:$0xff]
        %v571 = vld [vmem:[%s538 + $0x18] sm:$0xff]
        %v572 = vld [vmem:[%s538 + $0x20] sm:$0xff]
        %v573 = vld [vmem:[%s538 + $0x28] sm:$0xff]
        %v574 = vld [vmem:[%s538 + $0x30] sm:$0xff]
        %v575 = vld [vmem:[%s538 + $0x38] sm:$0xff]
        %v576 = vld [vmem:[%s538 + $0x40] sm:$0xff]
        %v577 = vld [vmem:[%s538 + $0x48] sm:$0xff]
        %v578 = vld [vmem:[%s538 + $0x50] sm:$0xff]
        %v579 = vld [vmem:[%s538 + $0x58] sm:$0xff]
        %v580 = vld [vmem:[%s538 + $0x60] sm:$0xff]
        %v581 = vld [vmem:[%s538 + $0x68] sm:$0xff]
        %v582 = vld [vmem:[%s538 + $0x70] sm:$0xff]
        %v583 = vld [vmem:[%s538 + $0x78] sm:$0xff]
        %v584 = vld [vmem:[%s538 + $0x80] sm:$0xff]
        %v585 = vld [vmem:[%s538 + $0x88] sm:$0xff]
        %v586 = vld [vmem:[%s538 + $0x90] sm:$0xff]
        %v587 = vld [vmem:[%s538 + $0x98] sm:$0xff]
        %v588 = vld [vmem:[%s538 + $0xa0] sm:$0xff]
        %v589 = vld [vmem:[%s538 + $0xa8] sm:$0xff]
        %v590 = vld [vmem:[%s538 + $0xb0] sm:$0xff]
        %v591 = vld [vmem:[%s538 + $0xb8] sm:$0xff]
        %v592 = vld [vmem:[%s538 + $0xc0] sm:$0xff]
        %v593 = vld [vmem:[%s538 + $0xc8] sm:$0xff]
        %v594 = vld [vmem:[%s538 + $0xd0] sm:$0xff]
        %v595 = vld [vmem:[%s538 + $0xd8] sm:$0xff]
        %v596 = vld [vmem:[%s538 + $0xe0] sm:$0xff]
        %v597 = vld [vmem:[%s538 + $0xe8] sm:$0xff]
        %v598 = vld [vmem:[%s538 + $0xf0] sm:$0xff]
        %v599 = vld [vmem:[%s538 + $0xf8] sm:$0xff]
        %v600 = vld [vmem:[#allocation2] sm:$0x1]
        %602 = vset.pattern.permute.xlu0 0
        %603 = vperm.xlu0 %602, %v600
        %v604 = vpop.permute.xlu0 %603
        %v606 = vperm.slane %v604, 0
        %v639 = vunpack.c.l.b16 %v568
        %v640 = vunpack.c.h.b16 %v568
        %v641 = vunpack.c.l.b16 %v569
        %v642 = vunpack.c.h.b16 %v569
        %v643 = vunpack.c.l.b16 %v570
        %v644 = vunpack.c.h.b16 %v570
        %v645 = vunpack.c.l.b16 %v571
        %v646 = vunpack.c.h.b16 %v571
        %v647 = vunpack.c.l.b16 %v572
        %v648 = vunpack.c.h.b16 %v572
        %v649 = vunpack.c.l.b16 %v573
        %v650 = vunpack.c.h.b16 %v573
        %v651 = vunpack.c.l.b16 %v574
        %v652 = vunpack.c.h.b16 %v574
        %v653 = vunpack.c.l.b16 %v575
        %v654 = vunpack.c.h.b16 %v575
        %v655 = vunpack.c.l.b16 %v576
        %v656 = vunpack.c.h.b16 %v576
        %v657 = vunpack.c.l.b16 %v577
        %v658 = vunpack.c.h.b16 %v577
        %v659 = vunpack.c.l.b16 %v578
        %v660 = vunpack.c.h.b16 %v578
        %v661 = vunpack.c.l.b16 %v579
        %v662 = vunpack.c.h.b16 %v579
        %v663 = vunpack.c.l.b16 %v580
        %v664 = vunpack.c.h.b16 %v580
        %v665 = vunpack.c.l.b16 %v581
        %v666 = vunpack.c.h.b16 %v581
        %v667 = vunpack.c.l.b16 %v582
        %v668 = vunpack.c.h.b16 %v582
        %v669 = vunpack.c.l.b16 %v583
        %v670 = vunpack.c.h.b16 %v583
        %v671 = vunpack.c.l.b16 %v584
        %v672 = vunpack.c.h.b16 %v584
        %v673 = vunpack.c.l.b16 %v585
        %v674 = vunpack.c.h.b16 %v585
        %v675 = vunpack.c.l.b16 %v586
        %v676 = vunpack.c.h.b16 %v586
        %v677 = vunpack.c.l.b16 %v587
        %v678 = vunpack.c.h.b16 %v587
        %v679 = vunpack.c.l.b16 %v588
        %v680 = vunpack.c.h.b16 %v588
        %v681 = vunpack.c.l.b16 %v589
        %v682 = vunpack.c.h.b16 %v589
        %v683 = vunpack.c.l.b16 %v590
        %v684 = vunpack.c.h.b16 %v590
        %v685 = vunpack.c.l.b16 %v591
        %v686 = vunpack.c.h.b16 %v591
        %v687 = vunpack.c.l.b16 %v592
        %v688 = vunpack.c.h.b16 %v592
        %v689 = vunpack.c.l.b16 %v593
        %v690 = vunpack.c.h.b16 %v593
        %v691 = vunpack.c.l.b16 %v594
        %v692 = vunpack.c.h.b16 %v594
        %v693 = vunpack.c.l.b16 %v595
        %v694 = vunpack.c.h.b16 %v595
        %v695 = vunpack.c.l.b16 %v596
        %v696 = vunpack.c.h.b16 %v596
        %v697 = vunpack.c.l.b16 %v597
        %v698 = vunpack.c.h.b16 %v597
        %v699 = vunpack.c.l.b16 %v598
        %v700 = vunpack.c.h.b16 %v598
        %v701 = vunpack.c.l.b16 %v599
        %v702 = vunpack.c.h.b16 %v599
        %v703 = vpack.c.b16 %v643, %v639
        %v704 = vpack.c.b16 %v644, %v640
        %v705 = vpack.c.b16 %v645, %v641
        %v706 = vpack.c.b16 %v646, %v642
        %v707 = vpack.c.b16 %v651, %v647
        %v708 = vpack.c.b16 %v652, %v648
        %v709 = vpack.c.b16 %v653, %v649
        %v710 = vpack.c.b16 %v654, %v650
        %v711 = vpack.c.b16 %v659, %v655
        %v712 = vpack.c.b16 %v660, %v656
        %v713 = vpack.c.b16 %v661, %v657
        %v714 = vpack.c.b16 %v662, %v658
        %v715 = vpack.c.b16 %v667, %v663
        %v716 = vpack.c.b16 %v668, %v664
        %v717 = vpack.c.b16 %v669, %v665
        %v718 = vpack.c.b16 %v670, %v666
        %v719 = vpack.c.b16 %v675, %v671
        %v720 = vpack.c.b16 %v676, %v672
        %v721 = vpack.c.b16 %v677, %v673
        %v722 = vpack.c.b16 %v678, %v674
        %v723 = vpack.c.b16 %v683, %v679
        %v724 = vpack.c.b16 %v684, %v680
        %v725 = vpack.c.b16 %v685, %v681
        %v726 = vpack.c.b16 %v686, %v682
        %v727 = vpack.c.b16 %v691, %v687
        %v728 = vpack.c.b16 %v692, %v688
        %v729 = vpack.c.b16 %v693, %v689
        %v730 = vpack.c.b16 %v694, %v690
        %v731 = vpack.c.b16 %v699, %v695
        %v732 = vpack.c.b16 %v700, %v696
        %v733 = vpack.c.b16 %v701, %v697
        %v734 = vpack.c.b16 %v702, %v698
        %767 = vmatpush.bf16.msra.mxu0 %v731
        %768 = vmatpush.bf16.msra.mxu0 %v727
        %769 = vmatpush.bf16.msra.mxu0 %v723
        %770 = vmatpush.bf16.msra.mxu0 %v719
        %771 = vmatpush.bf16.msra.mxu0 %v715
        %772 = vmatpush.bf16.msra.mxu0 %v711
        %773 = vmatpush.bf16.msra.mxu0 %v707
        %774 = vmatpush.bf16.msra.mxu0 %v703
        %775 = vmatmul.bf16.gmra.mxu0 %v567
        %v776 = vpop.f32.mrf.mxu0
        %v777 = vadd.f32 %v606, %v776
        %v778 = vpop.f32.mrf.mxu0
        %779 = vdwg.mxu0
        %780 = vmatpush.bf16.msra.mxu0 %v732
        %781 = vmatpush.bf16.msra.mxu0 %v728
        %782 = vmatpush.bf16.msra.mxu0 %v724
        %783 = vmatpush.bf16.msra.mxu0 %v720
        %784 = vmatpush.bf16.msra.mxu0 %v716
        %785 = vmatpush.bf16.msra.mxu0 %v712
        %786 = vmatpush.bf16.msra.mxu0 %v708
        %787 = vmatpush.bf16.msra.mxu0 %v704
        %788 = vmatmul.bf16.gmra.mxu0 %v567
        %v789 = vpop.f32.mrf.mxu0
        %v790 = vadd.f32 %v606, %v789
        %v791 = vpop.f32.mrf.mxu0
        %792 = vdwg.mxu0
        %793 = vmatpush.bf16.msra.mxu0 %v733
        %794 = vmatpush.bf16.msra.mxu0 %v729
        %795 = vmatpush.bf16.msra.mxu0 %v725
        %796 = vmatpush.bf16.msra.mxu0 %v721
        %797 = vmatpush.bf16.msra.mxu0 %v717
        %798 = vmatpush.bf16.msra.mxu0 %v713
        %799 = vmatpush.bf16.msra.mxu0 %v709
        %800 = vmatpush.bf16.msra.mxu0 %v705
        %801 = vmatmul.bf16.gmra.mxu0 %v567
        %v802 = vpop.f32.mrf.mxu0
        %v803 = vadd.f32 %v606, %v802
        %v804 = vpop.f32.mrf.mxu0
        %805 = vdwg.mxu0
        %806 = vmatpush.bf16.msra.mxu0 %v734
        %807 = vmatpush.bf16.msra.mxu0 %v730
        %808 = vmatpush.bf16.msra.mxu0 %v726
        %809 = vmatpush.bf16.msra.mxu0 %v722
        %810 = vmatpush.bf16.msra.mxu0 %v718
        %811 = vmatpush.bf16.msra.mxu0 %v714
        %812 = vmatpush.bf16.msra.mxu0 %v710
        %813 = vmatpush.bf16.msra.mxu0 %v706
        %814 = vmatmul.bf16.gmra.mxu0 %v567
        %v815 = vpop.f32.mrf.mxu0
        %v816 = vadd.f32 %v606, %v815
        %v817 = vpop.f32.mrf.mxu0
        %818 = vdwg.mxu0
        %v819 = vtanh.pop %v777
        %v820 = vtanh.pop %v790
        %v821 = vtanh.pop %v803
        %v822 = vtanh.pop %v816
        %v827 = vrot.slane %v820, 7
        %v828 = vrot.slane %v821, 6
        %v829 = vrot.slane %v822, 5
        %vm830 = vcmask 1040384
        %v831 = vsel %vm830, %v819, %v827
        %vm832 = vcmask 1042434
        %v833 = vsel %vm832, %v828, %v829
        %vm834 = vcmask 1041408
        %v835 = vsel %vm834, %v831, %v833
        %v837 = vlaneseq
        %vm838 = vcmp.ge.s32.totalorder %v837, 0
        %vm839 = vcmp.lt.s32.totalorder %v837, 512
        %vm840 = vmand %vm838, %vm839
        %841 = vst.msk [vmem:[%s557] sm:$0xf] %vm840, %v835
        %s842 = sand.u32 %s92, 1
        %s843 = sand.u32 %s92, 1
        %s844 = smul.addr %s843, 4
        %s845 = scalar_lea.vmem [#allocation4], %s844
        // Predicated region
        $region99: #{_lambda_.7} parent=93 // pred_check
          %p846 = pneg %p102
        $region100: #{_lambda_.7} parent=93 // pred_check_branch
          %848 = sbr.rel (%p846) target = $region102
        $region101: #{_lambda_.7} parent=93 // pred_region
          %s849 = smul.u32 4, %s16
          %s850 = ssub.s32 13, %s849
          %p851 = scmp.lt.s32.totalorder %s850, 4
          %s852 = scalar_select %p851, %s850, 4
          %p853 = scmp.ne.s32.totalorder 0, %s852
          %s854 = scalar_lea.vmem %s3, %s849
          // Predicated region
          $region103: #{_lambda_.7} parent=101 // pred_check
            %p855 = pneg %p853
          $region104: #{_lambda_.7} parent=101 // pred_check_branch
            %857 = sbr.rel (%p855) target = $region106
          $region105: #{_lambda_.7} parent=101 // pred_region
            %p858 = scmp.lt.u32.totalorder %s852, 8
            %p859 = pneg %p858
            // Predicated region
            $region107: #{_lambda_.7} parent=105 // pred_check
              _
            $region108: #{_lambda_.7} parent=105 // pred_check_branch
              %861 = sbr.rel (%p858) target = $region110
            $region109: #{_lambda_.7} parent=105 // pred_region
              %s877 = sand.u32 %s852, 7
              %p878 = scmp.eq.s32.totalorder %s877, 0
              // Predicated region
              $region122: #{_lambda_.7} parent=109 // pred_check
                %p879 = pneg %p878
              $region123: #{_lambda_.7} parent=109 // pred_check_branch
                %881 = sbr.rel (%p879) target = $region125
              $region124: #{_lambda_.7} parent=109 // pred_region
                %s882 = sshrl.u32 %s852, 3
                %s883 = sshrl.u32 %s882, 5
                // While loop
                $region126: #{_lambda_.7} parent=124 // loop_pre_header
                  _
                $region127: #{_lambda_.7} parent=124 // loop_header
                  %s885 = sphi 0, %s887
                  %p886 = scmp.ge.s32.totalorder %s885, %s883
                  %s890 = sphi 0, %s959
                  %s891 = sphi %s845, %s962
                  %s892 = sphi %s854, %s963
                $region128: #{_lambda_.7} parent=124 // loop_header_branch
                  %889 = sbr.rel (%p886) target = $region132
                $region129: #{_lambda_.7} parent=124 // loop_body
                  %v893 = vld [vmem:[%s891] sm:$0xff]
                  %894 = vst [vmem:[%s892] sm:$0xff] %v893
                  %v895 = vld [vmem:[%s891 + $0x8] sm:$0xff]
                  %896 = vst [vmem:[%s892 + $0x8] sm:$0xff] %v895
                  %v897 = vld [vmem:[%s891 + $0x10] sm:$0xff]
                  %898 = vst [vmem:[%s892 + $0x10] sm:$0xff] %v897
                  %v899 = vld [vmem:[%s891 + $0x18] sm:$0xff]
                  %900 = vst [vmem:[%s892 + $0x18] sm:$0xff] %v899
                  %v901 = vld [vmem:[%s891 + $0x20] sm:$0xff]
                  %902 = vst [vmem:[%s892 + $0x20] sm:$0xff] %v901
                  %v903 = vld [vmem:[%s891 + $0x28] sm:$0xff]
                  %904 = vst [vmem:[%s892 + $0x28] sm:$0xff] %v903
                  %v905 = vld [vmem:[%s891 + $0x30] sm:$0xff]
                  %906 = vst [vmem:[%s892 + $0x30] sm:$0xff] %v905
                  %v907 = vld [vmem:[%s891 + $0x38] sm:$0xff]
                  %908 = vst [vmem:[%s892 + $0x38] sm:$0xff] %v907
                  %v909 = vld [vmem:[%s891 + $0x40] sm:$0xff]
                  %910 = vst [vmem:[%s892 + $0x40] sm:$0xff] %v909
                  %v911 = vld [vmem:[%s891 + $0x48] sm:$0xff]
                  %912 = vst [vmem:[%s892 + $0x48] sm:$0xff] %v911
                  %v913 = vld [vmem:[%s891 + $0x50] sm:$0xff]
                  %914 = vst [vmem:[%s892 + $0x50] sm:$0xff] %v913
                  %v915 = vld [vmem:[%s891 + $0x58] sm:$0xff]
                  %916 = vst [vmem:[%s892 + $0x58] sm:$0xff] %v915
                  %v917 = vld [vmem:[%s891 + $0x60] sm:$0xff]
                  %918 = vst [vmem:[%s892 + $0x60] sm:$0xff] %v917
                  %v919 = vld [vmem:[%s891 + $0x68] sm:$0xff]
                  %920 = vst [vmem:[%s892 + $0x68] sm:$0xff] %v919
                  %v921 = vld [vmem:[%s891 + $0x70] sm:$0xff]
                  %922 = vst [vmem:[%s892 + $0x70] sm:$0xff] %v921
                  %v923 = vld [vmem:[%s891 + $0x78] sm:$0xff]
                  %924 = vst [vmem:[%s892 + $0x78] sm:$0xff] %v923
                  %v925 = vld [vmem:[%s891 + $0x80] sm:$0xff]
                  %926 = vst [vmem:[%s892 + $0x80] sm:$0xff] %v925
                  %v927 = vld [vmem:[%s891 + $0x88] sm:$0xff]
                  %928 = vst [vmem:[%s892 + $0x88] sm:$0xff] %v927
                  %v929 = vld [vmem:[%s891 + $0x90] sm:$0xff]
                  %930 = vst [vmem:[%s892 + $0x90] sm:$0xff] %v929
                  %v931 = vld [vmem:[%s891 + $0x98] sm:$0xff]
                  %932 = vst [vmem:[%s892 + $0x98] sm:$0xff] %v931
                  %v933 = vld [vmem:[%s891 + $0xa0] sm:$0xff]
                  %934 = vst [vmem:[%s892 + $0xa0] sm:$0xff] %v933
                  %v935 = vld [vmem:[%s891 + $0xa8] sm:$0xff]
                  %936 = vst [vmem:[%s892 + $0xa8] sm:$0xff] %v935
                  %v937 = vld [vmem:[%s891 + $0xb0] sm:$0xff]
                  %938 = vst [vmem:[%s892 + $0xb0] sm:$0xff] %v937
                  %v939 = vld [vmem:[%s891 + $0xb8] sm:$0xff]
                  %940 = vst [vmem:[%s892 + $0xb8] sm:$0xff] %v939
                  %v941 = vld [vmem:[%s891 + $0xc0] sm:$0xff]
                  %942 = vst [vmem:[%s892 + $0xc0] sm:$0xff] %v941
                  %v943 = vld [vmem:[%s891 + $0xc8] sm:$0xff]
                  %944 = vst [vmem:[%s892 + $0xc8] sm:$0xff] %v943
                  %v945 = vld [vmem:[%s891 + $0xd0] sm:$0xff]
                  %946 = vst [vmem:[%s892 + $0xd0] sm:$0xff] %v945
                  %v947 = vld [vmem:[%s891 + $0xd8] sm:$0xff]
                  %948 = vst [vmem:[%s892 + $0xd8] sm:$0xff] %v947
                  %v949 = vld [vmem:[%s891 + $0xe0] sm:$0xff]
                  %950 = vst [vmem:[%s892 + $0xe0] sm:$0xff] %v949
                  %v951 = vld [vmem:[%s891 + $0xe8] sm:$0xff]
                  %952 = vst [vmem:[%s892 + $0xe8] sm:$0xff] %v951
                  %v953 = vld [vmem:[%s891 + $0xf0] sm:$0xff]
                  %954 = vst [vmem:[%s892 + $0xf0] sm:$0xff] %v953
                  %v955 = vld [vmem:[%s891 + $0xf8] sm:$0xff]
                  %956 = vst [vmem:[%s892 + $0xf8] sm:$0xff] %v955
                  %s957 = sadd.s32 1, %s890
                  %p958 = scmp.ge.s32.totalorder %s957, %s883
                  %s959 = scalar_select %p958, 0, %s957
                  %s960 = smul.u32 %s959, 256
                  %s961 = smul.u32 %s959, 256
                  %s962 = scalar_lea.vmem %s845, %s960 [#allocation4]
                  %s963 = scalar_lea.vmem %s854, %s961
                $region130: #{_lambda_.7} parent=124 // loop_footer
                  %s887 = sadd.s32 %s885, 1
                $region131: #{_lambda_.7} parent=124 // loop_footer_branch
                  %884 = sbr.rel target = $region127
                $region132: #{_lambda_.7} parent=124 // loop_exit
                  _
                %s964 = sshrl.u32 %s882, 5
                %s965 = sand.u32 %s882, 31
                %s966 = smul.u32 %s964, 32
                %s967 = smul.u32 8, %s966
                %s968 = scalar_lea.vmem %s845, %s967 [#allocation4]
                %s969 = smul.u32 8, %s966
                %s970 = scalar_lea.vmem %s854, %s969
                // While loop
                $region133: #{_lambda_.7} parent=124 // loop_pre_header
                  _
                $region134: #{_lambda_.7} parent=124 // loop_header
                  %s972 = sphi 0, %s974
                  %p973 = scmp.ge.s32.totalorder %s972, %s965
                  %s977 = sphi 0, %s984
                  %s978 = sphi %s968, %s987
                  %s979 = sphi %s970, %s988
                $region135: #{_lambda_.7} parent=124 // loop_header_branch
                  %976 = sbr.rel (%p973) target = $region139
                $region136: #{_lambda_.7} parent=124 // loop_body
                  %v980 = vld [vmem:[%s978] sm:$0xff]
                  %981 = vst [vmem:[%s979] sm:$0xff] %v980
                  %s982 = sadd.s32 1, %s977
                  %p983 = scmp.ge.s32.totalorder %s982, %s965
                  %s984 = scalar_select %p983, 0, %s982
                  %s985 = smul.u32 %s984, 8
                  %s986 = smul.u32 %s984, 8
                  %s987 = scalar_lea.vmem %s968, %s985 [#allocation4]
                  %s988 = scalar_lea.vmem %s970, %s986
                $region137: #{_lambda_.7} parent=124 // loop_footer
                  %s974 = sadd.s32 %s972, 1
                $region138: #{_lambda_.7} parent=124 // loop_footer_branch
                  %971 = sbr.rel target = $region134
                $region139: #{_lambda_.7} parent=124 // loop_exit
                  _
              $region125: #{_lambda_.7} parent=109 // pred_fallthru
                _
              %p989 = pneg %p878
              // Predicated region
              $region140: #{_lambda_.7} parent=109 // pred_check
                _
              $region141: #{_lambda_.7} parent=109 // pred_check_branch
                %991 = sbr.rel (%p878) target = $region143
              $region142: #{_lambda_.7} parent=109 // pred_region
                %s992 = sand.u32 %s852, 7
                %s993 = ssub.s32 %s852, %s992
                %s994 = scalar_lea.vmem %s845, %s993 [#allocation4]
                %s995 = ssub.s32 %s852, %s992
                %s996 = scalar_lea.vmem %s854, %s995
                %s997 = sshrl.u32 %s852, 3
                %s998 = sshrl.u32 %s997, 5
                // While loop
                $region144: #{_lambda_.7} parent=142 // loop_pre_header
                  _
                $region145: #{_lambda_.7} parent=142 // loop_header
                  %s1000 = sphi 0, %s1002
                  %p1001 = scmp.ge.s32.totalorder %s1000, %s998
                  %s1005 = sphi 0, %s1074
                  %s1006 = sphi %s845, %s1077
                  %s1007 = sphi %s854, %s1078
                $region146: #{_lambda_.7} parent=142 // loop_header_branch
                  %1004 = sbr.rel (%p1001) target = $region150
                $region147: #{_lambda_.7} parent=142 // loop_body
                  %v1008 = vld [vmem:[%s1006] sm:$0xff]
                  %1009 = vst [vmem:[%s1007] sm:$0xff] %v1008
                  %v1010 = vld [vmem:[%s1006 + $0x8] sm:$0xff]
                  %1011 = vst [vmem:[%s1007 + $0x8] sm:$0xff] %v1010
                  %v1012 = vld [vmem:[%s1006 + $0x10] sm:$0xff]
                  %1013 = vst [vmem:[%s1007 + $0x10] sm:$0xff] %v1012
                  %v1014 = vld [vmem:[%s1006 + $0x18] sm:$0xff]
                  %1015 = vst [vmem:[%s1007 + $0x18] sm:$0xff] %v1014
                  %v1016 = vld [vmem:[%s1006 + $0x20] sm:$0xff]
                  %1017 = vst [vmem:[%s1007 + $0x20] sm:$0xff] %v1016
                  %v1018 = vld [vmem:[%s1006 + $0x28] sm:$0xff]
                  %1019 = vst [vmem:[%s1007 + $0x28] sm:$0xff] %v1018
                  %v1020 = vld [vmem:[%s1006 + $0x30] sm:$0xff]
                  %1021 = vst [vmem:[%s1007 + $0x30] sm:$0xff] %v1020
                  %v1022 = vld [vmem:[%s1006 + $0x38] sm:$0xff]
                  %1023 = vst [vmem:[%s1007 + $0x38] sm:$0xff] %v1022
                  %v1024 = vld [vmem:[%s1006 + $0x40] sm:$0xff]
                  %1025 = vst [vmem:[%s1007 + $0x40] sm:$0xff] %v1024
                  %v1026 = vld [vmem:[%s1006 + $0x48] sm:$0xff]
                  %1027 = vst [vmem:[%s1007 + $0x48] sm:$0xff] %v1026
                  %v1028 = vld [vmem:[%s1006 + $0x50] sm:$0xff]
                  %1029 = vst [vmem:[%s1007 + $0x50] sm:$0xff] %v1028
                  %v1030 = vld [vmem:[%s1006 + $0x58] sm:$0xff]
                  %1031 = vst [vmem:[%s1007 + $0x58] sm:$0xff] %v1030
                  %v1032 = vld [vmem:[%s1006 + $0x60] sm:$0xff]
                  %1033 = vst [vmem:[%s1007 + $0x60] sm:$0xff] %v1032
                  %v1034 = vld [vmem:[%s1006 + $0x68] sm:$0xff]
                  %1035 = vst [vmem:[%s1007 + $0x68] sm:$0xff] %v1034
                  %v1036 = vld [vmem:[%s1006 + $0x70] sm:$0xff]
                  %1037 = vst [vmem:[%s1007 + $0x70] sm:$0xff] %v1036
                  %v1038 = vld [vmem:[%s1006 + $0x78] sm:$0xff]
                  %1039 = vst [vmem:[%s1007 + $0x78] sm:$0xff] %v1038
                  %v1040 = vld [vmem:[%s1006 + $0x80] sm:$0xff]
                  %1041 = vst [vmem:[%s1007 + $0x80] sm:$0xff] %v1040
                  %v1042 = vld [vmem:[%s1006 + $0x88] sm:$0xff]
                  %1043 = vst [vmem:[%s1007 + $0x88] sm:$0xff] %v1042
                  %v1044 = vld [vmem:[%s1006 + $0x90] sm:$0xff]
                  %1045 = vst [vmem:[%s1007 + $0x90] sm:$0xff] %v1044
                  %v1046 = vld [vmem:[%s1006 + $0x98] sm:$0xff]
                  %1047 = vst [vmem:[%s1007 + $0x98] sm:$0xff] %v1046
                  %v1048 = vld [vmem:[%s1006 + $0xa0] sm:$0xff]
                  %1049 = vst [vmem:[%s1007 + $0xa0] sm:$0xff] %v1048
                  %v1050 = vld [vmem:[%s1006 + $0xa8] sm:$0xff]
                  %1051 = vst [vmem:[%s1007 + $0xa8] sm:$0xff] %v1050
                  %v1052 = vld [vmem:[%s1006 + $0xb0] sm:$0xff]
                  %1053 = vst [vmem:[%s1007 + $0xb0] sm:$0xff] %v1052
                  %v1054 = vld [vmem:[%s1006 + $0xb8] sm:$0xff]
                  %1055 = vst [vmem:[%s1007 + $0xb8] sm:$0xff] %v1054
                  %v1056 = vld [vmem:[%s1006 + $0xc0] sm:$0xff]
                  %1057 = vst [vmem:[%s1007 + $0xc0] sm:$0xff] %v1056
                  %v1058 = vld [vmem:[%s1006 + $0xc8] sm:$0xff]
                  %1059 = vst [vmem:[%s1007 + $0xc8] sm:$0xff] %v1058
                  %v1060 = vld [vmem:[%s1006 + $0xd0] sm:$0xff]
                  %1061 = vst [vmem:[%s1007 + $0xd0] sm:$0xff] %v1060
                  %v1062 = vld [vmem:[%s1006 + $0xd8] sm:$0xff]
                  %1063 = vst [vmem:[%s1007 + $0xd8] sm:$0xff] %v1062
                  %v1064 = vld [vmem:[%s1006 + $0xe0] sm:$0xff]
                  %1065 = vst [vmem:[%s1007 + $0xe0] sm:$0xff] %v1064
                  %v1066 = vld [vmem:[%s1006 + $0xe8] sm:$0xff]
                  %1067 = vst [vmem:[%s1007 + $0xe8] sm:$0xff] %v1066
                  %v1068 = vld [vmem:[%s1006 + $0xf0] sm:$0xff]
                  %1069 = vst [vmem:[%s1007 + $0xf0] sm:$0xff] %v1068
                  %v1070 = vld [vmem:[%s1006 + $0xf8] sm:$0xff]
                  %1071 = vst [vmem:[%s1007 + $0xf8] sm:$0xff] %v1070
                  %s1072 = sadd.s32 1, %s1005
                  %p1073 = scmp.ge.s32.totalorder %s1072, %s998
                  %s1074 = scalar_select %p1073, 0, %s1072
                  %s1075 = smul.u32 %s1074, 256
                  %s1076 = smul.u32 %s1074, 256
                  %s1077 = scalar_lea.vmem %s845, %s1075 [#allocation4]
                  %s1078 = scalar_lea.vmem %s854, %s1076
                $region148: #{_lambda_.7} parent=142 // loop_footer
                  %s1002 = sadd.s32 %s1000, 1
                $region149: #{_lambda_.7} parent=142 // loop_footer_branch
                  %999 = sbr.rel target = $region145
                $region150: #{_lambda_.7} parent=142 // loop_exit
                  _
                %s1079 = sshrl.u32 %s997, 5
                %s1080 = sand.u32 %s997, 31
                %s1081 = smul.u32 %s1079, 32
                %s1082 = smul.u32 8, %s1081
                %s1083 = scalar_lea.vmem %s845, %s1082 [#allocation4]
                %s1084 = smul.u32 8, %s1081
                %s1085 = scalar_lea.vmem %s854, %s1084
                // While loop
                $region151: #{_lambda_.7} parent=142 // loop_pre_header
                  _
                $region152: #{_lambda_.7} parent=142 // loop_header
                  %s1087 = sphi 0, %s1089
                  %p1088 = scmp.ge.s32.totalorder %s1087, %s1080
                  %s1092 = sphi 0, %s1099
                  %s1093 = sphi %s1083, %s1102
                  %s1094 = sphi %s1085, %s1103
                $region153: #{_lambda_.7} parent=142 // loop_header_branch
                  %1091 = sbr.rel (%p1088) target = $region157
                $region154: #{_lambda_.7} parent=142 // loop_body
                  %v1095 = vld [vmem:[%s1093] sm:$0xff]
                  %1096 = vst [vmem:[%s1094] sm:$0xff] %v1095
                  %s1097 = sadd.s32 1, %s1092
                  %p1098 = scmp.ge.s32.totalorder %s1097, %s1080
                  %s1099 = scalar_select %p1098, 0, %s1097
                  %s1100 = smul.u32 %s1099, 8
                  %s1101 = smul.u32 %s1099, 8
                  %s1102 = scalar_lea.vmem %s1083, %s1100 [#allocation4]
                  %s1103 = scalar_lea.vmem %s1085, %s1101
                $region155: #{_lambda_.7} parent=142 // loop_footer
                  %s1089 = sadd.s32 %s1087, 1
                $region156: #{_lambda_.7} parent=142 // loop_footer_branch
                  %1086 = sbr.rel target = $region152
                $region157: #{_lambda_.7} parent=142 // loop_exit
                  _
                %s1104 = sshll.u32 1, %s992
                %s1105 = ssub.s32 %s1104, 1
                loop: start=0, step=1, limit=1
                $region158: #{_lambda_.7} parent=142 // loop_pre_header
                  _
                $region159: #{_lambda_.7} parent=142 // loop_header
                  %s1107 = sphi 0, %s1111
                  %p1108 = scmp.ge.s32.totalorder %s1107, 1
                  %s1112 = sphi %s994, %s994
                  %s1113 = sphi %s996, %s996
                $region160: #{_lambda_.7} parent=142 // loop_header_branch
                  %1110 = sbr.rel (%p1108) target = $region164
                $region161: #{_lambda_.7} parent=142 // loop_body
                  %v1114 = vld [vmem:[%s1112] sm:%s1105]
                  %1115 = vst [vmem:[%s1113] sm:%s1105] %v1114
                $region162: #{_lambda_.7} parent=142 // loop_footer
                  %s1111 = sadd.s32 1, %s1107
                $region163: #{_lambda_.7} parent=142 // loop_footer_branch
                  %1106 = sbr.rel target = $region159
                $region164: #{_lambda_.7} parent=142 // loop_exit
                  _
              $region143: #{_lambda_.7} parent=109 // pred_fallthru
                _
            $region110: #{_lambda_.7} parent=105 // pred_fallthru
              _
            // Predicated region
            $region111: #{_lambda_.7} parent=105 // pred_check
              %p862 = pneg %p858
            $region112: #{_lambda_.7} parent=105 // pred_check_branch
              %864 = sbr.rel (%p862) target = $region114
            $region113: #{_lambda_.7} parent=105 // pred_region
              %s865 = sshll.u32 1, %s852
              %s866 = ssub.s32 %s865, 1
              loop: start=0, step=1, limit=1
              $region115: #{_lambda_.7} parent=113 // loop_pre_header
                _
              $region116: #{_lambda_.7} parent=113 // loop_header
                %s868 = sphi 0, %s872
                %p869 = scmp.ge.s32.totalorder %s868, 1
                %s873 = sphi %s845, %s845
                %s874 = sphi %s854, %s854
              $region117: #{_lambda_.7} parent=113 // loop_header_branch
                %871 = sbr.rel (%p869) target = $region121
              $region118: #{_lambda_.7} parent=113 // loop_body
                %v875 = vld [vmem:[%s873] sm:%s866]
                %876 = vst [vmem:[%s874] sm:%s866] %v875
              $region119: #{_lambda_.7} parent=113 // loop_footer
                %s872 = sadd.s32 1, %s868
              $region120: #{_lambda_.7} parent=113 // loop_footer_branch
                %867 = sbr.rel target = $region116
              $region121: #{_lambda_.7} parent=113 // loop_exit
                _
            $region114: #{_lambda_.7} parent=105 // pred_fallthru
              _
          $region106: #{_lambda_.7} parent=101 // pred_fallthru
            _
          %1116 = vnop
        $region102: #{_lambda_.7} parent=93 // pred_fallthru
          _
      $region94: #{_lambda_.7} parent=5 // pred_fallthru
        _
      %p1117 = scmp.le.s32.totalorder 2, %s11
      // Predicated region
      $region165: #{_lambda_.7} parent=5 // pred_check
        %p1118 = pneg %p1117
      $region166: #{_lambda_.7} parent=5 // pred_check_branch
        %1120 = sbr.rel (%p1118) target = $region168
      $region167: #{_lambda_.7} parent=5 // pred_region
        %s1121 = ssub.s32 %s11, 2
        // Predicated region
        $region169: #{_lambda_.7} parent=167 // pred_check
          %p1122 = pneg %p108
        $region170: #{_lambda_.7} parent=167 // pred_check_branch
          %1124 = sbr.rel (%p1122) target = $region172
        $region171: #{_lambda_.7} parent=167 // pred_region
          %s1125 = sand.u32 %s93, 1
          %s1126 = sand.u32 %s93, 1
          %s1127 = smul.addr %s1126, 4
          %s1128 = scalar_lea.vmem [#allocation4], %s1127
        $region172: #{_lambda_.7} parent=167 // pred_fallthru
          _
      $region168: #{_lambda_.7} parent=5 // pred_fallthru
        _
    $region6: #{_lambda_.7} parent=1 // loop_footer
      %s15 = sadd.s32 1, %s11
    $region7: #{_lambda_.7} parent=1 // loop_footer_branch
      %10 = sbr.rel target = $region3
    $region8: #{_lambda_.7} parent=1 // loop_exit
      _

</llo_original>
